<compile_context>
chip_gen: v7x
topology: tpu7x:2x2x1
jax: 0.10.0
libtpu: 0.0.40
codegen_flags: <defaults>
</compile_context>

<pallas_src>
import jax
import jax.numpy as jnp
import numpy as np
from jax.experimental import pallas as pl
from jax.experimental.pallas import tpu as pltpu


def _make_coupling_kernel(in_channels, hidden_channels, kernel_size,
                          dilation_rate, n_layers, T, Bt, pad_max,
                          sigmoid_scale=False, reverse=False):
    C = in_channels
    Ch = in_channels // 2
    H = hidden_channels
    K = kernel_size
    BT = Bt * T
    pm = pad_max

    def kernel(x_ref, mask_ref, ws_ref, bs_ref, win_ref, bin_ref,
               wrs_ref, brs_ref, wrsl_ref, brsl_ref, we_ref, be_ref,
               z_ref, logdet_ref, hpad_ref):
        # Zero the halo rows of the padded-h scratch (interior is rewritten
        # every layer; halos stay zero so shifted window reads see "same" pad).
        if pm > 0:
            hpad_ref[:, :pm, :] = jnp.zeros((Bt, pm, H), jnp.float32)
            hpad_ref[:, pm + T:, :] = jnp.zeros((Bt, pm, H), jnp.float32)

        xb = x_ref[...]                               # (Bt, T, C) f32
        mask_f = mask_ref[...].reshape(BT, 1)         # (Bt*T, 1)
        # Hoisted broadcasts (JAX does not CSE broadcast_in_dim in the loop).
        mask_h = jnp.broadcast_to(mask_f, (BT, H))
        mask_c = jnp.broadcast_to(mask_f, (BT, Ch))

        x0 = xb[:, :, :Ch].reshape(BT, Ch)            # (Bt*T, Ch)
        x1 = xb[:, :, Ch:].reshape(BT, Ch)

        # ---- start: 1x1 conv (weight-norm folded), bf16 MXU, f32 accumulate ----
        h = (jnp.dot(x0.astype(jnp.bfloat16), ws_ref[...],
                     preferred_element_type=jnp.float32) + bs_ref[0]) * mask_f

        # ---- WN core: n_layers of (fused) dilated conv + gate + res/skip ----
        out_skip = jnp.zeros((BT, H), jnp.float32)
        for i in range(n_layers):
            d = dilation_rate ** i
            pad = d * (K - 1) // 2
            # Refresh interior of the halo scratch with the current h.
            hpad_ref[:, pm:pm + T, :] = h.reshape(Bt, T, H)
            # Gather the K dilated taps along the lane axis -> one wide operand,
            # then a single (Bt*T, K*H) @ (K*H, 2H) matmul instead of K dots.
            taps = [hpad_ref[:, pm - pad + j * d: pm - pad + j * d + T, :]
                    for j in range(K)]
            gathered = jnp.concatenate(taps, axis=-1).reshape(BT, K * H)
            x_in = jnp.dot(gathered.astype(jnp.bfloat16), win_ref[i],
                           preferred_element_type=jnp.float32) + bin_ref[i]
            # fused_add_tanh_sigmoid_multiply (g is None since gin_channels==0)
            acts = jnp.tanh(x_in[:, :H]) * jax.nn.sigmoid(x_in[:, H:])
            acts_b = acts.astype(jnp.bfloat16)
            if i < n_layers - 1:
                rs = jnp.dot(acts_b, wrs_ref[i],
                             preferred_element_type=jnp.float32) + brs_ref[i]
                h = (h + rs[:, :H]) * mask_h
                out_skip = out_skip + rs[:, H:]
            else:
                # Last WN layer has a skip-only (H -> H) res_skip conv.
                skip = jnp.dot(acts_b, wrsl_ref[...],
                               preferred_element_type=jnp.float32) + brsl_ref[0]
                out_skip = out_skip + skip

        wn_out = out_skip * mask_h

        # ---- end: 1x1 conv -> (m, logs), affine coupling, logdet ----
        out = jnp.dot(wn_out.astype(jnp.bfloat16), we_ref[...],
                      preferred_element_type=jnp.float32) + be_ref[0]  # (BT, C)
        m = out[:, :Ch]
        logs = out[:, Ch:]
        if sigmoid_scale:
            logs = jnp.log(1e-6 + jax.nn.sigmoid(logs + 2.0))
        if reverse:
            z1 = (x1 - m) * jnp.exp(-logs) * mask_c
            ld_full = -logs * mask_c
        else:
            z1 = (m + jnp.exp(logs) * x1) * mask_c
            ld_full = logs * mask_c

        # Single full-width store of z (x0 passthrough + transformed half).
        z_ref[...] = jnp.concatenate([x0, z1], axis=-1).reshape(Bt, T, C)

        ld3 = ld_full.reshape(Bt, T, Ch)
        ld = jnp.sum(jnp.sum(ld3, axis=2, keepdims=True), axis=1, keepdims=True)
        logdet_ref[...] = ld                          # (Bt, 1, 1)

    return kernel


def coupling_block_forward(x, x_mask, params, *, in_channels, hidden_channels,
                           kernel_size, dilation_rate, n_layers,
                           sigmoid_scale=False, reverse=False, block_b=1):
    """x: (B, T, C) f32, x_mask: (B, T, 1) f32. Returns (z, logdet)."""
    B, T, C = x.shape
    assert C == in_channels and C % 2 == 0
    assert n_layers >= 2
    assert B % block_b == 0
    Ch, H, K = C // 2, hidden_channels, kernel_size
    Bt = block_b
    Ws, bs, W_in, b_in, W_rs, b_rs, W_rs_last, b_rs_last, W_e, b_e = params

    pad_max = (dilation_rate ** (n_layers - 1)) * (K - 1) // 2

    # Matmul weights in bf16 (MXU-native); biases stay f32.
    Ws_b = Ws.astype(jnp.bfloat16)
    W_in_f = W_in.reshape(n_layers, K * H, 2 * H).astype(jnp.bfloat16)  # fused taps
    W_rs_b = W_rs.astype(jnp.bfloat16)
    W_rs_last_b = W_rs_last.astype(jnp.bfloat16)
    W_e_b = W_e.astype(jnp.bfloat16)

    kernel = _make_coupling_kernel(in_channels, hidden_channels, kernel_size,
                                   dilation_rate, n_layers, T, Bt, pad_max,
                                   sigmoid_scale=sigmoid_scale, reverse=reverse)

    full2 = lambda b: (0, 0)
    full3 = lambda b: (0, 0, 0)
    in_specs = [
        pl.BlockSpec((Bt, T, C), lambda b: (b, 0, 0)),               # x
        pl.BlockSpec((Bt, T, 1), lambda b: (b, 0, 0)),               # x_mask
        pl.BlockSpec((Ch, H), full2),                                # W_start (bf16)
        pl.BlockSpec((1, H), full2),                                 # b_start
        pl.BlockSpec((n_layers, K * H, 2 * H), full3),               # W_in fused (bf16)
        pl.BlockSpec((n_layers, 2 * H), full2),                      # b_in
        pl.BlockSpec((n_layers - 1, H, 2 * H), full3),               # W_res_skip (bf16)
        pl.BlockSpec((n_layers - 1, 2 * H), full2),                  # b_res_skip
        pl.BlockSpec((H, H), full2),                                 # W_res_skip last (bf16)
        pl.BlockSpec((1, H), full2),                                 # b_res_skip last
        pl.BlockSpec((H, C), full2),                                 # W_end (bf16)
        pl.BlockSpec((1, C), full2),                                 # b_end
    ]
    out_specs = [
        pl.BlockSpec((Bt, T, C), lambda b: (b, 0, 0)),               # z
        pl.BlockSpec((Bt, 1, 1), lambda b: (b, 0, 0)),               # logdet
    ]
    out_shape = [
        jax.ShapeDtypeStruct((B, T, C), jnp.float32),
        jax.ShapeDtypeStruct((B, 1, 1), jnp.float32),
    ]
    scratch_shapes = [pltpu.VMEM((Bt, T + 2 * pad_max, H), jnp.float32)]

    z, logdet = pl.pallas_call(
        kernel,
        grid=(B // Bt,),
        in_specs=in_specs,
        out_specs=out_specs,
        out_shape=out_shape,
        scratch_shapes=scratch_shapes,
        compiler_params=pltpu.CompilerParams(
            dimension_semantics=("parallel",)),
    )(x, x_mask, Ws_b, bs, W_in_f, b_in, W_rs_b, b_rs,
      W_rs_last_b, b_rs_last, W_e_b, b_e)
    return z, logdet[:, 0, 0]


def coupling_block_reference(x, x_mask, params, *, in_channels, hidden_channels,
                             kernel_size, dilation_rate, n_layers,
                             sigmoid_scale=False, reverse=False):
    """Pure-JAX f32 reference (same math as the PyTorch module)."""
    Ws, bs, W_in, b_in, W_rs, b_rs, W_rs_last, b_rs_last, W_e, b_e = params
    B, T, C = x.shape
    Ch, H, K = C // 2, hidden_channels, kernel_size
    x0, x1 = x[..., :Ch], x[..., Ch:]
    h = (jnp.einsum("btc,ch->bth", x0, Ws) + bs[0]) * x_mask
    out_skip = jnp.zeros((B, T, H), jnp.float32)
    for i in range(n_layers):
        d = dilation_rate ** i
        pad = d * (K - 1) // 2
        hp = jnp.pad(h, ((0, 0), (pad, pad), (0, 0)))
        x_in = jnp.zeros((B, T, 2 * H), jnp.float32)
        for j in range(K):
            x_in = x_in + jnp.einsum("bth,hg->btg",
                                     hp[:, j * d:j * d + T, :], W_in[i, j])
        x_in = x_in + b_in[i]
        acts = jnp.tanh(x_in[..., :H]) * jax.nn.sigmoid(x_in[..., H:])
        if i < n_layers - 1:
            rs = jnp.einsum("bth,hg->btg", acts, W_rs[i]) + b_rs[i]
            h = (h + rs[..., :H]) * x_mask
            out_skip = out_skip + rs[..., H:]
        else:
            out_skip = out_skip + jnp.einsum("bth,hg->btg", acts, W_rs_last) \
                + b_rs_last[0]
    wn_out = out_skip * x_mask
    out = jnp.einsum("bth,hc->btc", wn_out, W_e) + b_e[0]
    m, logs = out[..., :Ch], out[..., Ch:]
    if sigmoid_scale:
        logs = jnp.log(1e-6 + jax.nn.sigmoid(logs + 2.0))
    if reverse:
        z1 = (x1 - m) * jnp.exp(-logs) * x_mask
        logdet = jnp.sum(-logs * x_mask, axis=(1, 2))
    else:
        z1 = (m + jnp.exp(logs) * x1) * x_mask
        logdet = jnp.sum(logs * x_mask, axis=(1, 2))
    z = jnp.concatenate([x0, z1], axis=-1)
    return z, logdet


if __name__ == "__main__":
    # module config
    in_channels = 8
    hidden_channels = 32
    kernel_size = 3
    dilation_rate = 1
    n_layers = 4
    sigmoid_scale = False

    B, T = 4, 64
    C = in_channels
    Ch, H, K = in_channels // 2, hidden_channels, kernel_size

    key = jax.random.PRNGKey(0)
    ks = jax.random.split(key, 12)

    # Parameters (effective weights; weight-norm folded), math layout (Cin, Cout).
    Ws = 0.3 * jax.random.normal(ks[0], (Ch, H), jnp.float32)
    bs = 0.1 * jax.random.normal(ks[1], (1, H), jnp.float32)
    W_in = 0.2 * jax.random.normal(ks[2], (n_layers, K, H, 2 * H), jnp.float32)
    b_in = 0.1 * jax.random.normal(ks[3], (n_layers, 2 * H), jnp.float32)
    # First n_layers-1 res_skip convs output (res | skip) = 2H channels; the
    # last WN layer's res_skip conv is skip-only (H outputs), as in torch.
    W_rs = 0.2 * jax.random.normal(ks[4], (n_layers - 1, H, 2 * H), jnp.float32)
    b_rs = 0.1 * jax.random.normal(ks[5], (n_layers - 1, 2 * H), jnp.float32)
    W_rs_last = 0.2 * jax.random.normal(ks[6], (H, H), jnp.float32)
    b_rs_last = 0.1 * jax.random.normal(ks[7], (1, H), jnp.float32)
    # `end` conv is zero-initialised in torch __init__; use small nonzero values
    # here so the affine/logdet path is actually exercised.
    W_e = 0.05 * jax.random.normal(ks[8], (H, C), jnp.float32)
    b_e = 0.02 * jax.random.normal(ks[9], (1, C), jnp.float32)
    params = (Ws, bs, W_in, b_in, W_rs, b_rs, W_rs_last, b_rs_last, W_e, b_e)

    # Inputs
    x = jax.random.normal(ks[10], (B, T, C), jnp.float32)
    lengths = jnp.array([T, T - 16, T - 7, T - 32])
    x_mask = (jnp.arange(T)[None, :] < lengths[:, None]
              ).astype(jnp.float32)[..., None]          # (B, T, 1)

    cfg = dict(in_channels=in_channels, hidden_channels=hidden_channels,
               kernel_size=kernel_size, dilation_rate=dilation_rate,
               n_layers=n_layers, sigmoid_scale=sigmoid_scale, reverse=False)

    z_k, logdet_k = coupling_block_forward(x, x_mask, params, block_b=2, **cfg)
    z_k = jax.block_until_ready(z_k)
    logdet_k = jax.block_until_ready(logdet_k)

    z_r, logdet_r = coupling_block_reference(x, x_mask, params, **cfg)
    # Kernel uses bf16 MXU operands with f32 accumulation; reference is pure f32,
    # so tolerances account for the documented precision trade (≈0.3% / element,
    # logdet is a 256-term sum).
    np.testing.assert_allclose(np.asarray(z_k), np.asarray(z_r),
                               rtol=3e-2, atol=5e-2)
    np.testing.assert_allclose(np.asarray(logdet_k), np.asarray(logdet_r),
                               rtol=3e-2, atol=5e-1)

    print("KERNEL_OK")
</pallas_src>

<mosaic_0001>
module attributes {stable_mosaic.version = 11 : i64} {
  func.func @kernel(%arg0: i32, %arg1: memref<2x64x8xf32, #tpu.memory_space<vmem>>, %arg2: memref<2x64x1xf32, #tpu.memory_space<vmem>>, %arg3: memref<4x32xbf16, #tpu.memory_space<vmem>>, %arg4: memref<1x32xf32, #tpu.memory_space<vmem>>, %arg5: memref<4x96x64xbf16, #tpu.memory_space<vmem>>, %arg6: memref<4x64xf32, #tpu.memory_space<vmem>>, %arg7: memref<3x32x64xbf16, #tpu.memory_space<vmem>>, %arg8: memref<3x64xf32, #tpu.memory_space<vmem>>, %arg9: memref<32x32xbf16, #tpu.memory_space<vmem>>, %arg10: memref<1x32xf32, #tpu.memory_space<vmem>>, %arg11: memref<32x8xbf16, #tpu.memory_space<vmem>>, %arg12: memref<1x8xf32, #tpu.memory_space<vmem>>, %arg13: memref<2x64x8xf32, #tpu.memory_space<vmem>>, %arg14: memref<2x1x1xf32, #tpu.memory_space<vmem>>, %arg15: memref<2x66x32xf32, #tpu.memory_space<vmem>>) attributes {dimension_semantics = [#tpu.dimension_semantics<parallel>], iteration_bounds = array<i64: 2>, scalar_prefetch = 0 : i64, scratch_operands = 1 : i64, tpu.core_type = #tpu.core_type<tc>, window_params = [{transform_indices = @transform_0, window_bounds = array<i64: 2, 64, 8>}, {transform_indices = @transform_1, window_bounds = array<i64: 2, 64, 1>}, {pipeline_mode = #tpu.pipeline_mode<synchronous>, transform_indices = @transform_2, window_bounds = array<i64: 4, 32>}, {pipeline_mode = #tpu.pipeline_mode<synchronous>, transform_indices = @transform_3, window_bounds = array<i64: 1, 32>}, {pipeline_mode = #tpu.pipeline_mode<synchronous>, transform_indices = @transform_4, window_bounds = array<i64: 4, 96, 64>}, {pipeline_mode = #tpu.pipeline_mode<synchronous>, transform_indices = @transform_5, window_bounds = array<i64: 4, 64>}, {pipeline_mode = #tpu.pipeline_mode<synchronous>, transform_indices = @transform_6, window_bounds = array<i64: 3, 32, 64>}, {pipeline_mode = #tpu.pipeline_mode<synchronous>, transform_indices = @transform_7, window_bounds = array<i64: 3, 64>}, {pipeline_mode = #tpu.pipeline_mode<synchronous>, transform_indices = @transform_8, window_bounds = array<i64: 32, 32>}, {pipeline_mode = #tpu.pipeline_mode<synchronous>, transform_indices = @transform_9, window_bounds = array<i64: 1, 32>}, {pipeline_mode = #tpu.pipeline_mode<synchronous>, transform_indices = @transform_10, window_bounds = array<i64: 32, 8>}, {pipeline_mode = #tpu.pipeline_mode<synchronous>, transform_indices = @transform_11, window_bounds = array<i64: 1, 8>}, {transform_indices = @transform_12, window_bounds = array<i64: 2, 64, 8>}, {transform_indices = @transform_13, window_bounds = array<i64: 2, 1, 1>}]} {
    %cst = arith.constant 0.000000e+00 : f32
    %0 = vector.broadcast %cst : f32 to vector<2x1x32xf32>
    %c0 = arith.constant 0 : index
    %c0_0 = arith.constant 0 : index
    %c0_1 = arith.constant 0 : index
    %1 = vector.load %arg15[%c0, %c0_0, %c0_1] : memref<2x66x32xf32, #tpu.memory_space<vmem>>, vector<2x1x32xf32>
    tpu.vector_store %arg15[%c0, %c0_0, %c0_1], %0 {strides = array<i32>} : memref<2x66x32xf32, #tpu.memory_space<vmem>>, vector<2x1x32xf32>,
    %cst_2 = arith.constant 0.000000e+00 : f32
    %2 = vector.broadcast %cst_2 : f32 to vector<2x1x32xf32>
    %c0_3 = arith.constant 0 : index
    %c65 = arith.constant 65 : index
    %c0_4 = arith.constant 0 : index
    %3 = vector.load %arg15[%c0_3, %c65, %c0_4] : memref<2x66x32xf32, #tpu.memory_space<vmem>>, vector<2x1x32xf32>
    tpu.vector_store %arg15[%c0_3, %c65, %c0_4], %2 {strides = array<i32>} : memref<2x66x32xf32, #tpu.memory_space<vmem>>, vector<2x1x32xf32>,
    %c0_5 = arith.constant 0 : index
    %c0_6 = arith.constant 0 : index
    %c0_7 = arith.constant 0 : index
    %4 = vector.load %arg1[%c0_5, %c0_6, %c0_7] : memref<2x64x8xf32, #tpu.memory_space<vmem>>, vector<2x64x8xf32>
    %c0_8 = arith.constant 0 : index
    %c0_9 = arith.constant 0 : index
    %c0_10 = arith.constant 0 : index
    %5 = vector.load %arg2[%c0_8, %c0_9, %c0_10] : memref<2x64x1xf32, #tpu.memory_space<vmem>>, vector<2x64x1xf32>
    %6 = vector.shape_cast %5 : vector<2x64x1xf32> to vector<128x1xf32>
    %7 = vector.shape_cast %6 : vector<128x1xf32> to vector<128x1xf32>
    %8 = vector.broadcast %7 : vector<128x1xf32> to vector<128x32xf32>
    %9 = vector.shape_cast %6 : vector<128x1xf32> to vector<128x1xf32>
    %10 = vector.broadcast %9 : vector<128x1xf32> to vector<128x4xf32>
    %11 = vector.extract_strided_slice %4 {offsets = [0, 0, 0], sizes = [2, 64, 4], strides = [1, 1, 1]} : vector<2x64x8xf32> to vector<2x64x4xf32>
    %12 = vector.shape_cast %11 : vector<2x64x4xf32> to vector<128x4xf32>
    %13 = vector.extract_strided_slice %4 {offsets = [0, 0, 4], sizes = [2, 64, 4], strides = [1, 1, 1]} : vector<2x64x8xf32> to vector<2x64x4xf32>
    %14 = vector.shape_cast %13 : vector<2x64x4xf32> to vector<128x4xf32>
    %15 = arith.truncf %12 : vector<128x4xf32> to vector<128x4xbf16>
    %c0_11 = arith.constant 0 : index
    %c0_12 = arith.constant 0 : index
    %16 = vector.load %arg3[%c0_11, %c0_12] : memref<4x32xbf16, #tpu.memory_space<vmem>>, vector<4x32xbf16>
    %cst_13 = arith.constant dense<0.000000e+00> : vector<128x32xf32>
    %17 = tpu.matmul %15, %16, %cst_13 {dimension_numbers = #tpu.dot_dimension_numbers<[1], [0], [0], [1], [0, 0, 1, 1], [], []>} : vector<128x4xbf16>, vector<4x32xbf16>, vector<128x32xf32> -> vector<128x32xf32>
    %c0_14 = arith.constant 0 : index
    %c0_15 = arith.constant 0 : index
    %18 = vector.load %arg4[%c0_14, %c0_15] : memref<1x32xf32, #tpu.memory_space<vmem>>, vector<1x32xf32>
    %19 = vector.shape_cast %18 : vector<1x32xf32> to vector<32xf32>
    %20 = vector.shape_cast %19 : vector<32xf32> to vector<1x32xf32>
    %21 = vector.broadcast %20 : vector<1x32xf32> to vector<128x32xf32>
    %22 = arith.addf %17, %21 : vector<128x32xf32>
    %23 = vector.broadcast %6 : vector<128x1xf32> to vector<128x32xf32>
    %24 = arith.mulf %22, %23 : vector<128x32xf32>
    %cst_16 = arith.constant 0.000000e+00 : f32
    %25 = vector.broadcast %cst_16 : f32 to vector<128x32xf32>
    %26 = vector.shape_cast %24 : vector<128x32xf32> to vector<2x64x32xf32>
    %c0_17 = arith.constant 0 : index
    %c1 = arith.constant 1 : index
    %c0_18 = arith.constant 0 : index
    %27 = vector.load %arg15[%c0_17, %c1, %c0_18] : memref<2x66x32xf32, #tpu.memory_space<vmem>>, vector<2x64x32xf32>
    tpu.vector_store %arg15[%c0_17, %c1, %c0_18], %26 {strides = array<i32>} : memref<2x66x32xf32, #tpu.memory_space<vmem>>, vector<2x64x32xf32>,
    %c0_19 = arith.constant 0 : index
    %c0_20 = arith.constant 0 : index
    %c0_21 = arith.constant 0 : index
    %28 = vector.load %arg15[%c0_19, %c0_20, %c0_21] : memref<2x66x32xf32, #tpu.memory_space<vmem>>, vector<2x64x32xf32>
    %c0_22 = arith.constant 0 : index
    %c1_23 = arith.constant 1 : index
    %c0_24 = arith.constant 0 : index
    %29 = vector.load %arg15[%c0_22, %c1_23, %c0_24] : memref<2x66x32xf32, #tpu.memory_space<vmem>>, vector<2x64x32xf32>
    %c0_25 = arith.constant 0 : index
    %c2 = arith.constant 2 : index
    %c0_26 = arith.constant 0 : index
    %30 = vector.load %arg15[%c0_25, %c2, %c0_26] : memref<2x66x32xf32, #tpu.memory_space<vmem>>, vector<2x64x32xf32>
    %31 = tpu.concatenate %28, %29, %30 in 2 : vector<2x64x32xf32>, vector<2x64x32xf32>, vector<2x64x32xf32> -> vector<2x64x96xf32>
    %32 = vector.shape_cast %31 : vector<2x64x96xf32> to vector<128x96xf32>
    %33 = arith.truncf %32 : vector<128x96xf32> to vector<128x96xbf16>
    %c0_27 = arith.constant 0 : index
    %c0_28 = arith.constant 0 : index
    %c0_29 = arith.constant 0 : index
    %34 = vector.load %arg5[%c0_27, %c0_28, %c0_29] : memref<4x96x64xbf16, #tpu.memory_space<vmem>>, vector<1x96x64xbf16>
    %35 = vector.shape_cast %34 : vector<1x96x64xbf16> to vector<96x64xbf16>
    %cst_30 = arith.constant dense<0.000000e+00> : vector<128x64xf32>
    %36 = tpu.matmul %33, %35, %cst_30 {dimension_numbers = #tpu.dot_dimension_numbers<[1], [0], [0], [1], [0, 0, 1, 1], [], []>} : vector<128x96xbf16>, vector<96x64xbf16>, vector<128x64xf32> -> vector<128x64xf32>
    %c0_31 = arith.constant 0 : index
    %c0_32 = arith.constant 0 : index
    %37 = vector.load %arg6[%c0_31, %c0_32] : memref<4x64xf32, #tpu.memory_space<vmem>>, vector<1x64xf32>
    %38 = vector.shape_cast %37 : vector<1x64xf32> to vector<64xf32>
    %39 = vector.shape_cast %38 : vector<64xf32> to vector<1x64xf32>
    %40 = vector.broadcast %39 : vector<1x64xf32> to vector<128x64xf32>
    %41 = arith.addf %36, %40 : vector<128x64xf32>
    %42 = vector.extract_strided_slice %41 {offsets = [0, 0], sizes = [128, 32], strides = [1, 1]} : vector<128x64xf32> to vector<128x32xf32>
    %43 = math.tanh %42 : vector<128x32xf32>
    %44 = vector.extract_strided_slice %41 {offsets = [0, 32], sizes = [128, 32], strides = [1, 1]} : vector<128x64xf32> to vector<128x32xf32>
    %45 = arith.negf %44 : vector<128x32xf32>
    %46 = math.exp %45 : vector<128x32xf32>
    %cst_33 = arith.constant 1.000000e+00 : f32
    %47 = vector.broadcast %cst_33 : f32 to vector<128x32xf32>
    %48 = arith.addf %47, %46 : vector<128x32xf32>
    %49 = arith.divf %47, %48 : vector<128x32xf32>
    %50 = arith.mulf %43, %49 : vector<128x32xf32>
    %51 = arith.truncf %50 : vector<128x32xf32> to vector<128x32xbf16>
    %c0_34 = arith.constant 0 : index
    %c0_35 = arith.constant 0 : index
    %c0_36 = arith.constant 0 : index
    %52 = vector.load %arg7[%c0_34, %c0_35, %c0_36] : memref<3x32x64xbf16, #tpu.memory_space<vmem>>, vector<1x32x64xbf16>
    %53 = vector.shape_cast %52 : vector<1x32x64xbf16> to vector<32x64xbf16>
    %cst_37 = arith.constant dense<0.000000e+00> : vector<128x64xf32>
    %54 = tpu.matmul %51, %53, %cst_37 {dimension_numbers = #tpu.dot_dimension_numbers<[1], [0], [0], [1], [0, 0, 1, 1], [], []>} : vector<128x32xbf16>, vector<32x64xbf16>, vector<128x64xf32> -> vector<128x64xf32>
    %c0_38 = arith.constant 0 : index
    %c0_39 = arith.constant 0 : index
    %55 = vector.load %arg8[%c0_38, %c0_39] : memref<3x64xf32, #tpu.memory_space<vmem>>, vector<1x64xf32>
    %56 = vector.shape_cast %55 : vector<1x64xf32> to vector<64xf32>
    %57 = vector.shape_cast %56 : vector<64xf32> to vector<1x64xf32>
    %58 = vector.broadcast %57 : vector<1x64xf32> to vector<128x64xf32>
    %59 = arith.addf %54, %58 : vector<128x64xf32>
    %60 = vector.extract_strided_slice %59 {offsets = [0, 0], sizes = [128, 32], strides = [1, 1]} : vector<128x64xf32> to vector<128x32xf32>
    %61 = arith.addf %24, %60 : vector<128x32xf32>
    %62 = arith.mulf %61, %8 : vector<128x32xf32>
    %63 = vector.extract_strided_slice %59 {offsets = [0, 32], sizes = [128, 32], strides = [1, 1]} : vector<128x64xf32> to vector<128x32xf32>
    %64 = arith.addf %25, %63 : vector<128x32xf32>
    %65 = vector.shape_cast %62 : vector<128x32xf32> to vector<2x64x32xf32>
    %c0_40 = arith.constant 0 : index
    %c1_41 = arith.constant 1 : index
    %c0_42 = arith.constant 0 : index
    %66 = vector.load %arg15[%c0_40, %c1_41, %c0_42] : memref<2x66x32xf32, #tpu.memory_space<vmem>>, vector<2x64x32xf32>
    tpu.vector_store %arg15[%c0_40, %c1_41, %c0_42], %65 {strides = array<i32>} : memref<2x66x32xf32, #tpu.memory_space<vmem>>, vector<2x64x32xf32>,
    %c0_43 = arith.constant 0 : index
    %c0_44 = arith.constant 0 : index
    %c0_45 = arith.constant 0 : index
    %67 = vector.load %arg15[%c0_43, %c0_44, %c0_45] : memref<2x66x32xf32, #tpu.memory_space<vmem>>, vector<2x64x32xf32>
    %c0_46 = arith.constant 0 : index
    %c1_47 = arith.constant 1 : index
    %c0_48 = arith.constant 0 : index
    %68 = vector.load %arg15[%c0_46, %c1_47, %c0_48] : memref<2x66x32xf32, #tpu.memory_space<vmem>>, vector<2x64x32xf32>
    %c0_49 = arith.constant 0 : index
    %c2_50 = arith.constant 2 : index
    %c0_51 = arith.constant 0 : index
    %69 = vector.load %arg15[%c0_49, %c2_50, %c0_51] : memref<2x66x32xf32, #tpu.memory_space<vmem>>, vector<2x64x32xf32>
    %70 = tpu.concatenate %67, %68, %69 in 2 : vector<2x64x32xf32>, vector<2x64x32xf32>, vector<2x64x32xf32> -> vector<2x64x96xf32>
    %71 = vector.shape_cast %70 : vector<2x64x96xf32> to vector<128x96xf32>
    %72 = arith.truncf %71 : vector<128x96xf32> to vector<128x96xbf16>
    %c1_52 = arith.constant 1 : index
    %c0_53 = arith.constant 0 : index
    %c0_54 = arith.constant 0 : index
    %73 = vector.load %arg5[%c1_52, %c0_53, %c0_54] : memref<4x96x64xbf16, #tpu.memory_space<vmem>>, vector<1x96x64xbf16>
    %74 = vector.shape_cast %73 : vector<1x96x64xbf16> to vector<96x64xbf16>
    %cst_55 = arith.constant dense<0.000000e+00> : vector<128x64xf32>
    %75 = tpu.matmul %72, %74, %cst_55 {dimension_numbers = #tpu.dot_dimension_numbers<[1], [0], [0], [1], [0, 0, 1, 1], [], []>} : vector<128x96xbf16>, vector<96x64xbf16>, vector<128x64xf32> -> vector<128x64xf32>
    %c1_56 = arith.constant 1 : index
    %c0_57 = arith.constant 0 : index
    %76 = vector.load %arg6[%c1_56, %c0_57] : memref<4x64xf32, #tpu.memory_space<vmem>>, vector<1x64xf32>
    %77 = vector.shape_cast %76 : vector<1x64xf32> to vector<64xf32>
    %78 = vector.shape_cast %77 : vector<64xf32> to vector<1x64xf32>
    %79 = vector.broadcast %78 : vector<1x64xf32> to vector<128x64xf32>
    %80 = arith.addf %75, %79 : vector<128x64xf32>
    %81 = vector.extract_strided_slice %80 {offsets = [0, 0], sizes = [128, 32], strides = [1, 1]} : vector<128x64xf32> to vector<128x32xf32>
    %82 = math.tanh %81 : vector<128x32xf32>
    %83 = vector.extract_strided_slice %80 {offsets = [0, 32], sizes = [128, 32], strides = [1, 1]} : vector<128x64xf32> to vector<128x32xf32>
    %84 = arith.negf %83 : vector<128x32xf32>
    %85 = math.exp %84 : vector<128x32xf32>
    %cst_58 = arith.constant 1.000000e+00 : f32
    %86 = vector.broadcast %cst_58 : f32 to vector<128x32xf32>
    %87 = arith.addf %86, %85 : vector<128x32xf32>
    %88 = arith.divf %86, %87 : vector<128x32xf32>
    %89 = arith.mulf %82, %88 : vector<128x32xf32>
    %90 = arith.truncf %89 : vector<128x32xf32> to vector<128x32xbf16>
    %c1_59 = arith.constant 1 : index
    %c0_60 = arith.constant 0 : index
    %c0_61 = arith.constant 0 : index
    %91 = vector.load %arg7[%c1_59, %c0_60, %c0_61] : memref<3x32x64xbf16, #tpu.memory_space<vmem>>, vector<1x32x64xbf16>
    %92 = vector.shape_cast %91 : vector<1x32x64xbf16> to vector<32x64xbf16>
    %cst_62 = arith.constant dense<0.000000e+00> : vector<128x64xf32>
    %93 = tpu.matmul %90, %92, %cst_62 {dimension_numbers = #tpu.dot_dimension_numbers<[1], [0], [0], [1], [0, 0, 1, 1], [], []>} : vector<128x32xbf16>, vector<32x64xbf16>, vector<128x64xf32> -> vector<128x64xf32>
    %c1_63 = arith.constant 1 : index
    %c0_64 = arith.constant 0 : index
    %94 = vector.load %arg8[%c1_63, %c0_64] : memref<3x64xf32, #tpu.memory_space<vmem>>, vector<1x64xf32>
    %95 = vector.shape_cast %94 : vector<1x64xf32> to vector<64xf32>
    %96 = vector.shape_cast %95 : vector<64xf32> to vector<1x64xf32>
    %97 = vector.broadcast %96 : vector<1x64xf32> to vector<128x64xf32>
    %98 = arith.addf %93, %97 : vector<128x64xf32>
    %99 = vector.extract_strided_slice %98 {offsets = [0, 0], sizes = [128, 32], strides = [1, 1]} : vector<128x64xf32> to vector<128x32xf32>
    %100 = arith.addf %62, %99 : vector<128x32xf32>
    %101 = arith.mulf %100, %8 : vector<128x32xf32>
    %102 = vector.extract_strided_slice %98 {offsets = [0, 32], sizes = [128, 32], strides = [1, 1]} : vector<128x64xf32> to vector<128x32xf32>
    %103 = arith.addf %64, %102 : vector<128x32xf32>
    %104 = vector.shape_cast %101 : vector<128x32xf32> to vector<2x64x32xf32>
    %c0_65 = arith.constant 0 : index
    %c1_66 = arith.constant 1 : index
    %c0_67 = arith.constant 0 : index
    %105 = vector.load %arg15[%c0_65, %c1_66, %c0_67] : memref<2x66x32xf32, #tpu.memory_space<vmem>>, vector<2x64x32xf32>
    tpu.vector_store %arg15[%c0_65, %c1_66, %c0_67], %104 {strides = array<i32>} : memref<2x66x32xf32, #tpu.memory_space<vmem>>, vector<2x64x32xf32>,
    %c0_68 = arith.constant 0 : index
    %c0_69 = arith.constant 0 : index
    %c0_70 = arith.constant 0 : index
    %106 = vector.load %arg15[%c0_68, %c0_69, %c0_70] : memref<2x66x32xf32, #tpu.memory_space<vmem>>, vector<2x64x32xf32>
    %c0_71 = arith.constant 0 : index
    %c1_72 = arith.constant 1 : index
    %c0_73 = arith.constant 0 : index
    %107 = vector.load %arg15[%c0_71, %c1_72, %c0_73] : memref<2x66x32xf32, #tpu.memory_space<vmem>>, vector<2x64x32xf32>
    %c0_74 = arith.constant 0 : index
    %c2_75 = arith.constant 2 : index
    %c0_76 = arith.constant 0 : index
    %108 = vector.load %arg15[%c0_74, %c2_75, %c0_76] : memref<2x66x32xf32, #tpu.memory_space<vmem>>, vector<2x64x32xf32>
    %109 = tpu.concatenate %106, %107, %108 in 2 : vector<2x64x32xf32>, vector<2x64x32xf32>, vector<2x64x32xf32> -> vector<2x64x96xf32>
    %110 = vector.shape_cast %109 : vector<2x64x96xf32> to vector<128x96xf32>
    %111 = arith.truncf %110 : vector<128x96xf32> to vector<128x96xbf16>
    %c2_77 = arith.constant 2 : index
    %c0_78 = arith.constant 0 : index
    %c0_79 = arith.constant 0 : index
    %112 = vector.load %arg5[%c2_77, %c0_78, %c0_79] : memref<4x96x64xbf16, #tpu.memory_space<vmem>>, vector<1x96x64xbf16>
    %113 = vector.shape_cast %112 : vector<1x96x64xbf16> to vector<96x64xbf16>
    %cst_80 = arith.constant dense<0.000000e+00> : vector<128x64xf32>
    %114 = tpu.matmul %111, %113, %cst_80 {dimension_numbers = #tpu.dot_dimension_numbers<[1], [0], [0], [1], [0, 0, 1, 1], [], []>} : vector<128x96xbf16>, vector<96x64xbf16>, vector<128x64xf32> -> vector<128x64xf32>
    %c2_81 = arith.constant 2 : index
    %c0_82 = arith.constant 0 : index
    %115 = vector.load %arg6[%c2_81, %c0_82] : memref<4x64xf32, #tpu.memory_space<vmem>>, vector<1x64xf32>
    %116 = vector.shape_cast %115 : vector<1x64xf32> to vector<64xf32>
    %117 = vector.shape_cast %116 : vector<64xf32> to vector<1x64xf32>
    %118 = vector.broadcast %117 : vector<1x64xf32> to vector<128x64xf32>
    %119 = arith.addf %114, %118 : vector<128x64xf32>
    %120 = vector.extract_strided_slice %119 {offsets = [0, 0], sizes = [128, 32], strides = [1, 1]} : vector<128x64xf32> to vector<128x32xf32>
    %121 = math.tanh %120 : vector<128x32xf32>
    %122 = vector.extract_strided_slice %119 {offsets = [0, 32], sizes = [128, 32], strides = [1, 1]} : vector<128x64xf32> to vector<128x32xf32>
    %123 = arith.negf %122 : vector<128x32xf32>
    %124 = math.exp %123 : vector<128x32xf32>
    %cst_83 = arith.constant 1.000000e+00 : f32
    %125 = vector.broadcast %cst_83 : f32 to vector<128x32xf32>
    %126 = arith.addf %125, %124 : vector<128x32xf32>
    %127 = arith.divf %125, %126 : vector<128x32xf32>
    %128 = arith.mulf %121, %127 : vector<128x32xf32>
    %129 = arith.truncf %128 : vector<128x32xf32> to vector<128x32xbf16>
    %c2_84 = arith.constant 2 : index
    %c0_85 = arith.constant 0 : index
    %c0_86 = arith.constant 0 : index
    %130 = vector.load %arg7[%c2_84, %c0_85, %c0_86] : memref<3x32x64xbf16, #tpu.memory_space<vmem>>, vector<1x32x64xbf16>
    %131 = vector.shape_cast %130 : vector<1x32x64xbf16> to vector<32x64xbf16>
    %cst_87 = arith.constant dense<0.000000e+00> : vector<128x64xf32>
    %132 = tpu.matmul %129, %131, %cst_87 {dimension_numbers = #tpu.dot_dimension_numbers<[1], [0], [0], [1], [0, 0, 1, 1], [], []>} : vector<128x32xbf16>, vector<32x64xbf16>, vector<128x64xf32> -> vector<128x64xf32>
    %c2_88 = arith.constant 2 : index
    %c0_89 = arith.constant 0 : index
    %133 = vector.load %arg8[%c2_88, %c0_89] : memref<3x64xf32, #tpu.memory_space<vmem>>, vector<1x64xf32>
    %134 = vector.shape_cast %133 : vector<1x64xf32> to vector<64xf32>
    %135 = vector.shape_cast %134 : vector<64xf32> to vector<1x64xf32>
    %136 = vector.broadcast %135 : vector<1x64xf32> to vector<128x64xf32>
    %137 = arith.addf %132, %136 : vector<128x64xf32>
    %138 = vector.extract_strided_slice %137 {offsets = [0, 0], sizes = [128, 32], strides = [1, 1]} : vector<128x64xf32> to vector<128x32xf32>
    %139 = arith.addf %101, %138 : vector<128x32xf32>
    %140 = arith.mulf %139, %8 : vector<128x32xf32>
    %141 = vector.extract_strided_slice %137 {offsets = [0, 32], sizes = [128, 32], strides = [1, 1]} : vector<128x64xf32> to vector<128x32xf32>
    %142 = arith.addf %103, %141 : vector<128x32xf32>
    %143 = vector.shape_cast %140 : vector<128x32xf32> to vector<2x64x32xf32>
    %c0_90 = arith.constant 0 : index
    %c1_91 = arith.constant 1 : index
    %c0_92 = arith.constant 0 : index
    %144 = vector.load %arg15[%c0_90, %c1_91, %c0_92] : memref<2x66x32xf32, #tpu.memory_space<vmem>>, vector<2x64x32xf32>
    tpu.vector_store %arg15[%c0_90, %c1_91, %c0_92], %143 {strides = array<i32>} : memref<2x66x32xf32, #tpu.memory_space<vmem>>, vector<2x64x32xf32>,
    %c0_93 = arith.constant 0 : index
    %c0_94 = arith.constant 0 : index
    %c0_95 = arith.constant 0 : index
    %145 = vector.load %arg15[%c0_93, %c0_94, %c0_95] : memref<2x66x32xf32, #tpu.memory_space<vmem>>, vector<2x64x32xf32>
    %c0_96 = arith.constant 0 : index
    %c1_97 = arith.constant 1 : index
    %c0_98 = arith.constant 0 : index
    %146 = vector.load %arg15[%c0_96, %c1_97, %c0_98] : memref<2x66x32xf32, #tpu.memory_space<vmem>>, vector<2x64x32xf32>
    %c0_99 = arith.constant 0 : index
    %c2_100 = arith.constant 2 : index
    %c0_101 = arith.constant 0 : index
    %147 = vector.load %arg15[%c0_99, %c2_100, %c0_101] : memref<2x66x32xf32, #tpu.memory_space<vmem>>, vector<2x64x32xf32>
    %148 = tpu.concatenate %145, %146, %147 in 2 : vector<2x64x32xf32>, vector<2x64x32xf32>, vector<2x64x32xf32> -> vector<2x64x96xf32>
    %149 = vector.shape_cast %148 : vector<2x64x96xf32> to vector<128x96xf32>
    %150 = arith.truncf %149 : vector<128x96xf32> to vector<128x96xbf16>
    %c3 = arith.constant 3 : index
    %c0_102 = arith.constant 0 : index
    %c0_103 = arith.constant 0 : index
    %151 = vector.load %arg5[%c3, %c0_102, %c0_103] : memref<4x96x64xbf16, #tpu.memory_space<vmem>>, vector<1x96x64xbf16>
    %152 = vector.shape_cast %151 : vector<1x96x64xbf16> to vector<96x64xbf16>
    %cst_104 = arith.constant dense<0.000000e+00> : vector<128x64xf32>
    %153 = tpu.matmul %150, %152, %cst_104 {dimension_numbers = #tpu.dot_dimension_numbers<[1], [0], [0], [1], [0, 0, 1, 1], [], []>} : vector<128x96xbf16>, vector<96x64xbf16>, vector<128x64xf32> -> vector<128x64xf32>
    %c3_105 = arith.constant 3 : index
    %c0_106 = arith.constant 0 : index
    %154 = vector.load %arg6[%c3_105, %c0_106] : memref<4x64xf32, #tpu.memory_space<vmem>>, vector<1x64xf32>
    %155 = vector.shape_cast %154 : vector<1x64xf32> to vector<64xf32>
    %156 = vector.shape_cast %155 : vector<64xf32> to vector<1x64xf32>
    %157 = vector.broadcast %156 : vector<1x64xf32> to vector<128x64xf32>
    %158 = arith.addf %153, %157 : vector<128x64xf32>
    %159 = vector.extract_strided_slice %158 {offsets = [0, 0], sizes = [128, 32], strides = [1, 1]} : vector<128x64xf32> to vector<128x32xf32>
    %160 = math.tanh %159 : vector<128x32xf32>
    %161 = vector.extract_strided_slice %158 {offsets = [0, 32], sizes = [128, 32], strides = [1, 1]} : vector<128x64xf32> to vector<128x32xf32>
    %162 = arith.negf %161 : vector<128x32xf32>
    %163 = math.exp %162 : vector<128x32xf32>
    %cst_107 = arith.constant 1.000000e+00 : f32
    %164 = vector.broadcast %cst_107 : f32 to vector<128x32xf32>
    %165 = arith.addf %164, %163 : vector<128x32xf32>
    %166 = arith.divf %164, %165 : vector<128x32xf32>
    %167 = arith.mulf %160, %166 : vector<128x32xf32>
    %168 = arith.truncf %167 : vector<128x32xf32> to vector<128x32xbf16>
    %c0_108 = arith.constant 0 : index
    %c0_109 = arith.constant 0 : index
    %169 = vector.load %arg9[%c0_108, %c0_109] : memref<32x32xbf16, #tpu.memory_space<vmem>>, vector<32x32xbf16>
    %cst_110 = arith.constant dense<0.000000e+00> : vector<128x32xf32>
    %170 = tpu.matmul %168, %169, %cst_110 {dimension_numbers = #tpu.dot_dimension_numbers<[1], [0], [0], [1], [0, 0, 1, 1], [], []>} : vector<128x32xbf16>, vector<32x32xbf16>, vector<128x32xf32> -> vector<128x32xf32>
    %c0_111 = arith.constant 0 : index
    %c0_112 = arith.constant 0 : index
    %171 = vector.load %arg10[%c0_111, %c0_112] : memref<1x32xf32, #tpu.memory_space<vmem>>, vector<1x32xf32>
    %172 = vector.shape_cast %171 : vector<1x32xf32> to vector<32xf32>
    %173 = vector.shape_cast %172 : vector<32xf32> to vector<1x32xf32>
    %174 = vector.broadcast %173 : vector<1x32xf32> to vector<128x32xf32>
    %175 = arith.addf %170, %174 : vector<128x32xf32>
    %176 = arith.addf %142, %175 : vector<128x32xf32>
    %177 = arith.mulf %176, %8 : vector<128x32xf32>
    %178 = arith.truncf %177 : vector<128x32xf32> to vector<128x32xbf16>
    %c0_113 = arith.constant 0 : index
    %c0_114 = arith.constant 0 : index
    %179 = vector.load %arg11[%c0_113, %c0_114] : memref<32x8xbf16, #tpu.memory_space<vmem>>, vector<32x8xbf16>
    %cst_115 = arith.constant dense<0.000000e+00> : vector<128x8xf32>
    %180 = tpu.matmul %178, %179, %cst_115 {dimension_numbers = #tpu.dot_dimension_numbers<[1], [0], [0], [1], [0, 0, 1, 1], [], []>} : vector<128x32xbf16>, vector<32x8xbf16>, vector<128x8xf32> -> vector<128x8xf32>
    %c0_116 = arith.constant 0 : index
    %c0_117 = arith.constant 0 : index
    %181 = vector.load %arg12[%c0_116, %c0_117] : memref<1x8xf32, #tpu.memory_space<vmem>>, vector<1x8xf32>
    %182 = vector.shape_cast %181 : vector<1x8xf32> to vector<8xf32>
    %183 = vector.shape_cast %182 : vector<8xf32> to vector<1x8xf32>
    %184 = vector.broadcast %183 : vector<1x8xf32> to vector<128x8xf32>
    %185 = arith.addf %180, %184 : vector<128x8xf32>
    %186 = vector.extract_strided_slice %185 {offsets = [0, 0], sizes = [128, 4], strides = [1, 1]} : vector<128x8xf32> to vector<128x4xf32>
    %187 = vector.extract_strided_slice %185 {offsets = [0, 4], sizes = [128, 4], strides = [1, 1]} : vector<128x8xf32> to vector<128x4xf32>
    %188 = math.exp %187 : vector<128x4xf32>
    %189 = arith.mulf %188, %14 : vector<128x4xf32>
    %190 = arith.addf %186, %189 : vector<128x4xf32>
    %191 = arith.mulf %190, %10 : vector<128x4xf32>
    %192 = arith.mulf %187, %10 : vector<128x4xf32>
    %193 = tpu.concatenate %12, %191 in 1 : vector<128x4xf32>, vector<128x4xf32> -> vector<128x8xf32>
    %194 = vector.shape_cast %193 : vector<128x8xf32> to vector<2x64x8xf32>
    %c0_118 = arith.constant 0 : index
    %c0_119 = arith.constant 0 : index
    %c0_120 = arith.constant 0 : index
    %195 = vector.load %arg13[%c0_118, %c0_119, %c0_120] : memref<2x64x8xf32, #tpu.memory_space<vmem>>, vector<2x64x8xf32>
    tpu.vector_store %arg13[%c0_118, %c0_119, %c0_120], %194 {strides = array<i32>} : memref<2x64x8xf32, #tpu.memory_space<vmem>>, vector<2x64x8xf32>,
    %196 = vector.shape_cast %192 : vector<128x4xf32> to vector<2x64x4xf32>
    %cst_121 = arith.constant dense<0.000000e+00> : vector<2x64xf32>
    %197 = vector.multi_reduction <add>, %196, %cst_121 [2] : vector<2x64x4xf32> to vector<2x64xf32>
    %198 = vector.shape_cast %197 : vector<2x64xf32> to vector<2x64x1xf32>
    %cst_122 = arith.constant dense<0.000000e+00> : vector<2x1xf32>
    %199 = vector.multi_reduction <add>, %198, %cst_122 [1] : vector<2x64x1xf32> to vector<2x1xf32>
    %200 = vector.shape_cast %199 : vector<2x1xf32> to vector<2x1x1xf32>
    %c0_123 = arith.constant 0 : index
    %c0_124 = arith.constant 0 : index
    %c0_125 = arith.constant 0 : index
    %201 = vector.load %arg14[%c0_123, %c0_124, %c0_125] : memref<2x1x1xf32, #tpu.memory_space<vmem>>, vector<2x1x1xf32>
    tpu.vector_store %arg14[%c0_123, %c0_124, %c0_125], %200 {strides = array<i32>} : memref<2x1x1xf32, #tpu.memory_space<vmem>>, vector<2x1x1xf32>,
    return
  }
  func.func @transform_0(%arg0: i32) -> (i32, i32, i32) {
    %c0_i32 = arith.constant 0 : i32
    %c0_i32_0 = arith.constant 0 : i32
    %c0_i32_1 = arith.constant 0 : i32
    return %arg0, %c0_i32, %c0_i32_0 : i32, i32, i32
  }
  func.func @transform_1(%arg0: i32) -> (i32, i32, i32) {
    %c0_i32 = arith.constant 0 : i32
    %c0_i32_0 = arith.constant 0 : i32
    %c0_i32_1 = arith.constant 0 : i32
    return %arg0, %c0_i32, %c0_i32_0 : i32, i32, i32
  }
  func.func @transform_2(%arg0: i32) -> (i32, i32) {
    %c0_i32 = arith.constant 0 : i32
    %c0_i32_0 = arith.constant 0 : i32
    %c0_i32_1 = arith.constant 0 : i32
    return %c0_i32, %c0_i32_0 : i32, i32
  }
  func.func @transform_3(%arg0: i32) -> (i32, i32) {
    %c0_i32 = arith.constant 0 : i32
    %c0_i32_0 = arith.constant 0 : i32
    %c0_i32_1 = arith.constant 0 : i32
    return %c0_i32, %c0_i32_0 : i32, i32
  }
  func.func @transform_4(%arg0: i32) -> (i32, i32, i32) {
    %c0_i32 = arith.constant 0 : i32
    %c0_i32_0 = arith.constant 0 : i32
    %c0_i32_1 = arith.constant 0 : i32
    %c0_i32_2 = arith.constant 0 : i32
    return %c0_i32, %c0_i32_0, %c0_i32_1 : i32, i32, i32
  }
  func.func @transform_5(%arg0: i32) -> (i32, i32) {
    %c0_i32 = arith.constant 0 : i32
    %c0_i32_0 = arith.constant 0 : i32
    %c0_i32_1 = arith.constant 0 : i32
    return %c0_i32, %c0_i32_0 : i32, i32
  }
  func.func @transform_6(%arg0: i32) -> (i32, i32, i32) {
    %c0_i32 = arith.constant 0 : i32
    %c0_i32_0 = arith.constant 0 : i32
    %c0_i32_1 = arith.constant 0 : i32
    %c0_i32_2 = arith.constant 0 : i32
    return %c0_i32, %c0_i32_0, %c0_i32_1 : i32, i32, i32
  }
  func.func @transform_7(%arg0: i32) -> (i32, i32) {
    %c0_i32 = arith.constant 0 : i32
    %c0_i32_0 = arith.constant 0 : i32
    %c0_i32_1 = arith.constant 0 : i32
    return %c0_i32, %c0_i32_0 : i32, i32
  }
  func.func @transform_8(%arg0: i32) -> (i32, i32) {
    %c0_i32 = arith.constant 0 : i32
    %c0_i32_0 = arith.constant 0 : i32
    %c0_i32_1 = arith.constant 0 : i32
    return %c0_i32, %c0_i32_0 : i32, i32
  }
  func.func @transform_9(%arg0: i32) -> (i32, i32) {
    %c0_i32 = arith.constant 0 : i32
    %c0_i32_0 = arith.constant 0 : i32
    %c0_i32_1 = arith.constant 0 : i32
    return %c0_i32, %c0_i32_0 : i32, i32
  }
  func.func @transform_10(%arg0: i32) -> (i32, i32) {
    %c0_i32 = arith.constant 0 : i32
    %c0_i32_0 = arith.constant 0 : i32
    %c0_i32_1 = arith.constant 0 : i32
    return %c0_i32, %c0_i32_0 : i32, i32
  }
  func.func @transform_11(%arg0: i32) -> (i32, i32) {
    %c0_i32 = arith.constant 0 : i32
    %c0_i32_0 = arith.constant 0 : i32
    %c0_i32_1 = arith.constant 0 : i32
    return %c0_i32, %c0_i32_0 : i32, i32
  }
  func.func @transform_12(%arg0: i32) -> (i32, i32, i32) {
    %c0_i32 = arith.constant 0 : i32
    %c0_i32_0 = arith.constant 0 : i32
    %c0_i32_1 = arith.constant 0 : i32
    return %arg0, %c0_i32, %c0_i32_0 : i32, i32, i32
  }
  func.func @transform_13(%arg0: i32) -> (i32, i32, i32) {
    %c0_i32 = arith.constant 0 : i32
    %c0_i32_0 = arith.constant 0 : i32
    %c0_i32_1 = arith.constant 0 : i32
    return %arg0, %c0_i32, %c0_i32_0 : i32, i32, i32
  }
}

</mosaic_0001>

<llo_original>
// kernel: tpu_custom_call.1
$region0: #{tpu_custom_call.1}
  #allocation0 [shape = 'u32[]', space=smem, size = 0x4, offset = 0x4, fixed_abs, tag = 'smem constant byte address 0x4 - core index']
  #allocation1 [shape = 'u32[144,128]{1,0:T(1,128)}', space=vmem, size = 0x12000, scoped, tag = 'internal scratch']
  #allocation2 [shape = 'f32[2,66,32]{2,1,0:T(8,128)}', space=vmem, size = 0x12000, scoped, tag = 'scratch operand']
  %s0 = inlined_call_operand.vmem [shape: f32[4,64,8], index: 0, kind: input, shape index: {}]
  %s1 = inlined_call_operand.vmem [shape: f32[4,64,1], index: 1, kind: input, shape index: {}]
  %s2 = inlined_call_operand.vmem [shape: bf16[4,32], index: 2, kind: input, shape index: {}]
  %s3 = inlined_call_operand.vmem [shape: f32[1,32], index: 3, kind: input, shape index: {}]
  %s4 = inlined_call_operand.vmem [shape: bf16[4,96,64], index: 4, kind: input, shape index: {}]
  %s5 = inlined_call_operand.vmem [shape: f32[4,64], index: 5, kind: input, shape index: {}]
  %s6 = inlined_call_operand.vmem [shape: bf16[3,32,64], index: 6, kind: input, shape index: {}]
  %s7 = inlined_call_operand.vmem [shape: f32[3,64], index: 7, kind: input, shape index: {}]
  %s8 = inlined_call_operand.vmem [shape: bf16[32,32], index: 8, kind: input, shape index: {}]
  %s9 = inlined_call_operand.vmem [shape: f32[1,32], index: 9, kind: input, shape index: {}]
  %s10 = inlined_call_operand.vmem [shape: bf16[32,8], index: 10, kind: input, shape index: {}]
  %s11 = inlined_call_operand.vmem [shape: f32[1,8], index: 11, kind: input, shape index: {}]
  %s12 = inlined_call_operand.vmem [shape: f32[4,64,8], index: 12, kind: output, shape index: {0}]
  %s13 = inlined_call_operand.vmem [shape: f32[4,1,1], index: 13, kind: output, shape index: {1}]
  %14 = xla_tuple %s12, %s13
  %s15 = sld [smem:[#allocation0]]
  $region89: #{tpu_custom_call.1} parent=0
    _
  %s17 = ssub.s32 1, %s15
  %s18 = scalar_select 0, %s17, %s15
  loop: start=0, step=1, limit=4
  $region2: #{tpu_custom_call.1} parent=0 // loop_pre_header
    _
  $region3: #{tpu_custom_call.1} parent=0 // loop_header
    %s20 = sphi 0, %s24
    %p21 = scmp.ge.s32.totalorder %s20, 4
    %s30 = sphi 0, %s32
    %s33 = sphi 0, %s30
    %s34 = sphi 0, %s33
    %s50 = sphi 0, %s34
    %s56 = sphi 0, %s58
    %s59 = sphi 0, %s56
    %s60 = sphi 0, %s59
    %s76 = sphi 0, %s60
    %s80 = sphi 0, %s80
    %s82 = sphi 0, %s80
    %s83 = sphi 0, %s82
    %s97 = sphi 0, %s83
    %s101 = sphi 0, %s101
    %s103 = sphi 0, %s101
    %s104 = sphi 0, %s103
    %s118 = sphi 0, %s104
    %s122 = sphi 0, %s122
    %s124 = sphi 0, %s122
    %s125 = sphi 0, %s124
    %s139 = sphi 0, %s125
    %s143 = sphi 0, %s143
    %s145 = sphi 0, %s143
    %s146 = sphi 0, %s145
    %s160 = sphi 0, %s146
    %s164 = sphi 0, %s164
    %s166 = sphi 0, %s164
    %s167 = sphi 0, %s166
    %s181 = sphi 0, %s167
    %s185 = sphi 0, %s185
    %s187 = sphi 0, %s185
    %s188 = sphi 0, %s187
    %s202 = sphi 0, %s188
    %s206 = sphi 0, %s206
    %s208 = sphi 0, %s206
    %s209 = sphi 0, %s208
    %s223 = sphi 0, %s209
    %s227 = sphi 0, %s227
    %s229 = sphi 0, %s227
    %s230 = sphi 0, %s229
    %s244 = sphi 0, %s230
    %s248 = sphi 0, %s248
    %s250 = sphi 0, %s248
    %s251 = sphi 0, %s250
    %s265 = sphi 0, %s251
    %s269 = sphi 0, %s269
    %s271 = sphi 0, %s269
    %s272 = sphi 0, %s271
    %s286 = sphi 0, %s272
    %s292 = sphi 0, %s294
    %s295 = sphi 0, %s292
    %s296 = sphi 0, %s295
    %s312 = sphi 0, %s296
    %s318 = sphi 0, %s320
    %s321 = sphi 0, %s318
    %s322 = sphi 0, %s321
    %s338 = sphi 0, %s322
  $region4: #{tpu_custom_call.1} parent=0 // loop_header_branch
    %23 = sbr.rel (%p21) target = $region8
  $region5: #{tpu_custom_call.1} parent=0 // loop_body
    %s25 = ssub.s32 %s20, 1
    %s26 = ssub.s32 %s20, 2
    %s27 = sadd.s32 %s20, 1
    %s28 = ssub.s32 %s20, %s27
    %p29 = scmp.eq.s32.totalorder %s28, 0
    %s31 = sadd.s32 %s30, 1
    %s32 = scalar_select %p29, %s30, %s31
    %p35 = pneg %p29
    %p36 = scmp.eq.s32.totalorder %s20, 1
    %p37 = por %p35, %p36
    %p38 = scmp.ne.s32.totalorder %s30, %s33
    %p39 = scmp.eq.s32.totalorder %s20, 0
    %p40 = por %p38, %p39
    %p41 = scmp.ne.s32.totalorder %s30, %s33
    %p42 = scmp.eq.s32.totalorder %s25, 1
    %p43 = por %p41, %p42
    %p44 = scmp.ne.s32.totalorder %s33, %s34
    %p45 = scmp.eq.s32.totalorder %s25, 0
    %p46 = por %p44, %p45
    %p47 = scmp.ne.s32.totalorder %s33, %s34
    %p48 = scmp.eq.s32.totalorder %s26, 1
    %p49 = por %p47, %p48
    %p51 = scmp.ne.s32.totalorder %s34, %s50
    %p52 = scmp.eq.s32.totalorder %s26, 0
    %p53 = por %p51, %p52
    %s54 = ssub.s32 %s20, %s27
    %p55 = scmp.eq.s32.totalorder %s54, 0
    %s57 = sadd.s32 %s56, 1
    %s58 = scalar_select %p55, %s56, %s57
    %p61 = pneg %p55
    %p62 = scmp.eq.s32.totalorder %s20, 1
    %p63 = por %p61, %p62
    %p64 = scmp.ne.s32.totalorder %s56, %s59
    %p65 = scmp.eq.s32.totalorder %s20, 0
    %p66 = por %p64, %p65
    %p67 = scmp.ne.s32.totalorder %s56, %s59
    %p68 = scmp.eq.s32.totalorder %s25, 1
    %p69 = por %p67, %p68
    %p70 = scmp.ne.s32.totalorder %s59, %s60
    %p71 = scmp.eq.s32.totalorder %s25, 0
    %p72 = por %p70, %p71
    %p73 = scmp.ne.s32.totalorder %s59, %s60
    %p74 = scmp.eq.s32.totalorder %s26, 1
    %p75 = por %p73, %p74
    %p77 = scmp.ne.s32.totalorder %s60, %s76
    %p78 = scmp.eq.s32.totalorder %s26, 0
    %p79 = por %p77, %p78
    %s81 = sadd.s32 %s80, 1
    %p84 = scmp.eq.s32.totalorder %s20, 1
    %p85 = scmp.ne.s32.totalorder %s80, %s82
    %p86 = scmp.eq.s32.totalorder %s20, 0
    %p87 = por %p85, %p86
    %p88 = scmp.ne.s32.totalorder %s80, %s82
    %p89 = scmp.eq.s32.totalorder %s25, 1
    %p90 = por %p88, %p89
    %p91 = scmp.ne.s32.totalorder %s82, %s83
    %p92 = scmp.eq.s32.totalorder %s25, 0
    %p93 = por %p91, %p92
    %p94 = scmp.ne.s32.totalorder %s82, %s83
    %p95 = scmp.eq.s32.totalorder %s26, 1
    %p96 = por %p94, %p95
    %p98 = scmp.ne.s32.totalorder %s83, %s97
    %p99 = scmp.eq.s32.totalorder %s26, 0
    %p100 = por %p98, %p99
    %s102 = sadd.s32 %s101, 1
    %p105 = scmp.eq.s32.totalorder %s20, 1
    %p106 = scmp.ne.s32.totalorder %s101, %s103
    %p107 = scmp.eq.s32.totalorder %s20, 0
    %p108 = por %p106, %p107
    %p109 = scmp.ne.s32.totalorder %s101, %s103
    %p110 = scmp.eq.s32.totalorder %s25, 1
    %p111 = por %p109, %p110
    %p112 = scmp.ne.s32.totalorder %s103, %s104
    %p113 = scmp.eq.s32.totalorder %s25, 0
    %p114 = por %p112, %p113
    %p115 = scmp.ne.s32.totalorder %s103, %s104
    %p116 = scmp.eq.s32.totalorder %s26, 1
    %p117 = por %p115, %p116
    %p119 = scmp.ne.s32.totalorder %s104, %s118
    %p120 = scmp.eq.s32.totalorder %s26, 0
    %p121 = por %p119, %p120
    %s123 = sadd.s32 %s122, 1
    %p126 = scmp.eq.s32.totalorder %s20, 1
    %p127 = scmp.ne.s32.totalorder %s122, %s124
    %p128 = scmp.eq.s32.totalorder %s20, 0
    %p129 = por %p127, %p128
    %p130 = scmp.ne.s32.totalorder %s122, %s124
    %p131 = scmp.eq.s32.totalorder %s25, 1
    %p132 = por %p130, %p131
    %p133 = scmp.ne.s32.totalorder %s124, %s125
    %p134 = scmp.eq.s32.totalorder %s25, 0
    %p135 = por %p133, %p134
    %p136 = scmp.ne.s32.totalorder %s124, %s125
    %p137 = scmp.eq.s32.totalorder %s26, 1
    %p138 = por %p136, %p137
    %p140 = scmp.ne.s32.totalorder %s125, %s139
    %p141 = scmp.eq.s32.totalorder %s26, 0
    %p142 = por %p140, %p141
    %s144 = sadd.s32 %s143, 1
    %p147 = scmp.eq.s32.totalorder %s20, 1
    %p148 = scmp.ne.s32.totalorder %s143, %s145
    %p149 = scmp.eq.s32.totalorder %s20, 0
    %p150 = por %p148, %p149
    %p151 = scmp.ne.s32.totalorder %s143, %s145
    %p152 = scmp.eq.s32.totalorder %s25, 1
    %p153 = por %p151, %p152
    %p154 = scmp.ne.s32.totalorder %s145, %s146
    %p155 = scmp.eq.s32.totalorder %s25, 0
    %p156 = por %p154, %p155
    %p157 = scmp.ne.s32.totalorder %s145, %s146
    %p158 = scmp.eq.s32.totalorder %s26, 1
    %p159 = por %p157, %p158
    %p161 = scmp.ne.s32.totalorder %s146, %s160
    %p162 = scmp.eq.s32.totalorder %s26, 0
    %p163 = por %p161, %p162
    %s165 = sadd.s32 %s164, 1
    %p168 = scmp.eq.s32.totalorder %s20, 1
    %p169 = scmp.ne.s32.totalorder %s164, %s166
    %p170 = scmp.eq.s32.totalorder %s20, 0
    %p171 = por %p169, %p170
    %p172 = scmp.ne.s32.totalorder %s164, %s166
    %p173 = scmp.eq.s32.totalorder %s25, 1
    %p174 = por %p172, %p173
    %p175 = scmp.ne.s32.totalorder %s166, %s167
    %p176 = scmp.eq.s32.totalorder %s25, 0
    %p177 = por %p175, %p176
    %p178 = scmp.ne.s32.totalorder %s166, %s167
    %p179 = scmp.eq.s32.totalorder %s26, 1
    %p180 = por %p178, %p179
    %p182 = scmp.ne.s32.totalorder %s167, %s181
    %p183 = scmp.eq.s32.totalorder %s26, 0
    %p184 = por %p182, %p183
    %s186 = sadd.s32 %s185, 1
    %p189 = scmp.eq.s32.totalorder %s20, 1
    %p190 = scmp.ne.s32.totalorder %s185, %s187
    %p191 = scmp.eq.s32.totalorder %s20, 0
    %p192 = por %p190, %p191
    %p193 = scmp.ne.s32.totalorder %s185, %s187
    %p194 = scmp.eq.s32.totalorder %s25, 1
    %p195 = por %p193, %p194
    %p196 = scmp.ne.s32.totalorder %s187, %s188
    %p197 = scmp.eq.s32.totalorder %s25, 0
    %p198 = por %p196, %p197
    %p199 = scmp.ne.s32.totalorder %s187, %s188
    %p200 = scmp.eq.s32.totalorder %s26, 1
    %p201 = por %p199, %p200
    %p203 = scmp.ne.s32.totalorder %s188, %s202
    %p204 = scmp.eq.s32.totalorder %s26, 0
    %p205 = por %p203, %p204
    %s207 = sadd.s32 %s206, 1
    %p210 = scmp.eq.s32.totalorder %s20, 1
    %p211 = scmp.ne.s32.totalorder %s206, %s208
    %p212 = scmp.eq.s32.totalorder %s20, 0
    %p213 = por %p211, %p212
    %p214 = scmp.ne.s32.totalorder %s206, %s208
    %p215 = scmp.eq.s32.totalorder %s25, 1
    %p216 = por %p214, %p215
    %p217 = scmp.ne.s32.totalorder %s208, %s209
    %p218 = scmp.eq.s32.totalorder %s25, 0
    %p219 = por %p217, %p218
    %p220 = scmp.ne.s32.totalorder %s208, %s209
    %p221 = scmp.eq.s32.totalorder %s26, 1
    %p222 = por %p220, %p221
    %p224 = scmp.ne.s32.totalorder %s209, %s223
    %p225 = scmp.eq.s32.totalorder %s26, 0
    %p226 = por %p224, %p225
    %s228 = sadd.s32 %s227, 1
    %p231 = scmp.eq.s32.totalorder %s20, 1
    %p232 = scmp.ne.s32.totalorder %s227, %s229
    %p233 = scmp.eq.s32.totalorder %s20, 0
    %p234 = por %p232, %p233
    %p235 = scmp.ne.s32.totalorder %s227, %s229
    %p236 = scmp.eq.s32.totalorder %s25, 1
    %p237 = por %p235, %p236
    %p238 = scmp.ne.s32.totalorder %s229, %s230
    %p239 = scmp.eq.s32.totalorder %s25, 0
    %p240 = por %p238, %p239
    %p241 = scmp.ne.s32.totalorder %s229, %s230
    %p242 = scmp.eq.s32.totalorder %s26, 1
    %p243 = por %p241, %p242
    %p245 = scmp.ne.s32.totalorder %s230, %s244
    %p246 = scmp.eq.s32.totalorder %s26, 0
    %p247 = por %p245, %p246
    %s249 = sadd.s32 %s248, 1
    %p252 = scmp.eq.s32.totalorder %s20, 1
    %p253 = scmp.ne.s32.totalorder %s248, %s250
    %p254 = scmp.eq.s32.totalorder %s20, 0
    %p255 = por %p253, %p254
    %p256 = scmp.ne.s32.totalorder %s248, %s250
    %p257 = scmp.eq.s32.totalorder %s25, 1
    %p258 = por %p256, %p257
    %p259 = scmp.ne.s32.totalorder %s250, %s251
    %p260 = scmp.eq.s32.totalorder %s25, 0
    %p261 = por %p259, %p260
    %p262 = scmp.ne.s32.totalorder %s250, %s251
    %p263 = scmp.eq.s32.totalorder %s26, 1
    %p264 = por %p262, %p263
    %p266 = scmp.ne.s32.totalorder %s251, %s265
    %p267 = scmp.eq.s32.totalorder %s26, 0
    %p268 = por %p266, %p267
    %s270 = sadd.s32 %s269, 1
    %p273 = scmp.eq.s32.totalorder %s20, 1
    %p274 = scmp.ne.s32.totalorder %s269, %s271
    %p275 = scmp.eq.s32.totalorder %s20, 0
    %p276 = por %p274, %p275
    %p277 = scmp.ne.s32.totalorder %s269, %s271
    %p278 = scmp.eq.s32.totalorder %s25, 1
    %p279 = por %p277, %p278
    %p280 = scmp.ne.s32.totalorder %s271, %s272
    %p281 = scmp.eq.s32.totalorder %s25, 0
    %p282 = por %p280, %p281
    %p283 = scmp.ne.s32.totalorder %s271, %s272
    %p284 = scmp.eq.s32.totalorder %s26, 1
    %p285 = por %p283, %p284
    %p287 = scmp.ne.s32.totalorder %s272, %s286
    %p288 = scmp.eq.s32.totalorder %s26, 0
    %p289 = por %p287, %p288
    %s290 = ssub.s32 %s20, %s27
    %p291 = scmp.eq.s32.totalorder %s290, 0
    %s293 = sadd.s32 %s292, 1
    %s294 = scalar_select %p291, %s292, %s293
    %p297 = pneg %p291
    %p298 = scmp.eq.s32.totalorder %s20, 1
    %p299 = por %p297, %p298
    %p300 = scmp.ne.s32.totalorder %s292, %s295
    %p301 = scmp.eq.s32.totalorder %s20, 0
    %p302 = por %p300, %p301
    %p303 = scmp.ne.s32.totalorder %s292, %s295
    %p304 = scmp.eq.s32.totalorder %s25, 1
    %p305 = por %p303, %p304
    %p306 = scmp.ne.s32.totalorder %s295, %s296
    %p307 = scmp.eq.s32.totalorder %s25, 0
    %p308 = por %p306, %p307
    %p309 = scmp.ne.s32.totalorder %s295, %s296
    %p310 = scmp.eq.s32.totalorder %s26, 1
    %p311 = por %p309, %p310
    %p313 = scmp.ne.s32.totalorder %s296, %s312
    %p314 = scmp.eq.s32.totalorder %s26, 0
    %p315 = por %p313, %p314
    %s316 = ssub.s32 %s20, %s27
    %p317 = scmp.eq.s32.totalorder %s316, 0
    %s319 = sadd.s32 %s318, 1
    %s320 = scalar_select %p317, %s318, %s319
    %p323 = pneg %p317
    %p324 = scmp.eq.s32.totalorder %s20, 1
    %p325 = por %p323, %p324
    %p326 = scmp.ne.s32.totalorder %s318, %s321
    %p327 = scmp.eq.s32.totalorder %s20, 0
    %p328 = por %p326, %p327
    %p329 = scmp.ne.s32.totalorder %s318, %s321
    %p330 = scmp.eq.s32.totalorder %s25, 1
    %p331 = por %p329, %p330
    %p332 = scmp.ne.s32.totalorder %s321, %s322
    %p333 = scmp.eq.s32.totalorder %s25, 0
    %p334 = por %p332, %p333
    %p335 = scmp.ne.s32.totalorder %s321, %s322
    %p336 = scmp.eq.s32.totalorder %s26, 1
    %p337 = por %p335, %p336
    %p339 = scmp.ne.s32.totalorder %s322, %s338
    %p340 = scmp.eq.s32.totalorder %s26, 0
    %p341 = por %p339, %p340
    %p342 = scmp.le.s32.totalorder 1, %s20
    %p343 = scmp.lt.s32.totalorder %s20, 3
    %p344 = pnand %p342, %p343
    %p345 = pneg %p344
    // Predicated region
    $region9: #{tpu_custom_call.1} parent=5 // pred_check
      _
    $region10: #{tpu_custom_call.1} parent=5 // pred_check_branch
      %347 = sbr.rel (%p344) target = $region12
    $region11: #{tpu_custom_call.1} parent=5 // pred_region
      %s348 = ssub.s32 %s20, 1
      // Predicated region
      $region13: #{tpu_custom_call.1} parent=11 // pred_check
        %p349 = pneg %p93
      $region14: #{tpu_custom_call.1} parent=11 // pred_check_branch
        %351 = sbr.rel (%p349) target = $region16
      $region15: #{tpu_custom_call.1} parent=11 // pred_region
        _
      $region16: #{tpu_custom_call.1} parent=11 // pred_fallthru
        _
      // Predicated region
      $region17: #{tpu_custom_call.1} parent=11 // pred_check
        %p352 = pneg %p114
      $region18: #{tpu_custom_call.1} parent=11 // pred_check_branch
        %354 = sbr.rel (%p352) target = $region20
      $region19: #{tpu_custom_call.1} parent=11 // pred_region
        _
      $region20: #{tpu_custom_call.1} parent=11 // pred_fallthru
        _
      // Predicated region
      $region21: #{tpu_custom_call.1} parent=11 // pred_check
        %p355 = pneg %p135
      $region22: #{tpu_custom_call.1} parent=11 // pred_check_branch
        %357 = sbr.rel (%p355) target = $region24
      $region23: #{tpu_custom_call.1} parent=11 // pred_region
        _
      $region24: #{tpu_custom_call.1} parent=11 // pred_fallthru
        _
      // Predicated region
      $region25: #{tpu_custom_call.1} parent=11 // pred_check
        %p358 = pneg %p156
      $region26: #{tpu_custom_call.1} parent=11 // pred_check_branch
        %360 = sbr.rel (%p358) target = $region28
      $region27: #{tpu_custom_call.1} parent=11 // pred_region
        _
      $region28: #{tpu_custom_call.1} parent=11 // pred_fallthru
        _
      // Predicated region
      $region29: #{tpu_custom_call.1} parent=11 // pred_check
        %p361 = pneg %p177
      $region30: #{tpu_custom_call.1} parent=11 // pred_check_branch
        %363 = sbr.rel (%p361) target = $region32
      $region31: #{tpu_custom_call.1} parent=11 // pred_region
        _
      $region32: #{tpu_custom_call.1} parent=11 // pred_fallthru
        _
      // Predicated region
      $region33: #{tpu_custom_call.1} parent=11 // pred_check
        %p364 = pneg %p198
      $region34: #{tpu_custom_call.1} parent=11 // pred_check_branch
        %366 = sbr.rel (%p364) target = $region36
      $region35: #{tpu_custom_call.1} parent=11 // pred_region
        _
      $region36: #{tpu_custom_call.1} parent=11 // pred_fallthru
        _
      // Predicated region
      $region37: #{tpu_custom_call.1} parent=11 // pred_check
        %p367 = pneg %p219
      $region38: #{tpu_custom_call.1} parent=11 // pred_check_branch
        %369 = sbr.rel (%p367) target = $region40
      $region39: #{tpu_custom_call.1} parent=11 // pred_region
        _
      $region40: #{tpu_custom_call.1} parent=11 // pred_fallthru
        _
      // Predicated region
      $region41: #{tpu_custom_call.1} parent=11 // pred_check
        %p370 = pneg %p240
      $region42: #{tpu_custom_call.1} parent=11 // pred_check_branch
        %372 = sbr.rel (%p370) target = $region44
      $region43: #{tpu_custom_call.1} parent=11 // pred_region
        _
      $region44: #{tpu_custom_call.1} parent=11 // pred_fallthru
        _
      // Predicated region
      $region45: #{tpu_custom_call.1} parent=11 // pred_check
        %p373 = pneg %p261
      $region46: #{tpu_custom_call.1} parent=11 // pred_check_branch
        %375 = sbr.rel (%p373) target = $region48
      $region47: #{tpu_custom_call.1} parent=11 // pred_region
        _
      $region48: #{tpu_custom_call.1} parent=11 // pred_fallthru
        _
      // Predicated region
      $region49: #{tpu_custom_call.1} parent=11 // pred_check
        %p376 = pneg %p282
      $region50: #{tpu_custom_call.1} parent=11 // pred_check_branch
        %378 = sbr.rel (%p376) target = $region52
      $region51: #{tpu_custom_call.1} parent=11 // pred_region
        _
      $region52: #{tpu_custom_call.1} parent=11 // pred_fallthru
        _
    $region12: #{tpu_custom_call.1} parent=5 // pred_fallthru
      _
    %p379 = scmp.lt.s32.totalorder %s20, 2
    // Predicated region
    $region53: #{tpu_custom_call.1} parent=5 // pred_check
      %p380 = pneg %p379
    $region54: #{tpu_custom_call.1} parent=5 // pred_check_branch
      %382 = sbr.rel (%p380) target = $region56
    $region55: #{tpu_custom_call.1} parent=5 // pred_region
      // Predicated region
      $region57: #{tpu_custom_call.1} parent=55 // pred_check
        %p383 = pneg %p40
      $region58: #{tpu_custom_call.1} parent=55 // pred_check_branch
        %385 = sbr.rel (%p383) target = $region60
      $region59: #{tpu_custom_call.1} parent=55 // pred_region
        %s386 = smul.u32 2, %s20
        %p387 = scmp.lt.s32.totalorder %s386, 3
        %s388 = scalar_select %p387, %s386, 3
        %s389 = smul.addr %s388, 8
        %s390 = smul.addr %s389, 8
        %s391 = scalar_lea.vmem %s0, %s390
        %s392 = smul.u32 2, %s20
      $region60: #{tpu_custom_call.1} parent=55 // pred_fallthru
        _
      // Predicated region
      $region61: #{tpu_custom_call.1} parent=55 // pred_check
        %p393 = pneg %p66
      $region62: #{tpu_custom_call.1} parent=55 // pred_check_branch
        %395 = sbr.rel (%p393) target = $region64
      $region63: #{tpu_custom_call.1} parent=55 // pred_region
        %s396 = smul.u32 2, %s20
        %p397 = scmp.lt.s32.totalorder %s396, 3
        %s398 = scalar_select %p397, %s396, 3
        %s399 = smul.addr %s398, 8
        %s400 = smul.addr %s399, 8
        %s401 = scalar_lea.vmem %s1, %s400
        %s402 = smul.u32 2, %s20
      $region64: #{tpu_custom_call.1} parent=55 // pred_fallthru
        _
    $region56: #{tpu_custom_call.1} parent=5 // pred_fallthru
      _
    %p403 = scmp.le.s32.totalorder 1, %s20
    %p404 = scmp.lt.s32.totalorder %s20, 3
    %p405 = pnand %p403, %p404
    %p406 = pneg %p405
    // Predicated region
    $region65: #{tpu_custom_call.1} parent=5 // pred_check
      _
    $region66: #{tpu_custom_call.1} parent=5 // pred_check_branch
      %408 = sbr.rel (%p405) target = $region68
    $region67: #{tpu_custom_call.1} parent=5 // pred_region
      %s409 = ssub.s32 %s20, 1
      %s410 = smul.u32 2, %s25
      %p411 = scmp.lt.s32.totalorder %s410, 3
      %s412 = scalar_select %p411, %s410, 3
      %s413 = smul.addr %s412, 8
      %s414 = smul.addr %s413, 8
      %s415 = scalar_lea.vmem %s0, %s414
      %p416 = pneg %p46
      %p417 = pneg %p43
      %s418 = smul.u32 2, %s25
      %p419 = scmp.lt.s32.totalorder %s418, 3
      %s420 = scalar_select %p419, %s418, 3
      %s421 = smul.addr %s420, 8
      %s422 = smul.addr %s421, 8
      %s423 = scalar_lea.vmem %s1, %s422
      %p424 = pneg %p72
      %p425 = pneg %p69
      %p426 = pneg %p93
      %p427 = pneg %p90
      %p428 = pneg %p114
      %p429 = pneg %p111
      %p430 = pneg %p135
      %p431 = pneg %p132
      %p432 = pneg %p156
      %p433 = pneg %p153
      %p434 = pneg %p177
      %p435 = pneg %p174
      %p436 = pneg %p198
      %p437 = pneg %p195
      %p438 = pneg %p219
      %p439 = pneg %p216
      %p440 = pneg %p240
      %p441 = pneg %p237
      %p442 = pneg %p261
      %p443 = pneg %p258
      %p444 = pneg %p282
      %p445 = pneg %p279
      %p446 = pneg %p308
      %p447 = pneg %p305
      %s448 = smul.u32 2, %s25
      %p449 = scmp.lt.s32.totalorder %s448, 3
      %s450 = scalar_select %p449, %s448, 3
      %s451 = smul.addr %s450, 8
      %s452 = smul.addr %s451, 8
      %s453 = scalar_lea.vmem %s12, %s452
      %p454 = pneg %p334
      %p455 = pneg %p331
      %s456 = smul.u32 2, %s25
      %p457 = scmp.lt.s32.totalorder %s456, 3
      %s458 = scalar_select %p457, %s456, 3
      %s459 = scalar_lea.vmem %s13, %s458
      %s460 = smul.u32 2, %s25
      %p461 = scmp.lt.s32.totalorder %s460, 3
      %s462 = scalar_select %p461, %s460, 3
      %s463 = smul.addr %s462, 8
      %s464 = smul.addr %s463, 8
      %s465 = scalar_lea.vmem %s0, %s464
      %s466 = smul.u32 2, %s25
      %s467 = smul.u32 2, %s25
      %p468 = scmp.lt.s32.totalorder %s467, 3
      %s469 = scalar_select %p468, %s467, 3
      %s470 = smul.addr %s469, 8
      %s471 = smul.addr %s470, 8
      %s472 = scalar_lea.vmem %s1, %s471
      %s473 = smul.u32 2, %s25
      %s474 = smul.u32 2, %s25
      %p475 = scmp.lt.s32.totalorder %s474, 3
      %s476 = scalar_select %p475, %s474, 3
      %s477 = smul.addr %s476, 8
      %s478 = smul.addr %s477, 8
      %s479 = scalar_lea.vmem %s12, %s478
      %s480 = smul.u32 2, %s25
      %s481 = smul.u32 2, %s25
      %p482 = scmp.lt.s32.totalorder %s481, 3
      %s483 = scalar_select %p482, %s481, 3
      %s484 = scalar_lea.vmem %s13, %s483
      %s485 = smul.u32 2, %s25
      %vm487 = vcmask 253952
      %488 = vst.msk [vmem:[#allocation2] sm:$0x1] %vm487, 0.0
      %489 = vst.msk [vmem:[#allocation2 + $0x48] sm:$0x1] %vm487, 0.0
      %490 = vst.msk [vmem:[#allocation2 + $0x41] sm:$0x1] %vm487, 0.0
      %491 = vst.msk [vmem:[#allocation2 + $0x89] sm:$0x1] %vm487, 0.0
      %v492 = vld [vmem:[%s465] sm:$0xff]
      %v493 = vld [vmem:[%s465 + $0x8] sm:$0xff]
      %v494 = vld [vmem:[%s465 + $0x10] sm:$0xff]
      %v495 = vld [vmem:[%s465 + $0x18] sm:$0xff]
      %v496 = vld [vmem:[%s465 + $0x20] sm:$0xff]
      %v497 = vld [vmem:[%s465 + $0x28] sm:$0xff]
      %v498 = vld [vmem:[%s465 + $0x30] sm:$0xff]
      %v499 = vld [vmem:[%s465 + $0x38] sm:$0xff]
      %v500 = vld [vmem:[%s465 + $0x40] sm:$0xff]
      %v501 = vld [vmem:[%s465 + $0x48] sm:$0xff]
      %v502 = vld [vmem:[%s465 + $0x50] sm:$0xff]
      %v503 = vld [vmem:[%s465 + $0x58] sm:$0xff]
      %v504 = vld [vmem:[%s465 + $0x60] sm:$0xff]
      %v505 = vld [vmem:[%s465 + $0x68] sm:$0xff]
      %v506 = vld [vmem:[%s465 + $0x70] sm:$0xff]
      %v507 = vld [vmem:[%s465 + $0x78] sm:$0xff]
      %v508 = vld [vmem:[%s472] sm:$0xff]
      %v509 = vld [vmem:[%s472 + $0x8] sm:$0xff]
      %v510 = vld [vmem:[%s472 + $0x10] sm:$0xff]
      %v511 = vld [vmem:[%s472 + $0x18] sm:$0xff]
      %v512 = vld [vmem:[%s472 + $0x20] sm:$0xff]
      %v513 = vld [vmem:[%s472 + $0x28] sm:$0xff]
      %v514 = vld [vmem:[%s472 + $0x30] sm:$0xff]
      %v515 = vld [vmem:[%s472 + $0x38] sm:$0xff]
      %v516 = vld [vmem:[%s472 + $0x40] sm:$0xff]
      %v517 = vld [vmem:[%s472 + $0x48] sm:$0xff]
      %v518 = vld [vmem:[%s472 + $0x50] sm:$0xff]
      %v519 = vld [vmem:[%s472 + $0x58] sm:$0xff]
      %v520 = vld [vmem:[%s472 + $0x60] sm:$0xff]
      %v521 = vld [vmem:[%s472 + $0x68] sm:$0xff]
      %v522 = vld [vmem:[%s472 + $0x70] sm:$0xff]
      %v523 = vld [vmem:[%s472 + $0x78] sm:$0xff]
      %525 = vset.pattern.permute.xlu0 0
      %526 = vperm.xlu0 %525, %v508
      %v527 = vpop.permute.xlu0 %526
      %530 = vset.pattern.permute.xlu0 0
      %531 = vperm.xlu0 %530, %v509
      %v532 = vpop.permute.xlu0 %531
      %535 = vset.pattern.permute.xlu0 0
      %536 = vperm.xlu0 %535, %v510
      %v537 = vpop.permute.xlu0 %536
      %540 = vset.pattern.permute.xlu0 0
      %541 = vperm.xlu0 %540, %v511
      %v542 = vpop.permute.xlu0 %541
      %545 = vset.pattern.permute.xlu0 0
      %546 = vperm.xlu0 %545, %v512
      %v547 = vpop.permute.xlu0 %546
      %550 = vset.pattern.permute.xlu0 0
      %551 = vperm.xlu0 %550, %v513
      %v552 = vpop.permute.xlu0 %551
      %555 = vset.pattern.permute.xlu0 0
      %556 = vperm.xlu0 %555, %v514
      %v557 = vpop.permute.xlu0 %556
      %560 = vset.pattern.permute.xlu0 0
      %561 = vperm.xlu0 %560, %v515
      %v562 = vpop.permute.xlu0 %561
      %565 = vset.pattern.permute.xlu0 0
      %566 = vperm.xlu0 %565, %v516
      %v567 = vpop.permute.xlu0 %566
      %570 = vset.pattern.permute.xlu0 0
      %571 = vperm.xlu0 %570, %v517
      %v572 = vpop.permute.xlu0 %571
      %575 = vset.pattern.permute.xlu0 0
      %576 = vperm.xlu0 %575, %v518
      %v577 = vpop.permute.xlu0 %576
      %580 = vset.pattern.permute.xlu0 0
      %581 = vperm.xlu0 %580, %v519
      %v582 = vpop.permute.xlu0 %581
      %585 = vset.pattern.permute.xlu0 0
      %586 = vperm.xlu0 %585, %v520
      %v587 = vpop.permute.xlu0 %586
      %590 = vset.pattern.permute.xlu0 0
      %591 = vperm.xlu0 %590, %v521
      %v592 = vpop.permute.xlu0 %591
      %595 = vset.pattern.permute.xlu0 0
      %596 = vperm.xlu0 %595, %v522
      %v597 = vpop.permute.xlu0 %596
      %600 = vset.pattern.permute.xlu0 0
      %601 = vperm.xlu0 %600, %v523
      %v602 = vpop.permute.xlu0 %601
      %v604 = vpack.c.bf16 %v493, %v492
      %v605 = vpack.c.bf16 %v495, %v494
      %v606 = vpack.c.bf16 %v497, %v496
      %v607 = vpack.c.bf16 %v499, %v498
      %v608 = vpack.c.bf16 %v501, %v500
      %v609 = vpack.c.bf16 %v503, %v502
      %v610 = vpack.c.bf16 %v505, %v504
      %v611 = vpack.c.bf16 %v507, %v506
      %v612 = vld [vmem:[%s2] sm:$0x3]
      %v613 = vld [vmem:[%s3] sm:$0x1]
      %v615 = vlaneseq
      %v616 = vshrl.u32 %v615, 7
      %v617 = vsub.s32 0, %v616
      %v618 = vrot.slane %v613, %v617
      %vm620 = vcmask 31744
      %v622 = vsel %vm620, %v604, 0
      %v625 = vsel %vm620, %v605, 0
      %v628 = vsel %vm620, %v606, 0
      %v631 = vsel %vm620, %v607, 0
      %v634 = vsel %vm620, %v608, 0
      %v637 = vsel %vm620, %v609, 0
      %v640 = vsel %vm620, %v610, 0
      %v643 = vsel %vm620, %v611, 0
      %vm645 = vcmask 1041408
      %v647 = vsel %vm645, %v612, 0
      %649 = vmatprep.subr.bf16.mxu0 0
      %650 = vmatpush1.bf16.msra.mxu0 %v647
      %651 = vmatprep.subr.bf16.mxu0 0
      %652 = vmatpush1.bf16.msra.mxu0 0
      %653 = vmatprep.subr.bf16.mxu0 0
      %654 = vmatpush1.bf16.msra.mxu0 0
      %655 = vmatprep.subr.bf16.mxu0 0
      %656 = vmatpush1.bf16.msra.mxu0 0
      %657 = vmatprep.subr.bf16.mxu0 0
      %658 = vmatpush1.bf16.msra.mxu0 0
      %659 = vmatprep.subr.bf16.mxu0 0
      %660 = vmatpush1.bf16.msra.mxu0 0
      %661 = vmatprep.subr.bf16.mxu0 0
      %662 = vmatpush1.bf16.msra.mxu0 0
      %663 = vmatprep.subr.bf16.mxu0 0
      %664 = vmatpush1.bf16.msra.mxu0 0
      %665 = vmatprep.subr.bf16.mxu0 0
      %666 = vmatpush1.bf16.msra.mxu0 0
      %667 = vmatprep.subr.bf16.mxu0 0
      %668 = vmatpush1.bf16.msra.mxu0 0
      %669 = vmatprep.subr.bf16.mxu0 0
      %670 = vmatpush1.bf16.msra.mxu0 0
      %671 = vmatprep.subr.bf16.mxu0 0
      %672 = vmatpush1.bf16.msra.mxu0 0
      %673 = vmatprep.subr.bf16.mxu0 0
      %674 = vmatpush1.bf16.msra.mxu0 0
      %675 = vmatprep.subr.bf16.mxu0 0
      %676 = vmatpush1.bf16.msra.mxu0 0
      %677 = vmatprep.subr.bf16.mxu0 0
      %678 = vmatpush1.bf16.msra.mxu0 0
      %679 = vmatprep.subr.bf16.mxu0 0
      %680 = vmatpush1.bf16.msra.mxu0 0
      %681 = vmatprep.mubr.bf16.mxu0 0
      %682 = vmatmul.mubr.bf16.gmra.mrb[0].mxu0 %v622
      %v683 = vpop.f32.mrb[0].mxu0
      %v684 = vadd.f32 %v618, %v683
      %v685 = vpop.f32.mrb[0].mxu0
      %v686 = vpop.f32.mrb[0].mxu0
      %v687 = vadd.f32 %v618, %v686
      %v688 = vpop.f32.mrb[0].mxu0
      %689 = vmatprep.mubr.bf16.mxu0 0
      %690 = vmatmul.mubr.bf16.gmra.mrb[0].mxu0 %v625
      %v691 = vpop.f32.mrb[0].mxu0
      %v692 = vadd.f32 %v618, %v691
      %v693 = vpop.f32.mrb[0].mxu0
      %v694 = vpop.f32.mrb[0].mxu0
      %v695 = vadd.f32 %v618, %v694
      %v696 = vpop.f32.mrb[0].mxu0
      %697 = vmatprep.mubr.bf16.mxu0 0
      %698 = vmatmul.mubr.bf16.gmra.mrb[0].mxu0 %v628
      %v699 = vpop.f32.mrb[0].mxu0
      %v700 = vadd.f32 %v618, %v699
      %v701 = vpop.f32.mrb[0].mxu0
      %v702 = vpop.f32.mrb[0].mxu0
      %v703 = vadd.f32 %v618, %v702
      %v704 = vpop.f32.mrb[0].mxu0
      %705 = vmatprep.mubr.bf16.mxu0 0
      %706 = vmatmul.mubr.bf16.gmra.mrb[0].mxu0 %v631
      %v707 = vpop.f32.mrb[0].mxu0
      %v708 = vadd.f32 %v618, %v707
      %v709 = vpop.f32.mrb[0].mxu0
      %v710 = vpop.f32.mrb[0].mxu0
      %v711 = vadd.f32 %v618, %v710
      %v712 = vpop.f32.mrb[0].mxu0
      %713 = vmatprep.mubr.bf16.mxu0 0
      %714 = vmatmul.mubr.bf16.gmra.mrb[0].mxu0 %v634
      %v715 = vpop.f32.mrb[0].mxu0
      %v716 = vadd.f32 %v618, %v715
      %v717 = vpop.f32.mrb[0].mxu0
      %v718 = vpop.f32.mrb[0].mxu0
      %v719 = vadd.f32 %v618, %v718
      %v720 = vpop.f32.mrb[0].mxu0
      %721 = vmatprep.mubr.bf16.mxu0 0
      %722 = vmatmul.mubr.bf16.gmra.mrb[0].mxu0 %v637
      %v723 = vpop.f32.mrb[0].mxu0
      %v724 = vadd.f32 %v618, %v723
      %v725 = vpop.f32.mrb[0].mxu0
      %v726 = vpop.f32.mrb[0].mxu0
      %v727 = vadd.f32 %v618, %v726
      %v728 = vpop.f32.mrb[0].mxu0
      %729 = vmatprep.mubr.bf16.mxu0 0
      %730 = vmatmul.mubr.bf16.gmra.mrb[0].mxu0 %v640
      %v731 = vpop.f32.mrb[0].mxu0
      %v732 = vadd.f32 %v618, %v731
      %v733 = vpop.f32.mrb[0].mxu0
      %v734 = vpop.f32.mrb[0].mxu0
      %v735 = vadd.f32 %v618, %v734
      %v736 = vpop.f32.mrb[0].mxu0
      %737 = vmatprep.mubr.bf16.mxu0 0
      %738 = vmatmul.mubr.bf16.gmra.mrb[0].mxu0 %v643
      %v739 = vpop.f32.mrb[0].mxu0
      %v740 = vadd.f32 %v618, %v739
      %v741 = vpop.f32.mrb[0].mxu0
      %v742 = vpop.f32.mrb[0].mxu0
      %v743 = vadd.f32 %v618, %v742
      %v744 = vpop.f32.mrb[0].mxu0
      %745 = vdwg.mxu0
      %v746 = vmul.f32 %v684, %v527
      %v747 = vmul.f32 %v687, %v532
      %v748 = vmul.f32 %v692, %v537
      %v749 = vmul.f32 %v695, %v542
      %v750 = vmul.f32 %v700, %v547
      %v751 = vmul.f32 %v703, %v552
      %v752 = vmul.f32 %v708, %v557
      %v753 = vmul.f32 %v711, %v562
      %v754 = vmul.f32 %v716, %v567
      %v755 = vmul.f32 %v719, %v572
      %v756 = vmul.f32 %v724, %v577
      %v757 = vmul.f32 %v727, %v582
      %v758 = vmul.f32 %v732, %v587
      %v759 = vmul.f32 %v735, %v592
      %v760 = vmul.f32 %v740, %v597
      %v761 = vmul.f32 %v743, %v602
      %vm762 = vcmask 261120
      %763 = vst.msk [vmem:[#allocation2 + $0x1] sm:$0xff] %vm762, %v746
      %764 = vst.msk [vmem:[#allocation2 + $0x9] sm:$0xff] %vm762, %v747
      %765 = vst.msk [vmem:[#allocation2 + $0x11] sm:$0xff] %vm762, %v748
      %766 = vst.msk [vmem:[#allocation2 + $0x19] sm:$0xff] %vm762, %v749
      %767 = vst.msk [vmem:[#allocation2 + $0x21] sm:$0xff] %vm762, %v750
      %768 = vst.msk [vmem:[#allocation2 + $0x29] sm:$0xff] %vm762, %v751
      %769 = vst.msk [vmem:[#allocation2 + $0x31] sm:$0xff] %vm762, %v752
      %770 = vst.msk [vmem:[#allocation2 + $0x39] sm:$0xff] %vm762, %v753
      %771 = vst.msk [vmem:[#allocation2 + $0x49] sm:$0xff] %vm762, %v754
      %772 = vst.msk [vmem:[#allocation2 + $0x51] sm:$0xff] %vm762, %v755
      %773 = vst.msk [vmem:[#allocation2 + $0x59] sm:$0xff] %vm762, %v756
      %774 = vst.msk [vmem:[#allocation2 + $0x61] sm:$0xff] %vm762, %v757
      %775 = vst.msk [vmem:[#allocation2 + $0x69] sm:$0xff] %vm762, %v758
      %776 = vst.msk [vmem:[#allocation2 + $0x71] sm:$0xff] %vm762, %v759
      %777 = vst.msk [vmem:[#allocation2 + $0x79] sm:$0xff] %vm762, %v760
      %778 = vst.msk [vmem:[#allocation2 + $0x81] sm:$0xff] %vm762, %v761
      %v779 = vld [vmem:[#allocation2] sm:$0xff]
      %v780 = vld [vmem:[#allocation2 + $0x8] sm:$0xff]
      %v781 = vld [vmem:[#allocation2 + $0x10] sm:$0xff]
      %v782 = vld [vmem:[#allocation2 + $0x18] sm:$0xff]
      %v783 = vld [vmem:[#allocation2 + $0x20] sm:$0xff]
      %v784 = vld [vmem:[#allocation2 + $0x28] sm:$0xff]
      %v785 = vld [vmem:[#allocation2 + $0x30] sm:$0xff]
      %v786 = vld [vmem:[#allocation2 + $0x38] sm:$0xff]
      %v787 = vld [vmem:[#allocation2 + $0x48] sm:$0xff]
      %v788 = vld [vmem:[#allocation2 + $0x50] sm:$0xff]
      %v789 = vld [vmem:[#allocation2 + $0x58] sm:$0xff]
      %v790 = vld [vmem:[#allocation2 + $0x60] sm:$0xff]
      %v791 = vld [vmem:[#allocation2 + $0x68] sm:$0xff]
      %v792 = vld [vmem:[#allocation2 + $0x70] sm:$0xff]
      %v793 = vld [vmem:[#allocation2 + $0x78] sm:$0xff]
      %v794 = vld [vmem:[#allocation2 + $0x80] sm:$0xff]
      %v795 = vld [vmem:[#allocation2 + $0x1] sm:$0xff]
      %v796 = vld [vmem:[#allocation2 + $0x9] sm:$0xff]
      %v797 = vld [vmem:[#allocation2 + $0x11] sm:$0xff]
      %v798 = vld [vmem:[#allocation2 + $0x19] sm:$0xff]
      %v799 = vld [vmem:[#allocation2 + $0x21] sm:$0xff]
      %v800 = vld [vmem:[#allocation2 + $0x29] sm:$0xff]
      %v801 = vld [vmem:[#allocation2 + $0x31] sm:$0xff]
      %v802 = vld [vmem:[#allocation2 + $0x39] sm:$0xff]
      %v803 = vld [vmem:[#allocation2 + $0x49] sm:$0xff]
      %v804 = vld [vmem:[#allocation2 + $0x51] sm:$0xff]
      %v805 = vld [vmem:[#allocation2 + $0x59] sm:$0xff]
      %v806 = vld [vmem:[#allocation2 + $0x61] sm:$0xff]
      %v807 = vld [vmem:[#allocation2 + $0x69] sm:$0xff]
      %v808 = vld [vmem:[#allocation2 + $0x71] sm:$0xff]
      %v809 = vld [vmem:[#allocation2 + $0x79] sm:$0xff]
      %v810 = vld [vmem:[#allocation2 + $0x81] sm:$0xff]
      %v811 = vld [vmem:[#allocation2 + $0x2] sm:$0xff]
      %v812 = vld [vmem:[#allocation2 + $0xa] sm:$0xff]
      %v813 = vld [vmem:[#allocation2 + $0x12] sm:$0xff]
      %v814 = vld [vmem:[#allocation2 + $0x1a] sm:$0xff]
      %v815 = vld [vmem:[#allocation2 + $0x22] sm:$0xff]
      %v816 = vld [vmem:[#allocation2 + $0x2a] sm:$0xff]
      %v817 = vld [vmem:[#allocation2 + $0x32] sm:$0xff]
      %v818 = vld [vmem:[#allocation2 + $0x3a] sm:$0xff]
      %v819 = vld [vmem:[#allocation2 + $0x4a] sm:$0xff]
      %v820 = vld [vmem:[#allocation2 + $0x52] sm:$0xff]
      %v821 = vld [vmem:[#allocation2 + $0x5a] sm:$0xff]
      %v822 = vld [vmem:[#allocation2 + $0x62] sm:$0xff]
      %v823 = vld [vmem:[#allocation2 + $0x6a] sm:$0xff]
      %v824 = vld [vmem:[#allocation2 + $0x72] sm:$0xff]
      %v825 = vld [vmem:[#allocation2 + $0x7a] sm:$0xff]
      %v826 = vld [vmem:[#allocation2 + $0x82] sm:$0xff]
      %843 = vrot.lane.b32.xlu0 %v795, 32
      %v844 = vpop.permute.xlu0 %843
      %845 = vrot.lane.b32.xlu0 %v796, 32
      %v846 = vpop.permute.xlu0 %845
      %847 = vrot.lane.b32.xlu0 %v797, 32
      %v848 = vpop.permute.xlu0 %847
      %849 = vrot.lane.b32.xlu0 %v798, 32
      %v850 = vpop.permute.xlu0 %849
      %851 = vrot.lane.b32.xlu0 %v799, 32
      %v852 = vpop.permute.xlu0 %851
      %853 = vrot.lane.b32.xlu0 %v800, 32
      %v854 = vpop.permute.xlu0 %853
      %855 = vrot.lane.b32.xlu0 %v801, 32
      %v856 = vpop.permute.xlu0 %855
      %857 = vrot.lane.b32.xlu0 %v802, 32
      %v858 = vpop.permute.xlu0 %857
      %859 = vrot.lane.b32.xlu0 %v803, 32
      %v860 = vpop.permute.xlu0 %859
      %861 = vrot.lane.b32.xlu0 %v804, 32
      %v862 = vpop.permute.xlu0 %861
      %863 = vrot.lane.b32.xlu0 %v805, 32
      %v864 = vpop.permute.xlu0 %863
      %865 = vrot.lane.b32.xlu0 %v806, 32
      %v866 = vpop.permute.xlu0 %865
      %867 = vrot.lane.b32.xlu0 %v807, 32
      %v868 = vpop.permute.xlu0 %867
      %869 = vrot.lane.b32.xlu0 %v808, 32
      %v870 = vpop.permute.xlu0 %869
      %871 = vrot.lane.b32.xlu0 %v809, 32
      %v872 = vpop.permute.xlu0 %871
      %873 = vrot.lane.b32.xlu0 %v810, 32
      %v874 = vpop.permute.xlu0 %873
      %907 = vrot.lane.b32.xlu0 %v811, 64
      %v908 = vpop.permute.xlu0 %907
      %909 = vrot.lane.b32.xlu0 %v812, 64
      %v910 = vpop.permute.xlu0 %909
      %911 = vrot.lane.b32.xlu0 %v813, 64
      %v912 = vpop.permute.xlu0 %911
      %913 = vrot.lane.b32.xlu0 %v814, 64
      %v914 = vpop.permute.xlu0 %913
      %915 = vrot.lane.b32.xlu0 %v815, 64
      %v916 = vpop.permute.xlu0 %915
      %917 = vrot.lane.b32.xlu0 %v816, 64
      %v918 = vpop.permute.xlu0 %917
      %919 = vrot.lane.b32.xlu0 %v817, 64
      %v920 = vpop.permute.xlu0 %919
      %921 = vrot.lane.b32.xlu0 %v818, 64
      %v922 = vpop.permute.xlu0 %921
      %923 = vrot.lane.b32.xlu0 %v819, 64
      %v924 = vpop.permute.xlu0 %923
      %925 = vrot.lane.b32.xlu0 %v820, 64
      %v926 = vpop.permute.xlu0 %925
      %927 = vrot.lane.b32.xlu0 %v821, 64
      %v928 = vpop.permute.xlu0 %927
      %929 = vrot.lane.b32.xlu0 %v822, 64
      %v930 = vpop.permute.xlu0 %929
      %931 = vrot.lane.b32.xlu0 %v823, 64
      %v932 = vpop.permute.xlu0 %931
      %933 = vrot.lane.b32.xlu0 %v824, 64
      %v934 = vpop.permute.xlu0 %933
      %935 = vrot.lane.b32.xlu0 %v825, 64
      %v936 = vpop.permute.xlu0 %935
      %937 = vrot.lane.b32.xlu0 %v826, 64
      %v938 = vpop.permute.xlu0 %937
      %v955 = vsel %vm762, %v779, %v844
      %v956 = vsel %vm762, %v780, %v846
      %v957 = vsel %vm762, %v781, %v848
      %v958 = vsel %vm762, %v782, %v850
      %v959 = vsel %vm762, %v783, %v852
      %v960 = vsel %vm762, %v784, %v854
      %v961 = vsel %vm762, %v785, %v856
      %v962 = vsel %vm762, %v786, %v858
      %v963 = vsel %vm762, %v787, %v860
      %v964 = vsel %vm762, %v788, %v862
      %v965 = vsel %vm762, %v789, %v864
      %v966 = vsel %vm762, %v790, %v866
      %v967 = vsel %vm762, %v791, %v868
      %v968 = vsel %vm762, %v792, %v870
      %v969 = vsel %vm762, %v793, %v872
      %v970 = vsel %vm762, %v794, %v874
      %vm971 = vcmask 523264
      %v972 = vsel %vm971, %v955, %v908
      %v973 = vsel %vm971, %v956, %v910
      %v974 = vsel %vm971, %v957, %v912
      %v975 = vsel %vm971, %v958, %v914
      %v976 = vsel %vm971, %v959, %v916
      %v977 = vsel %vm971, %v960, %v918
      %v978 = vsel %vm971, %v961, %v920
      %v979 = vsel %vm971, %v962, %v922
      %v980 = vsel %vm971, %v963, %v924
      %v981 = vsel %vm971, %v964, %v926
      %v982 = vsel %vm971, %v965, %v928
      %v983 = vsel %vm971, %v966, %v930
      %v984 = vsel %vm971, %v967, %v932
      %v985 = vsel %vm971, %v968, %v934
      %v986 = vsel %vm971, %v969, %v936
      %v987 = vsel %vm971, %v970, %v938
      %v988 = vpack.c.bf16 %v973, %v972
      %v989 = vpack.c.bf16 %v975, %v974
      %v990 = vpack.c.bf16 %v977, %v976
      %v991 = vpack.c.bf16 %v979, %v978
      %v992 = vpack.c.bf16 %v981, %v980
      %v993 = vpack.c.bf16 %v983, %v982
      %v994 = vpack.c.bf16 %v985, %v984
      %v995 = vpack.c.bf16 %v987, %v986
      %v996 = vld [vmem:[%s4] sm:$0xf]
      %v997 = vld [vmem:[%s4 + $0x4] sm:$0xf]
      %v998 = vld [vmem:[%s4 + $0x8] sm:$0xf]
      %v999 = vld [vmem:[%s4 + $0xc] sm:$0xf]
      %v1000 = vld [vmem:[%s4 + $0x10] sm:$0xf]
      %v1001 = vld [vmem:[%s4 + $0x14] sm:$0xf]
      %v1002 = vld [vmem:[%s4 + $0x18] sm:$0xf]
      %v1003 = vld [vmem:[%s4 + $0x1c] sm:$0xf]
      %v1004 = vld [vmem:[%s4 + $0x20] sm:$0xf]
      %v1005 = vld [vmem:[%s4 + $0x24] sm:$0xf]
      %v1006 = vld [vmem:[%s4 + $0x28] sm:$0xf]
      %v1007 = vld [vmem:[%s4 + $0x2c] sm:$0xf]
      %v1008 = vld [vmem:[%s5] sm:$0x1]
      %v1009 = vlaneseq
      %v1010 = vshrl.u32 %v1009, 7
      %v1011 = vsub.s32 0, %v1010
      %v1012 = vrot.slane %v1008, %v1011
      %v1025 = vunpack.c.l.b16 %v996
      %v1026 = vunpack.c.l.b16 %v997
      %v1027 = vunpack.c.l.b16 %v998
      %v1028 = vunpack.c.l.b16 %v999
      %v1029 = vunpack.c.l.b16 %v1000
      %v1030 = vunpack.c.l.b16 %v1001
      %v1031 = vunpack.c.l.b16 %v1002
      %v1032 = vunpack.c.l.b16 %v1003
      %v1033 = vunpack.c.l.b16 %v1004
      %v1034 = vunpack.c.l.b16 %v1005
      %v1035 = vunpack.c.l.b16 %v1006
      %v1036 = vunpack.c.l.b16 %v1007
      %v1037 = vpack.c.b16 %v1026, %v1025
      %v1038 = vpack.c.b16 %v1028, %v1027
      %v1039 = vpack.c.b16 %v1030, %v1029
      %v1040 = vpack.c.b16 %v1032, %v1031
      %v1041 = vpack.c.b16 %v1034, %v1033
      %v1042 = vpack.c.b16 %v1036, %v1035
      %vm1049 = vcmask 785408
      %v1051 = vsel %vm1049, %v988, 0
      %v1054 = vsel %vm1049, %v989, 0
      %v1057 = vsel %vm1049, %v990, 0
      %v1060 = vsel %vm1049, %v991, 0
      %v1063 = vsel %vm1049, %v992, 0
      %v1066 = vsel %vm1049, %v993, 0
      %v1069 = vsel %vm1049, %v994, 0
      %v1072 = vsel %vm1049, %v995, 0
      %1074 = vmatprep.subr.bf16.mxu0 0
      %1075 = vmatpush1.bf16.msra.mxu0 %v1037
      %1076 = vmatprep.subr.bf16.mxu0 0
      %1077 = vmatpush1.bf16.msra.mxu0 %v1038
      %1078 = vmatprep.subr.bf16.mxu0 0
      %1079 = vmatpush1.bf16.msra.mxu0 %v1039
      %1080 = vmatprep.subr.bf16.mxu0 0
      %1081 = vmatpush1.bf16.msra.mxu0 %v1040
      %1082 = vmatprep.subr.bf16.mxu0 0
      %1083 = vmatpush1.bf16.msra.mxu0 %v1041
      %1084 = vmatprep.subr.bf16.mxu0 0
      %1085 = vmatpush1.bf16.msra.mxu0 %v1042
      %1086 = vmatprep.subr.bf16.mxu0 0
      %1087 = vmatpush1.bf16.msra.mxu0 0
      %1088 = vmatprep.subr.bf16.mxu0 0
      %1089 = vmatpush1.bf16.msra.mxu0 0
      %1090 = vmatprep.subr.bf16.mxu0 0
      %1091 = vmatpush1.bf16.msra.mxu0 0
      %1092 = vmatprep.subr.bf16.mxu0 0
      %1093 = vmatpush1.bf16.msra.mxu0 0
      %1094 = vmatprep.subr.bf16.mxu0 0
      %1095 = vmatpush1.bf16.msra.mxu0 0
      %1096 = vmatprep.subr.bf16.mxu0 0
      %1097 = vmatpush1.bf16.msra.mxu0 0
      %1098 = vmatprep.subr.bf16.mxu0 0
      %1099 = vmatpush1.bf16.msra.mxu0 0
      %1100 = vmatprep.subr.bf16.mxu0 0
      %1101 = vmatpush1.bf16.msra.mxu0 0
      %1102 = vmatprep.subr.bf16.mxu0 0
      %1103 = vmatpush1.bf16.msra.mxu0 0
      %1104 = vmatprep.subr.bf16.mxu0 0
      %1105 = vmatpush1.bf16.msra.mxu0 0
      %1106 = vmatprep.mubr.bf16.mxu0 0
      %1107 = vmatmul.mubr.bf16.gmra.mrb[0].mxu0 %v1051
      %v1108 = vpop.f32.mrb[0].mxu0
      %v1109 = vadd.f32 %v1012, %v1108
      %v1110 = vpop.f32.mrb[0].mxu0
      %v1111 = vpop.f32.mrb[0].mxu0
      %v1112 = vadd.f32 %v1012, %v1111
      %v1113 = vpop.f32.mrb[0].mxu0
      %1114 = vmatprep.mubr.bf16.mxu0 0
      %1115 = vmatmul.mubr.bf16.gmra.mrb[0].mxu0 %v1054
      %v1116 = vpop.f32.mrb[0].mxu0
      %v1117 = vadd.f32 %v1012, %v1116
      %v1118 = vpop.f32.mrb[0].mxu0
      %v1119 = vpop.f32.mrb[0].mxu0
      %v1120 = vadd.f32 %v1012, %v1119
      %v1121 = vpop.f32.mrb[0].mxu0
      %1122 = vmatprep.mubr.bf16.mxu0 0
      %1123 = vmatmul.mubr.bf16.gmra.mrb[0].mxu0 %v1057
      %v1124 = vpop.f32.mrb[0].mxu0
      %v1125 = vadd.f32 %v1012, %v1124
      %v1126 = vpop.f32.mrb[0].mxu0
      %v1127 = vpop.f32.mrb[0].mxu0
      %v1128 = vadd.f32 %v1012, %v1127
      %v1129 = vpop.f32.mrb[0].mxu0
      %1130 = vmatprep.mubr.bf16.mxu0 0
      %1131 = vmatmul.mubr.bf16.gmra.mrb[0].mxu0 %v1060
      %v1132 = vpop.f32.mrb[0].mxu0
      %v1133 = vadd.f32 %v1012, %v1132
      %v1134 = vpop.f32.mrb[0].mxu0
      %v1135 = vpop.f32.mrb[0].mxu0
      %v1136 = vadd.f32 %v1012, %v1135
      %v1137 = vpop.f32.mrb[0].mxu0
      %1138 = vmatprep.mubr.bf16.mxu0 0
      %1139 = vmatmul.mubr.bf16.gmra.mrb[0].mxu0 %v1063
      %v1140 = vpop.f32.mrb[0].mxu0
      %v1141 = vadd.f32 %v1012, %v1140
      %v1142 = vpop.f32.mrb[0].mxu0
      %v1143 = vpop.f32.mrb[0].mxu0
      %v1144 = vadd.f32 %v1012, %v1143
      %v1145 = vpop.f32.mrb[0].mxu0
      %1146 = vmatprep.mubr.bf16.mxu0 0
      %1147 = vmatmul.mubr.bf16.gmra.mrb[0].mxu0 %v1066
      %v1148 = vpop.f32.mrb[0].mxu0
      %v1149 = vadd.f32 %v1012, %v1148
      %v1150 = vpop.f32.mrb[0].mxu0
      %v1151 = vpop.f32.mrb[0].mxu0
      %v1152 = vadd.f32 %v1012, %v1151
      %v1153 = vpop.f32.mrb[0].mxu0
      %1154 = vmatprep.mubr.bf16.mxu0 0
      %1155 = vmatmul.mubr.bf16.gmra.mrb[0].mxu0 %v1069
      %v1156 = vpop.f32.mrb[0].mxu0
      %v1157 = vadd.f32 %v1012, %v1156
      %v1158 = vpop.f32.mrb[0].mxu0
      %v1159 = vpop.f32.mrb[0].mxu0
      %v1160 = vadd.f32 %v1012, %v1159
      %v1161 = vpop.f32.mrb[0].mxu0
      %1162 = vmatprep.mubr.bf16.mxu0 0
      %1163 = vmatmul.mubr.bf16.gmra.mrb[0].mxu0 %v1072
      %v1164 = vpop.f32.mrb[0].mxu0
      %v1165 = vadd.f32 %v1012, %v1164
      %v1166 = vpop.f32.mrb[0].mxu0
      %v1167 = vpop.f32.mrb[0].mxu0
      %v1168 = vadd.f32 %v1012, %v1167
      %v1169 = vpop.f32.mrb[0].mxu0
      %1170 = vdwg.mxu0
      %v1171 = vtanh.pop %v1109
      %v1172 = vtanh.pop %v1112
      %v1173 = vtanh.pop %v1117
      %v1174 = vtanh.pop %v1120
      %v1175 = vtanh.pop %v1125
      %v1176 = vtanh.pop %v1128
      %v1177 = vtanh.pop %v1133
      %v1178 = vtanh.pop %v1136
      %v1179 = vtanh.pop %v1141
      %v1180 = vtanh.pop %v1144
      %v1181 = vtanh.pop %v1149
      %v1182 = vtanh.pop %v1152
      %v1183 = vtanh.pop %v1157
      %v1184 = vtanh.pop %v1160
      %v1185 = vtanh.pop %v1165
      %v1186 = vtanh.pop %v1168
      %v1187 = vxor.u32 %v1109, 2147483648
      %v1188 = vxor.u32 %v1112, 2147483648
      %v1189 = vxor.u32 %v1117, 2147483648
      %v1190 = vxor.u32 %v1120, 2147483648
      %v1191 = vxor.u32 %v1125, 2147483648
      %v1192 = vxor.u32 %v1128, 2147483648
      %v1193 = vxor.u32 %v1133, 2147483648
      %v1194 = vxor.u32 %v1136, 2147483648
      %v1195 = vxor.u32 %v1141, 2147483648
      %v1196 = vxor.u32 %v1144, 2147483648
      %v1197 = vxor.u32 %v1149, 2147483648
      %v1198 = vxor.u32 %v1152, 2147483648
      %v1199 = vxor.u32 %v1157, 2147483648
      %v1200 = vxor.u32 %v1160, 2147483648
      %v1201 = vxor.u32 %v1165, 2147483648
      %v1202 = vxor.u32 %v1168, 2147483648
      %v1203 = vmul.f32 %v1187, 1.442695
      %v1204 = vpow.pop %v1203
      %v1205 = vmul.f32 %v1188, 1.442695
      %v1206 = vpow.pop %v1205
      %v1207 = vmul.f32 %v1189, 1.442695
      %v1208 = vpow.pop %v1207
      %v1209 = vmul.f32 %v1190, 1.442695
      %v1210 = vpow.pop %v1209
      %v1211 = vmul.f32 %v1191, 1.442695
      %v1212 = vpow.pop %v1211
      %v1213 = vmul.f32 %v1192, 1.442695
      %v1214 = vpow.pop %v1213
      %v1215 = vmul.f32 %v1193, 1.442695
      %v1216 = vpow.pop %v1215
      %v1217 = vmul.f32 %v1194, 1.442695
      %v1218 = vpow.pop %v1217
      %v1219 = vmul.f32 %v1195, 1.442695
      %v1220 = vpow.pop %v1219
      %v1221 = vmul.f32 %v1196, 1.442695
      %v1222 = vpow.pop %v1221
      %v1223 = vmul.f32 %v1197, 1.442695
      %v1224 = vpow.pop %v1223
      %v1225 = vmul.f32 %v1198, 1.442695
      %v1226 = vpow.pop %v1225
      %v1227 = vmul.f32 %v1199, 1.442695
      %v1228 = vpow.pop %v1227
      %v1229 = vmul.f32 %v1200, 1.442695
      %v1230 = vpow.pop %v1229
      %v1231 = vmul.f32 %v1201, 1.442695
      %v1232 = vpow.pop %v1231
      %v1233 = vmul.f32 %v1202, 1.442695
      %v1234 = vpow.pop %v1233
      %v1235 = vadd.f32 %v1204, 1.0
      %v1236 = vadd.f32 %v1206, 1.0
      %v1237 = vadd.f32 %v1208, 1.0
      %v1238 = vadd.f32 %v1210, 1.0
      %v1239 = vadd.f32 %v1212, 1.0
      %v1240 = vadd.f32 %v1214, 1.0
      %v1241 = vadd.f32 %v1216, 1.0
      %v1242 = vadd.f32 %v1218, 1.0
      %v1243 = vadd.f32 %v1220, 1.0
      %v1244 = vadd.f32 %v1222, 1.0
      %v1245 = vadd.f32 %v1224, 1.0
      %v1246 = vadd.f32 %v1226, 1.0
      %v1247 = vadd.f32 %v1228, 1.0
      %v1248 = vadd.f32 %v1230, 1.0
      %v1249 = vadd.f32 %v1232, 1.0
      %v1250 = vadd.f32 %v1234, 1.0
      %v1251 = vrcp.pop %v1235
      %v1252 = vmul.f32 1.0, %v1251
      %v1253 = vrcp.pop %v1236
      %v1254 = vmul.f32 1.0, %v1253
      %v1255 = vrcp.pop %v1237
      %v1256 = vmul.f32 1.0, %v1255
      %v1257 = vrcp.pop %v1238
      %v1258 = vmul.f32 1.0, %v1257
      %v1259 = vrcp.pop %v1239
      %v1260 = vmul.f32 1.0, %v1259
      %v1261 = vrcp.pop %v1240
      %v1262 = vmul.f32 1.0, %v1261
      %v1263 = vrcp.pop %v1241
      %v1264 = vmul.f32 1.0, %v1263
      %v1265 = vrcp.pop %v1242
      %v1266 = vmul.f32 1.0, %v1265
      %v1267 = vrcp.pop %v1243
      %v1268 = vmul.f32 1.0, %v1267
      %v1269 = vrcp.pop %v1244
      %v1270 = vmul.f32 1.0, %v1269
      %v1271 = vrcp.pop %v1245
      %v1272 = vmul.f32 1.0, %v1271
      %v1273 = vrcp.pop %v1246
      %v1274 = vmul.f32 1.0, %v1273
      %v1275 = vrcp.pop %v1247
      %v1276 = vmul.f32 1.0, %v1275
      %v1277 = vrcp.pop %v1248
      %v1278 = vmul.f32 1.0, %v1277
      %v1279 = vrcp.pop %v1249
      %v1280 = vmul.f32 1.0, %v1279
      %v1281 = vrcp.pop %v1250
      %v1282 = vmul.f32 1.0, %v1281
      %1299 = vrot.lane.b32.xlu0 %v1252, 96
      %v1300 = vpop.permute.xlu0 %1299
      %1301 = vrot.lane.b32.xlu0 %v1254, 96
      %v1302 = vpop.permute.xlu0 %1301
      %1303 = vrot.lane.b32.xlu0 %v1256, 96
      %v1304 = vpop.permute.xlu0 %1303
      %1305 = vrot.lane.b32.xlu0 %v1258, 96
      %v1306 = vpop.permute.xlu0 %1305
      %1307 = vrot.lane.b32.xlu0 %v1260, 96
      %v1308 = vpop.permute.xlu0 %1307
      %1309 = vrot.lane.b32.xlu0 %v1262, 96
      %v1310 = vpop.permute.xlu0 %1309
      %1311 = vrot.lane.b32.xlu0 %v1264, 96
      %v1312 = vpop.permute.xlu0 %1311
      %1313 = vrot.lane.b32.xlu0 %v1266, 96
      %v1314 = vpop.permute.xlu0 %1313
      %1315 = vrot.lane.b32.xlu0 %v1268, 96
      %v1316 = vpop.permute.xlu0 %1315
      %1317 = vrot.lane.b32.xlu0 %v1270, 96
      %v1318 = vpop.permute.xlu0 %1317
      %1319 = vrot.lane.b32.xlu0 %v1272, 96
      %v1320 = vpop.permute.xlu0 %1319
      %1321 = vrot.lane.b32.xlu0 %v1274, 96
      %v1322 = vpop.permute.xlu0 %1321
      %1323 = vrot.lane.b32.xlu0 %v1276, 96
      %v1324 = vpop.permute.xlu0 %1323
      %1325 = vrot.lane.b32.xlu0 %v1278, 96
      %v1326 = vpop.permute.xlu0 %1325
      %1327 = vrot.lane.b32.xlu0 %v1280, 96
      %v1328 = vpop.permute.xlu0 %1327
      %1329 = vrot.lane.b32.xlu0 %v1282, 96
      %v1330 = vpop.permute.xlu0 %1329
      %v1347 = vmul.f32 %v1171, %v1300
      %v1348 = vmul.f32 %v1172, %v1302
      %v1349 = vmul.f32 %v1173, %v1304
      %v1350 = vmul.f32 %v1174, %v1306
      %v1351 = vmul.f32 %v1175, %v1308
      %v1352 = vmul.f32 %v1176, %v1310
      %v1353 = vmul.f32 %v1177, %v1312
      %v1354 = vmul.f32 %v1178, %v1314
      %v1355 = vmul.f32 %v1179, %v1316
      %v1356 = vmul.f32 %v1180, %v1318
      %v1357 = vmul.f32 %v1181, %v1320
      %v1358 = vmul.f32 %v1182, %v1322
      %v1359 = vmul.f32 %v1183, %v1324
      %v1360 = vmul.f32 %v1184, %v1326
      %v1361 = vmul.f32 %v1185, %v1328
      %v1362 = vmul.f32 %v1186, %v1330
      %v1363 = vpack.c.bf16 %v1348, %v1347
      %v1364 = vpack.c.bf16 %v1350, %v1349
      %v1365 = vpack.c.bf16 %v1352, %v1351
      %v1366 = vpack.c.bf16 %v1354, %v1353
      %v1367 = vpack.c.bf16 %v1356, %v1355
      %v1368 = vpack.c.bf16 %v1358, %v1357
      %v1369 = vpack.c.bf16 %v1360, %v1359
      %v1370 = vpack.c.bf16 %v1362, %v1361
      %v1371 = vld [vmem:[%s6] sm:$0xf]
      %v1372 = vld [vmem:[%s6 + $0x4] sm:$0xf]
      %v1373 = vld [vmem:[%s6 + $0x8] sm:$0xf]
      %v1374 = vld [vmem:[%s6 + $0xc] sm:$0xf]
      %v1375 = vld [vmem:[%s7] sm:$0x1]
      %v1376 = vlaneseq
      %v1377 = vshrl.u32 %v1376, 7
      %v1378 = vsub.s32 0, %v1377
      %v1379 = vrot.slane %v1375, %v1378
      %v1384 = vunpack.c.l.b16 %v1371
      %v1385 = vunpack.c.l.b16 %v1372
      %v1386 = vunpack.c.l.b16 %v1373
      %v1387 = vunpack.c.l.b16 %v1374
      %v1388 = vpack.c.b16 %v1385, %v1384
      %v1389 = vpack.c.b16 %v1387, %v1386
      %v1393 = vsel %vm762, %v1363, 0
      %v1396 = vsel %vm762, %v1364, 0
      %v1399 = vsel %vm762, %v1365, 0
      %v1402 = vsel %vm762, %v1366, 0
      %v1405 = vsel %vm762, %v1367, 0
      %v1408 = vsel %vm762, %v1368, 0
      %v1411 = vsel %vm762, %v1369, 0
      %v1414 = vsel %vm762, %v1370, 0
      %1416 = vmatprep.subr.bf16.mxu0 0
      %1417 = vmatpush1.bf16.msra.mxu0 %v1388
      %1418 = vmatprep.subr.bf16.mxu0 0
      %1419 = vmatpush1.bf16.msra.mxu0 %v1389
      %1420 = vmatprep.subr.bf16.mxu0 0
      %1421 = vmatpush1.bf16.msra.mxu0 0
      %1422 = vmatprep.subr.bf16.mxu0 0
      %1423 = vmatpush1.bf16.msra.mxu0 0
      %1424 = vmatprep.subr.bf16.mxu0 0
      %1425 = vmatpush1.bf16.msra.mxu0 0
      %1426 = vmatprep.subr.bf16.mxu0 0
      %1427 = vmatpush1.bf16.msra.mxu0 0
      %1428 = vmatprep.subr.bf16.mxu0 0
      %1429 = vmatpush1.bf16.msra.mxu0 0
      %1430 = vmatprep.subr.bf16.mxu0 0
      %1431 = vmatpush1.bf16.msra.mxu0 0
      %1432 = vmatprep.subr.bf16.mxu0 0
      %1433 = vmatpush1.bf16.msra.mxu0 0
      %1434 = vmatprep.subr.bf16.mxu0 0
      %1435 = vmatpush1.bf16.msra.mxu0 0
      %1436 = vmatprep.subr.bf16.mxu0 0
      %1437 = vmatpush1.bf16.msra.mxu0 0
      %1438 = vmatprep.subr.bf16.mxu0 0
      %1439 = vmatpush1.bf16.msra.mxu0 0
      %1440 = vmatprep.subr.bf16.mxu0 0
      %1441 = vmatpush1.bf16.msra.mxu0 0
      %1442 = vmatprep.subr.bf16.mxu0 0
      %1443 = vmatpush1.bf16.msra.mxu0 0
      %1444 = vmatprep.subr.bf16.mxu0 0
      %1445 = vmatpush1.bf16.msra.mxu0 0
      %1446 = vmatprep.subr.bf16.mxu0 0
      %1447 = vmatpush1.bf16.msra.mxu0 0
      %1448 = vmatprep.mubr.bf16.mxu0 0
      %1449 = vmatmul.mubr.bf16.gmra.mrb[0].mxu0 %v1393
      %v1450 = vpop.f32.mrb[0].mxu0
      %v1451 = vadd.f32 %v1379, %v1450
      %v1452 = vpop.f32.mrb[0].mxu0
      %v1453 = vpop.f32.mrb[0].mxu0
      %v1454 = vadd.f32 %v1379, %v1453
      %v1455 = vpop.f32.mrb[0].mxu0
      %1456 = vmatprep.mubr.bf16.mxu0 0
      %1457 = vmatmul.mubr.bf16.gmra.mrb[0].mxu0 %v1396
      %v1458 = vpop.f32.mrb[0].mxu0
      %v1459 = vadd.f32 %v1379, %v1458
      %v1460 = vpop.f32.mrb[0].mxu0
      %v1461 = vpop.f32.mrb[0].mxu0
      %v1462 = vadd.f32 %v1379, %v1461
      %v1463 = vpop.f32.mrb[0].mxu0
      %1464 = vmatprep.mubr.bf16.mxu0 0
      %1465 = vmatmul.mubr.bf16.gmra.mrb[0].mxu0 %v1399
      %v1466 = vpop.f32.mrb[0].mxu0
      %v1467 = vadd.f32 %v1379, %v1466
      %v1468 = vpop.f32.mrb[0].mxu0
      %v1469 = vpop.f32.mrb[0].mxu0
      %v1470 = vadd.f32 %v1379, %v1469
      %v1471 = vpop.f32.mrb[0].mxu0
      %1472 = vmatprep.mubr.bf16.mxu0 0
      %1473 = vmatmul.mubr.bf16.gmra.mrb[0].mxu0 %v1402
      %v1474 = vpop.f32.mrb[0].mxu0
      %v1475 = vadd.f32 %v1379, %v1474
      %v1476 = vpop.f32.mrb[0].mxu0
      %v1477 = vpop.f32.mrb[0].mxu0
      %v1478 = vadd.f32 %v1379, %v1477
      %v1479 = vpop.f32.mrb[0].mxu0
      %1480 = vmatprep.mubr.bf16.mxu0 0
      %1481 = vmatmul.mubr.bf16.gmra.mrb[0].mxu0 %v1405
      %v1482 = vpop.f32.mrb[0].mxu0
      %v1483 = vadd.f32 %v1379, %v1482
      %v1484 = vpop.f32.mrb[0].mxu0
      %v1485 = vpop.f32.mrb[0].mxu0
      %v1486 = vadd.f32 %v1379, %v1485
      %v1487 = vpop.f32.mrb[0].mxu0
      %1488 = vmatprep.mubr.bf16.mxu0 0
      %1489 = vmatmul.mubr.bf16.gmra.mrb[0].mxu0 %v1408
      %v1490 = vpop.f32.mrb[0].mxu0
      %v1491 = vadd.f32 %v1379, %v1490
      %v1492 = vpop.f32.mrb[0].mxu0
      %v1493 = vpop.f32.mrb[0].mxu0
      %v1494 = vadd.f32 %v1379, %v1493
      %v1495 = vpop.f32.mrb[0].mxu0
      %1496 = vmatprep.mubr.bf16.mxu0 0
      %1497 = vmatmul.mubr.bf16.gmra.mrb[0].mxu0 %v1411
      %v1498 = vpop.f32.mrb[0].mxu0
      %v1499 = vadd.f32 %v1379, %v1498
      %v1500 = vpop.f32.mrb[0].mxu0
      %v1501 = vpop.f32.mrb[0].mxu0
      %v1502 = vadd.f32 %v1379, %v1501
      %v1503 = vpop.f32.mrb[0].mxu0
      %1504 = vmatprep.mubr.bf16.mxu0 0
      %1505 = vmatmul.mubr.bf16.gmra.mrb[0].mxu0 %v1414
      %v1506 = vpop.f32.mrb[0].mxu0
      %v1507 = vadd.f32 %v1379, %v1506
      %v1508 = vpop.f32.mrb[0].mxu0
      %v1509 = vpop.f32.mrb[0].mxu0
      %v1510 = vadd.f32 %v1379, %v1509
      %v1511 = vpop.f32.mrb[0].mxu0
      %1512 = vdwg.mxu0
      %v1513 = vadd.f32 %v746, %v1451
      %v1514 = vadd.f32 %v747, %v1454
      %v1515 = vadd.f32 %v748, %v1459
      %v1516 = vadd.f32 %v749, %v1462
      %v1517 = vadd.f32 %v750, %v1467
      %v1518 = vadd.f32 %v751, %v1470
      %v1519 = vadd.f32 %v752, %v1475
      %v1520 = vadd.f32 %v753, %v1478
      %v1521 = vadd.f32 %v754, %v1483
      %v1522 = vadd.f32 %v755, %v1486
      %v1523 = vadd.f32 %v756, %v1491
      %v1524 = vadd.f32 %v757, %v1494
      %v1525 = vadd.f32 %v758, %v1499
      %v1526 = vadd.f32 %v759, %v1502
      %v1527 = vadd.f32 %v760, %v1507
      %v1528 = vadd.f32 %v761, %v1510
      %v1529 = vmul.f32 %v1513, %v527
      %v1530 = vmul.f32 %v1514, %v532
      %v1531 = vmul.f32 %v1515, %v537
      %v1532 = vmul.f32 %v1516, %v542
      %v1533 = vmul.f32 %v1517, %v547
      %v1534 = vmul.f32 %v1518, %v552
      %v1535 = vmul.f32 %v1519, %v557
      %v1536 = vmul.f32 %v1520, %v562
      %v1537 = vmul.f32 %v1521, %v567
      %v1538 = vmul.f32 %v1522, %v572
      %v1539 = vmul.f32 %v1523, %v577
      %v1540 = vmul.f32 %v1524, %v582
      %v1541 = vmul.f32 %v1525, %v587
      %v1542 = vmul.f32 %v1526, %v592
      %v1543 = vmul.f32 %v1527, %v597
      %v1544 = vmul.f32 %v1528, %v602
      %v1545 = vadd.f32 %v1451, 0.0
      %v1546 = vadd.f32 %v1454, 0.0
      %v1547 = vadd.f32 %v1459, 0.0
      %v1548 = vadd.f32 %v1462, 0.0
      %v1549 = vadd.f32 %v1467, 0.0
      %v1550 = vadd.f32 %v1470, 0.0
      %v1551 = vadd.f32 %v1475, 0.0
      %v1552 = vadd.f32 %v1478, 0.0
      %v1553 = vadd.f32 %v1483, 0.0
      %v1554 = vadd.f32 %v1486, 0.0
      %v1555 = vadd.f32 %v1491, 0.0
      %v1556 = vadd.f32 %v1494, 0.0
      %v1557 = vadd.f32 %v1499, 0.0
      %v1558 = vadd.f32 %v1502, 0.0
      %v1559 = vadd.f32 %v1507, 0.0
      %v1560 = vadd.f32 %v1510, 0.0
      %1561 = vst.msk [vmem:[#allocation2 + $0x1] sm:$0xff] %vm762, %v1529
      %1562 = vst.msk [vmem:[#allocation2 + $0x9] sm:$0xff] %vm762, %v1530
      %1563 = vst.msk [vmem:[#allocation2 + $0x11] sm:$0xff] %vm762, %v1531
      %1564 = vst.msk [vmem:[#allocation2 + $0x19] sm:$0xff] %vm762, %v1532
      %1565 = vst.msk [vmem:[#allocation2 + $0x21] sm:$0xff] %vm762, %v1533
      %1566 = vst.msk [vmem:[#allocation2 + $0x29] sm:$0xff] %vm762, %v1534
      %1567 = vst.msk [vmem:[#allocation2 + $0x31] sm:$0xff] %vm762, %v1535
      %1568 = vst.msk [vmem:[#allocation2 + $0x39] sm:$0xff] %vm762, %v1536
      %1569 = vst.msk [vmem:[#allocation2 + $0x49] sm:$0xff] %vm762, %v1537
      %1570 = vst.msk [vmem:[#allocation2 + $0x51] sm:$0xff] %vm762, %v1538
      %1571 = vst.msk [vmem:[#allocation2 + $0x59] sm:$0xff] %vm762, %v1539
      %1572 = vst.msk [vmem:[#allocation2 + $0x61] sm:$0xff] %vm762, %v1540
      %1573 = vst.msk [vmem:[#allocation2 + $0x69] sm:$0xff] %vm762, %v1541
      %1574 = vst.msk [vmem:[#allocation2 + $0x71] sm:$0xff] %vm762, %v1542
      %1575 = vst.msk [vmem:[#allocation2 + $0x79] sm:$0xff] %vm762, %v1543
      %1576 = vst.msk [vmem:[#allocation2 + $0x81] sm:$0xff] %vm762, %v1544
      %v1577 = vld [vmem:[#allocation2] sm:$0xff]
      %v1578 = vld [vmem:[#allocation2 + $0x8] sm:$0xff]
      %v1579 = vld [vmem:[#allocation2 + $0x10] sm:$0xff]
      %v1580 = vld [vmem:[#allocation2 + $0x18] sm:$0xff]
      %v1581 = vld [vmem:[#allocation2 + $0x20] sm:$0xff]
      %v1582 = vld [vmem:[#allocation2 + $0x28] sm:$0xff]
      %v1583 = vld [vmem:[#allocation2 + $0x30] sm:$0xff]
      %v1584 = vld [vmem:[#allocation2 + $0x38] sm:$0xff]
      %v1585 = vld [vmem:[#allocation2 + $0x48] sm:$0xff]
      %v1586 = vld [vmem:[#allocation2 + $0x50] sm:$0xff]
      %v1587 = vld [vmem:[#allocation2 + $0x58] sm:$0xff]
      %v1588 = vld [vmem:[#allocation2 + $0x60] sm:$0xff]
      %v1589 = vld [vmem:[#allocation2 + $0x68] sm:$0xff]
      %v1590 = vld [vmem:[#allocation2 + $0x70] sm:$0xff]
      %v1591 = vld [vmem:[#allocation2 + $0x78] sm:$0xff]
      %v1592 = vld [vmem:[#allocation2 + $0x80] sm:$0xff]
      %v1593 = vld [vmem:[#allocation2 + $0x1] sm:$0xff]
      %v1594 = vld [vmem:[#allocation2 + $0x9] sm:$0xff]
      %v1595 = vld [vmem:[#allocation2 + $0x11] sm:$0xff]
      %v1596 = vld [vmem:[#allocation2 + $0x19] sm:$0xff]
      %v1597 = vld [vmem:[#allocation2 + $0x21] sm:$0xff]
      %v1598 = vld [vmem:[#allocation2 + $0x29] sm:$0xff]
      %v1599 = vld [vmem:[#allocation2 + $0x31] sm:$0xff]
      %v1600 = vld [vmem:[#allocation2 + $0x39] sm:$0xff]
      %v1601 = vld [vmem:[#allocation2 + $0x49] sm:$0xff]
      %v1602 = vld [vmem:[#allocation2 + $0x51] sm:$0xff]
      %v1603 = vld [vmem:[#allocation2 + $0x59] sm:$0xff]
      %v1604 = vld [vmem:[#allocation2 + $0x61] sm:$0xff]
      %v1605 = vld [vmem:[#allocation2 + $0x69] sm:$0xff]
      %v1606 = vld [vmem:[#allocation2 + $0x71] sm:$0xff]
      %v1607 = vld [vmem:[#allocation2 + $0x79] sm:$0xff]
      %v1608 = vld [vmem:[#allocation2 + $0x81] sm:$0xff]
      %v1609 = vld [vmem:[#allocation2 + $0x2] sm:$0xff]
      %v1610 = vld [vmem:[#allocation2 + $0xa] sm:$0xff]
      %v1611 = vld [vmem:[#allocation2 + $0x12] sm:$0xff]
      %v1612 = vld [vmem:[#allocation2 + $0x1a] sm:$0xff]
      %v1613 = vld [vmem:[#allocation2 + $0x22] sm:$0xff]
      %v1614 = vld [vmem:[#allocation2 + $0x2a] sm:$0xff]
      %v1615 = vld [vmem:[#allocation2 + $0x32] sm:$0xff]
      %v1616 = vld [vmem:[#allocation2 + $0x3a] sm:$0xff]
      %v1617 = vld [vmem:[#allocation2 + $0x4a] sm:$0xff]
      %v1618 = vld [vmem:[#allocation2 + $0x52] sm:$0xff]
      %v1619 = vld [vmem:[#allocation2 + $0x5a] sm:$0xff]
      %v1620 = vld [vmem:[#allocation2 + $0x62] sm:$0xff]
      %v1621 = vld [vmem:[#allocation2 + $0x6a] sm:$0xff]
      %v1622 = vld [vmem:[#allocation2 + $0x72] sm:$0xff]
      %v1623 = vld [vmem:[#allocation2 + $0x7a] sm:$0xff]
      %v1624 = vld [vmem:[#allocation2 + $0x82] sm:$0xff]
      %1641 = vrot.lane.b32.xlu0 %v1593, 32
      %v1642 = vpop.permute.xlu0 %1641
      %1643 = vrot.lane.b32.xlu0 %v1594, 32
      %v1644 = vpop.permute.xlu0 %1643
      %1645 = vrot.lane.b32.xlu0 %v1595, 32
      %v1646 = vpop.permute.xlu0 %1645
      %1647 = vrot.lane.b32.xlu0 %v1596, 32
      %v1648 = vpop.permute.xlu0 %1647
      %1649 = vrot.lane.b32.xlu0 %v1597, 32
      %v1650 = vpop.permute.xlu0 %1649
      %1651 = vrot.lane.b32.xlu0 %v1598, 32
      %v1652 = vpop.permute.xlu0 %1651
      %1653 = vrot.lane.b32.xlu0 %v1599, 32
      %v1654 = vpop.permute.xlu0 %1653
      %1655 = vrot.lane.b32.xlu0 %v1600, 32
      %v1656 = vpop.permute.xlu0 %1655
      %1657 = vrot.lane.b32.xlu0 %v1601, 32
      %v1658 = vpop.permute.xlu0 %1657
      %1659 = vrot.lane.b32.xlu0 %v1602, 32
      %v1660 = vpop.permute.xlu0 %1659
      %1661 = vrot.lane.b32.xlu0 %v1603, 32
      %v1662 = vpop.permute.xlu0 %1661
      %1663 = vrot.lane.b32.xlu0 %v1604, 32
      %v1664 = vpop.permute.xlu0 %1663
      %1665 = vrot.lane.b32.xlu0 %v1605, 32
      %v1666 = vpop.permute.xlu0 %1665
      %1667 = vrot.lane.b32.xlu0 %v1606, 32
      %v1668 = vpop.permute.xlu0 %1667
      %1669 = vrot.lane.b32.xlu0 %v1607, 32
      %v1670 = vpop.permute.xlu0 %1669
      %1671 = vrot.lane.b32.xlu0 %v1608, 32
      %v1672 = vpop.permute.xlu0 %1671
      %1705 = vrot.lane.b32.xlu0 %v1609, 64
      %v1706 = vpop.permute.xlu0 %1705
      %1707 = vrot.lane.b32.xlu0 %v1610, 64
      %v1708 = vpop.permute.xlu0 %1707
      %1709 = vrot.lane.b32.xlu0 %v1611, 64
      %v1710 = vpop.permute.xlu0 %1709
      %1711 = vrot.lane.b32.xlu0 %v1612, 64
      %v1712 = vpop.permute.xlu0 %1711
      %1713 = vrot.lane.b32.xlu0 %v1613, 64
      %v1714 = vpop.permute.xlu0 %1713
      %1715 = vrot.lane.b32.xlu0 %v1614, 64
      %v1716 = vpop.permute.xlu0 %1715
      %1717 = vrot.lane.b32.xlu0 %v1615, 64
      %v1718 = vpop.permute.xlu0 %1717
      %1719 = vrot.lane.b32.xlu0 %v1616, 64
      %v1720 = vpop.permute.xlu0 %1719
      %1721 = vrot.lane.b32.xlu0 %v1617, 64
      %v1722 = vpop.permute.xlu0 %1721
      %1723 = vrot.lane.b32.xlu0 %v1618, 64
      %v1724 = vpop.permute.xlu0 %1723
      %1725 = vrot.lane.b32.xlu0 %v1619, 64
      %v1726 = vpop.permute.xlu0 %1725
      %1727 = vrot.lane.b32.xlu0 %v1620, 64
      %v1728 = vpop.permute.xlu0 %1727
      %1729 = vrot.lane.b32.xlu0 %v1621, 64
      %v1730 = vpop.permute.xlu0 %1729
      %1731 = vrot.lane.b32.xlu0 %v1622, 64
      %v1732 = vpop.permute.xlu0 %1731
      %1733 = vrot.lane.b32.xlu0 %v1623, 64
      %v1734 = vpop.permute.xlu0 %1733
      %1735 = vrot.lane.b32.xlu0 %v1624, 64
      %v1736 = vpop.permute.xlu0 %1735
      %v1753 = vsel %vm762, %v1577, %v1642
      %v1754 = vsel %vm762, %v1578, %v1644
      %v1755 = vsel %vm762, %v1579, %v1646
      %v1756 = vsel %vm762, %v1580, %v1648
      %v1757 = vsel %vm762, %v1581, %v1650
      %v1758 = vsel %vm762, %v1582, %v1652
      %v1759 = vsel %vm762, %v1583, %v1654
      %v1760 = vsel %vm762, %v1584, %v1656
      %v1761 = vsel %vm762, %v1585, %v1658
      %v1762 = vsel %vm762, %v1586, %v1660
      %v1763 = vsel %vm762, %v1587, %v1662
      %v1764 = vsel %vm762, %v1588, %v1664
      %v1765 = vsel %vm762, %v1589, %v1666
      %v1766 = vsel %vm762, %v1590, %v1668
      %v1767 = vsel %vm762, %v1591, %v1670
      %v1768 = vsel %vm762, %v1592, %v1672
      %v1769 = vsel %vm971, %v1753, %v1706
      %v1770 = vsel %vm971, %v1754, %v1708
      %v1771 = vsel %vm971, %v1755, %v1710
      %v1772 = vsel %vm971, %v1756, %v1712
      %v1773 = vsel %vm971, %v1757, %v1714
      %v1774 = vsel %vm971, %v1758, %v1716
      %v1775 = vsel %vm971, %v1759, %v1718
      %v1776 = vsel %vm971, %v1760, %v1720
      %v1777 = vsel %vm971, %v1761, %v1722
      %v1778 = vsel %vm971, %v1762, %v1724
      %v1779 = vsel %vm971, %v1763, %v1726
      %v1780 = vsel %vm971, %v1764, %v1728
      %v1781 = vsel %vm971, %v1765, %v1730
      %v1782 = vsel %vm971, %v1766, %v1732
      %v1783 = vsel %vm971, %v1767, %v1734
      %v1784 = vsel %vm971, %v1768, %v1736
      %v1785 = vpack.c.bf16 %v1770, %v1769
      %v1786 = vpack.c.bf16 %v1772, %v1771
      %v1787 = vpack.c.bf16 %v1774, %v1773
      %v1788 = vpack.c.bf16 %v1776, %v1775
      %v1789 = vpack.c.bf16 %v1778, %v1777
      %v1790 = vpack.c.bf16 %v1780, %v1779
      %v1791 = vpack.c.bf16 %v1782, %v1781
      %v1792 = vpack.c.bf16 %v1784, %v1783
      %s1793 = scalar_lea.vmem %s4, 48
      %v1794 = vld [vmem:[%s1793] sm:$0xf]
      %v1795 = vld [vmem:[%s1793 + $0x4] sm:$0xf]
      %v1796 = vld [vmem:[%s1793 + $0x8] sm:$0xf]
      %v1797 = vld [vmem:[%s1793 + $0xc] sm:$0xf]
      %v1798 = vld [vmem:[%s1793 + $0x10] sm:$0xf]
      %v1799 = vld [vmem:[%s1793 + $0x14] sm:$0xf]
      %v1800 = vld [vmem:[%s1793 + $0x18] sm:$0xf]
      %v1801 = vld [vmem:[%s1793 + $0x1c] sm:$0xf]
      %v1802 = vld [vmem:[%s1793 + $0x20] sm:$0xf]
      %v1803 = vld [vmem:[%s1793 + $0x24] sm:$0xf]
      %v1804 = vld [vmem:[%s1793 + $0x28] sm:$0xf]
      %v1805 = vld [vmem:[%s1793 + $0x2c] sm:$0xf]
      %v1806 = vld [vmem:[%s5 + $0x1] sm:$0x1]
      %v1807 = vlaneseq
      %v1808 = vshrl.u32 %v1807, 7
      %v1809 = vsub.s32 0, %v1808
      %v1810 = vrot.slane %v1806, %v1809
      %v1823 = vunpack.c.l.b16 %v1794
      %v1824 = vunpack.c.l.b16 %v1795
      %v1825 = vunpack.c.l.b16 %v1796
      %v1826 = vunpack.c.l.b16 %v1797
      %v1827 = vunpack.c.l.b16 %v1798
      %v1828 = vunpack.c.l.b16 %v1799
      %v1829 = vunpack.c.l.b16 %v1800
      %v1830 = vunpack.c.l.b16 %v1801
      %v1831 = vunpack.c.l.b16 %v1802
      %v1832 = vunpack.c.l.b16 %v1803
      %v1833 = vunpack.c.l.b16 %v1804
      %v1834 = vunpack.c.l.b16 %v1805
      %v1835 = vpack.c.b16 %v1824, %v1823
      %v1836 = vpack.c.b16 %v1826, %v1825
      %v1837 = vpack.c.b16 %v1828, %v1827
      %v1838 = vpack.c.b16 %v1830, %v1829
      %v1839 = vpack.c.b16 %v1832, %v1831
      %v1840 = vpack.c.b16 %v1834, %v1833
      %v1848 = vsel %vm1049, %v1785, 0
      %v1851 = vsel %vm1049, %v1786, 0
      %v1854 = vsel %vm1049, %v1787, 0
      %v1857 = vsel %vm1049, %v1788, 0
      %v1860 = vsel %vm1049, %v1789, 0
      %v1863 = vsel %vm1049, %v1790, 0
      %v1866 = vsel %vm1049, %v1791, 0
      %v1869 = vsel %vm1049, %v1792, 0
      %1871 = vmatprep.subr.bf16.mxu0 0
      %1872 = vmatpush1.bf16.msra.mxu0 %v1835
      %1873 = vmatprep.subr.bf16.mxu0 0
      %1874 = vmatpush1.bf16.msra.mxu0 %v1836
      %1875 = vmatprep.subr.bf16.mxu0 0
      %1876 = vmatpush1.bf16.msra.mxu0 %v1837
      %1877 = vmatprep.subr.bf16.mxu0 0
      %1878 = vmatpush1.bf16.msra.mxu0 %v1838
      %1879 = vmatprep.subr.bf16.mxu0 0
      %1880 = vmatpush1.bf16.msra.mxu0 %v1839
      %1881 = vmatprep.subr.bf16.mxu0 0
      %1882 = vmatpush1.bf16.msra.mxu0 %v1840
      %1883 = vmatprep.subr.bf16.mxu0 0
      %1884 = vmatpush1.bf16.msra.mxu0 0
      %1885 = vmatprep.subr.bf16.mxu0 0
      %1886 = vmatpush1.bf16.msra.mxu0 0
      %1887 = vmatprep.subr.bf16.mxu0 0
      %1888 = vmatpush1.bf16.msra.mxu0 0
      %1889 = vmatprep.subr.bf16.mxu0 0
      %1890 = vmatpush1.bf16.msra.mxu0 0
      %1891 = vmatprep.subr.bf16.mxu0 0
      %1892 = vmatpush1.bf16.msra.mxu0 0
      %1893 = vmatprep.subr.bf16.mxu0 0
      %1894 = vmatpush1.bf16.msra.mxu0 0
      %1895 = vmatprep.subr.bf16.mxu0 0
      %1896 = vmatpush1.bf16.msra.mxu0 0
      %1897 = vmatprep.subr.bf16.mxu0 0
      %1898 = vmatpush1.bf16.msra.mxu0 0
      %1899 = vmatprep.subr.bf16.mxu0 0
      %1900 = vmatpush1.bf16.msra.mxu0 0
      %1901 = vmatprep.subr.bf16.mxu0 0
      %1902 = vmatpush1.bf16.msra.mxu0 0
      %1903 = vmatprep.mubr.bf16.mxu0 0
      %1904 = vmatmul.mubr.bf16.gmra.mrb[0].mxu0 %v1848
      %v1905 = vpop.f32.mrb[0].mxu0
      %v1906 = vadd.f32 %v1810, %v1905
      %v1907 = vpop.f32.mrb[0].mxu0
      %v1908 = vpop.f32.mrb[0].mxu0
      %v1909 = vadd.f32 %v1810, %v1908
      %v1910 = vpop.f32.mrb[0].mxu0
      %1911 = vmatprep.mubr.bf16.mxu0 0
      %1912 = vmatmul.mubr.bf16.gmra.mrb[0].mxu0 %v1851
      %v1913 = vpop.f32.mrb[0].mxu0
      %v1914 = vadd.f32 %v1810, %v1913
      %v1915 = vpop.f32.mrb[0].mxu0
      %v1916 = vpop.f32.mrb[0].mxu0
      %v1917 = vadd.f32 %v1810, %v1916
      %v1918 = vpop.f32.mrb[0].mxu0
      %1919 = vmatprep.mubr.bf16.mxu0 0
      %1920 = vmatmul.mubr.bf16.gmra.mrb[0].mxu0 %v1854
      %v1921 = vpop.f32.mrb[0].mxu0
      %v1922 = vadd.f32 %v1810, %v1921
      %v1923 = vpop.f32.mrb[0].mxu0
      %v1924 = vpop.f32.mrb[0].mxu0
      %v1925 = vadd.f32 %v1810, %v1924
      %v1926 = vpop.f32.mrb[0].mxu0
      %1927 = vmatprep.mubr.bf16.mxu0 0
      %1928 = vmatmul.mubr.bf16.gmra.mrb[0].mxu0 %v1857
      %v1929 = vpop.f32.mrb[0].mxu0
      %v1930 = vadd.f32 %v1810, %v1929
      %v1931 = vpop.f32.mrb[0].mxu0
      %v1932 = vpop.f32.mrb[0].mxu0
      %v1933 = vadd.f32 %v1810, %v1932
      %v1934 = vpop.f32.mrb[0].mxu0
      %1935 = vmatprep.mubr.bf16.mxu0 0
      %1936 = vmatmul.mubr.bf16.gmra.mrb[0].mxu0 %v1860
      %v1937 = vpop.f32.mrb[0].mxu0
      %v1938 = vadd.f32 %v1810, %v1937
      %v1939 = vpop.f32.mrb[0].mxu0
      %v1940 = vpop.f32.mrb[0].mxu0
      %v1941 = vadd.f32 %v1810, %v1940
      %v1942 = vpop.f32.mrb[0].mxu0
      %1943 = vmatprep.mubr.bf16.mxu0 0
      %1944 = vmatmul.mubr.bf16.gmra.mrb[0].mxu0 %v1863
      %v1945 = vpop.f32.mrb[0].mxu0
      %v1946 = vadd.f32 %v1810, %v1945
      %v1947 = vpop.f32.mrb[0].mxu0
      %v1948 = vpop.f32.mrb[0].mxu0
      %v1949 = vadd.f32 %v1810, %v1948
      %v1950 = vpop.f32.mrb[0].mxu0
      %1951 = vmatprep.mubr.bf16.mxu0 0
      %1952 = vmatmul.mubr.bf16.gmra.mrb[0].mxu0 %v1866
      %v1953 = vpop.f32.mrb[0].mxu0
      %v1954 = vadd.f32 %v1810, %v1953
      %v1955 = vpop.f32.mrb[0].mxu0
      %v1956 = vpop.f32.mrb[0].mxu0
      %v1957 = vadd.f32 %v1810, %v1956
      %v1958 = vpop.f32.mrb[0].mxu0
      %1959 = vmatprep.mubr.bf16.mxu0 0
      %1960 = vmatmul.mubr.bf16.gmra.mrb[0].mxu0 %v1869
      %v1961 = vpop.f32.mrb[0].mxu0
      %v1962 = vadd.f32 %v1810, %v1961
      %v1963 = vpop.f32.mrb[0].mxu0
      %v1964 = vpop.f32.mrb[0].mxu0
      %v1965 = vadd.f32 %v1810, %v1964
      %v1966 = vpop.f32.mrb[0].mxu0
      %1967 = vdwg.mxu0
      %v1968 = vtanh.pop %v1906
      %v1969 = vtanh.pop %v1909
      %v1970 = vtanh.pop %v1914
      %v1971 = vtanh.pop %v1917
      %v1972 = vtanh.pop %v1922
      %v1973 = vtanh.pop %v1925
      %v1974 = vtanh.pop %v1930
      %v1975 = vtanh.pop %v1933
      %v1976 = vtanh.pop %v1938
      %v1977 = vtanh.pop %v1941
      %v1978 = vtanh.pop %v1946
      %v1979 = vtanh.pop %v1949
      %v1980 = vtanh.pop %v1954
      %v1981 = vtanh.pop %v1957
      %v1982 = vtanh.pop %v1962
      %v1983 = vtanh.pop %v1965
      %v1984 = vxor.u32 %v1906, 2147483648
      %v1985 = vxor.u32 %v1909, 2147483648
      %v1986 = vxor.u32 %v1914, 2147483648
      %v1987 = vxor.u32 %v1917, 2147483648
      %v1988 = vxor.u32 %v1922, 2147483648
      %v1989 = vxor.u32 %v1925, 2147483648
      %v1990 = vxor.u32 %v1930, 2147483648
      %v1991 = vxor.u32 %v1933, 2147483648
      %v1992 = vxor.u32 %v1938, 2147483648
      %v1993 = vxor.u32 %v1941, 2147483648
      %v1994 = vxor.u32 %v1946, 2147483648
      %v1995 = vxor.u32 %v1949, 2147483648
      %v1996 = vxor.u32 %v1954, 2147483648
      %v1997 = vxor.u32 %v1957, 2147483648
      %v1998 = vxor.u32 %v1962, 2147483648
      %v1999 = vxor.u32 %v1965, 2147483648
      %v2000 = vmul.f32 %v1984, 1.442695
      %v2001 = vpow.pop %v2000
      %v2002 = vmul.f32 %v1985, 1.442695
      %v2003 = vpow.pop %v2002
      %v2004 = vmul.f32 %v1986, 1.442695
      %v2005 = vpow.pop %v2004
      %v2006 = vmul.f32 %v1987, 1.442695
      %v2007 = vpow.pop %v2006
      %v2008 = vmul.f32 %v1988, 1.442695
      %v2009 = vpow.pop %v2008
      %v2010 = vmul.f32 %v1989, 1.442695
      %v2011 = vpow.pop %v2010
      %v2012 = vmul.f32 %v1990, 1.442695
      %v2013 = vpow.pop %v2012
      %v2014 = vmul.f32 %v1991, 1.442695
      %v2015 = vpow.pop %v2014
      %v2016 = vmul.f32 %v1992, 1.442695
      %v2017 = vpow.pop %v2016
      %v2018 = vmul.f32 %v1993, 1.442695
      %v2019 = vpow.pop %v2018
      %v2020 = vmul.f32 %v1994, 1.442695
      %v2021 = vpow.pop %v2020
      %v2022 = vmul.f32 %v1995, 1.442695
      %v2023 = vpow.pop %v2022
      %v2024 = vmul.f32 %v1996, 1.442695
      %v2025 = vpow.pop %v2024
      %v2026 = vmul.f32 %v1997, 1.442695
      %v2027 = vpow.pop %v2026
      %v2028 = vmul.f32 %v1998, 1.442695
      %v2029 = vpow.pop %v2028
      %v2030 = vmul.f32 %v1999, 1.442695
      %v2031 = vpow.pop %v2030
      %v2032 = vadd.f32 %v2001, 1.0
      %v2033 = vadd.f32 %v2003, 1.0
      %v2034 = vadd.f32 %v2005, 1.0
      %v2035 = vadd.f32 %v2007, 1.0
      %v2036 = vadd.f32 %v2009, 1.0
      %v2037 = vadd.f32 %v2011, 1.0
      %v2038 = vadd.f32 %v2013, 1.0
      %v2039 = vadd.f32 %v2015, 1.0
      %v2040 = vadd.f32 %v2017, 1.0
      %v2041 = vadd.f32 %v2019, 1.0
      %v2042 = vadd.f32 %v2021, 1.0
      %v2043 = vadd.f32 %v2023, 1.0
      %v2044 = vadd.f32 %v2025, 1.0
      %v2045 = vadd.f32 %v2027, 1.0
      %v2046 = vadd.f32 %v2029, 1.0
      %v2047 = vadd.f32 %v2031, 1.0
      %v2048 = vrcp.pop %v2032
      %v2049 = vmul.f32 1.0, %v2048
      %v2050 = vrcp.pop %v2033
      %v2051 = vmul.f32 1.0, %v2050
      %v2052 = vrcp.pop %v2034
      %v2053 = vmul.f32 1.0, %v2052
      %v2054 = vrcp.pop %v2035
      %v2055 = vmul.f32 1.0, %v2054
      %v2056 = vrcp.pop %v2036
      %v2057 = vmul.f32 1.0, %v2056
      %v2058 = vrcp.pop %v2037
      %v2059 = vmul.f32 1.0, %v2058
      %v2060 = vrcp.pop %v2038
      %v2061 = vmul.f32 1.0, %v2060
      %v2062 = vrcp.pop %v2039
      %v2063 = vmul.f32 1.0, %v2062
      %v2064 = vrcp.pop %v2040
      %v2065 = vmul.f32 1.0, %v2064
      %v2066 = vrcp.pop %v2041
      %v2067 = vmul.f32 1.0, %v2066
      %v2068 = vrcp.pop %v2042
      %v2069 = vmul.f32 1.0, %v2068
      %v2070 = vrcp.pop %v2043
      %v2071 = vmul.f32 1.0, %v2070
      %v2072 = vrcp.pop %v2044
      %v2073 = vmul.f32 1.0, %v2072
      %v2074 = vrcp.pop %v2045
      %v2075 = vmul.f32 1.0, %v2074
      %v2076 = vrcp.pop %v2046
      %v2077 = vmul.f32 1.0, %v2076
      %v2078 = vrcp.pop %v2047
      %v2079 = vmul.f32 1.0, %v2078
      %2096 = vrot.lane.b32.xlu0 %v2049, 96
      %v2097 = vpop.permute.xlu0 %2096
      %2098 = vrot.lane.b32.xlu0 %v2051, 96
      %v2099 = vpop.permute.xlu0 %2098
      %2100 = vrot.lane.b32.xlu0 %v2053, 96
      %v2101 = vpop.permute.xlu0 %2100
      %2102 = vrot.lane.b32.xlu0 %v2055, 96
      %v2103 = vpop.permute.xlu0 %2102
      %2104 = vrot.lane.b32.xlu0 %v2057, 96
      %v2105 = vpop.permute.xlu0 %2104
      %2106 = vrot.lane.b32.xlu0 %v2059, 96
      %v2107 = vpop.permute.xlu0 %2106
      %2108 = vrot.lane.b32.xlu0 %v2061, 96
      %v2109 = vpop.permute.xlu0 %2108
      %2110 = vrot.lane.b32.xlu0 %v2063, 96
      %v2111 = vpop.permute.xlu0 %2110
      %2112 = vrot.lane.b32.xlu0 %v2065, 96
      %v2113 = vpop.permute.xlu0 %2112
      %2114 = vrot.lane.b32.xlu0 %v2067, 96
      %v2115 = vpop.permute.xlu0 %2114
      %2116 = vrot.lane.b32.xlu0 %v2069, 96
      %v2117 = vpop.permute.xlu0 %2116
      %2118 = vrot.lane.b32.xlu0 %v2071, 96
      %v2119 = vpop.permute.xlu0 %2118
      %2120 = vrot.lane.b32.xlu0 %v2073, 96
      %v2121 = vpop.permute.xlu0 %2120
      %2122 = vrot.lane.b32.xlu0 %v2075, 96
      %v2123 = vpop.permute.xlu0 %2122
      %2124 = vrot.lane.b32.xlu0 %v2077, 96
      %v2125 = vpop.permute.xlu0 %2124
      %2126 = vrot.lane.b32.xlu0 %v2079, 96
      %v2127 = vpop.permute.xlu0 %2126
      %v2144 = vmul.f32 %v1968, %v2097
      %v2145 = vmul.f32 %v1969, %v2099
      %v2146 = vmul.f32 %v1970, %v2101
      %v2147 = vmul.f32 %v1971, %v2103
      %v2148 = vmul.f32 %v1972, %v2105
      %v2149 = vmul.f32 %v1973, %v2107
      %v2150 = vmul.f32 %v1974, %v2109
      %v2151 = vmul.f32 %v1975, %v2111
      %v2152 = vmul.f32 %v1976, %v2113
      %v2153 = vmul.f32 %v1977, %v2115
      %v2154 = vmul.f32 %v1978, %v2117
      %v2155 = vmul.f32 %v1979, %v2119
      %v2156 = vmul.f32 %v1980, %v2121
      %v2157 = vmul.f32 %v1981, %v2123
      %v2158 = vmul.f32 %v1982, %v2125
      %v2159 = vmul.f32 %v1983, %v2127
      %v2160 = vpack.c.bf16 %v2145, %v2144
      %v2161 = vpack.c.bf16 %v2147, %v2146
      %v2162 = vpack.c.bf16 %v2149, %v2148
      %v2163 = vpack.c.bf16 %v2151, %v2150
      %v2164 = vpack.c.bf16 %v2153, %v2152
      %v2165 = vpack.c.bf16 %v2155, %v2154
      %v2166 = vpack.c.bf16 %v2157, %v2156
      %v2167 = vpack.c.bf16 %v2159, %v2158
      %s2168 = scalar_lea.vmem %s6, 16
      %v2169 = vld [vmem:[%s2168] sm:$0xf]
      %v2170 = vld [vmem:[%s2168 + $0x4] sm:$0xf]
      %v2171 = vld [vmem:[%s2168 + $0x8] sm:$0xf]
      %v2172 = vld [vmem:[%s2168 + $0xc] sm:$0xf]
      %v2173 = vld [vmem:[%s7 + $0x1] sm:$0x1]
      %v2174 = vlaneseq
      %v2175 = vshrl.u32 %v2174, 7
      %v2176 = vsub.s32 0, %v2175
      %v2177 = vrot.slane %v2173, %v2176
      %v2182 = vunpack.c.l.b16 %v2169
      %v2183 = vunpack.c.l.b16 %v2170
      %v2184 = vunpack.c.l.b16 %v2171
      %v2185 = vunpack.c.l.b16 %v2172
      %v2186 = vpack.c.b16 %v2183, %v2182
      %v2187 = vpack.c.b16 %v2185, %v2184
      %v2191 = vsel %vm762, %v2160, 0
      %v2194 = vsel %vm762, %v2161, 0
      %v2197 = vsel %vm762, %v2162, 0
      %v2200 = vsel %vm762, %v2163, 0
      %v2203 = vsel %vm762, %v2164, 0
      %v2206 = vsel %vm762, %v2165, 0
      %v2209 = vsel %vm762, %v2166, 0
      %v2212 = vsel %vm762, %v2167, 0
      %2214 = vmatprep.subr.bf16.mxu0 0
      %2215 = vmatpush1.bf16.msra.mxu0 %v2186
      %2216 = vmatprep.subr.bf16.mxu0 0
      %2217 = vmatpush1.bf16.msra.mxu0 %v2187
      %2218 = vmatprep.subr.bf16.mxu0 0
      %2219 = vmatpush1.bf16.msra.mxu0 0
      %2220 = vmatprep.subr.bf16.mxu0 0
      %2221 = vmatpush1.bf16.msra.mxu0 0
      %2222 = vmatprep.subr.bf16.mxu0 0
      %2223 = vmatpush1.bf16.msra.mxu0 0
      %2224 = vmatprep.subr.bf16.mxu0 0
      %2225 = vmatpush1.bf16.msra.mxu0 0
      %2226 = vmatprep.subr.bf16.mxu0 0
      %2227 = vmatpush1.bf16.msra.mxu0 0
      %2228 = vmatprep.subr.bf16.mxu0 0
      %2229 = vmatpush1.bf16.msra.mxu0 0
      %2230 = vmatprep.subr.bf16.mxu0 0
      %2231 = vmatpush1.bf16.msra.mxu0 0
      %2232 = vmatprep.subr.bf16.mxu0 0
      %2233 = vmatpush1.bf16.msra.mxu0 0
      %2234 = vmatprep.subr.bf16.mxu0 0
      %2235 = vmatpush1.bf16.msra.mxu0 0
      %2236 = vmatprep.subr.bf16.mxu0 0
      %2237 = vmatpush1.bf16.msra.mxu0 0
      %2238 = vmatprep.subr.bf16.mxu0 0
      %2239 = vmatpush1.bf16.msra.mxu0 0
      %2240 = vmatprep.subr.bf16.mxu0 0
      %2241 = vmatpush1.bf16.msra.mxu0 0
      %2242 = vmatprep.subr.bf16.mxu0 0
      %2243 = vmatpush1.bf16.msra.mxu0 0
      %2244 = vmatprep.subr.bf16.mxu0 0
      %2245 = vmatpush1.bf16.msra.mxu0 0
      %2246 = vmatprep.mubr.bf16.mxu0 0
      %2247 = vmatmul.mubr.bf16.gmra.mrb[0].mxu0 %v2191
      %v2248 = vpop.f32.mrb[0].mxu0
      %v2249 = vadd.f32 %v2177, %v2248
      %v2250 = vpop.f32.mrb[0].mxu0
      %v2251 = vpop.f32.mrb[0].mxu0
      %v2252 = vadd.f32 %v2177, %v2251
      %v2253 = vpop.f32.mrb[0].mxu0
      %2254 = vmatprep.mubr.bf16.mxu0 0
      %2255 = vmatmul.mubr.bf16.gmra.mrb[0].mxu0 %v2194
      %v2256 = vpop.f32.mrb[0].mxu0
      %v2257 = vadd.f32 %v2177, %v2256
      %v2258 = vpop.f32.mrb[0].mxu0
      %v2259 = vpop.f32.mrb[0].mxu0
      %v2260 = vadd.f32 %v2177, %v2259
      %v2261 = vpop.f32.mrb[0].mxu0
      %2262 = vmatprep.mubr.bf16.mxu0 0
      %2263 = vmatmul.mubr.bf16.gmra.mrb[0].mxu0 %v2197
      %v2264 = vpop.f32.mrb[0].mxu0
      %v2265 = vadd.f32 %v2177, %v2264
      %v2266 = vpop.f32.mrb[0].mxu0
      %v2267 = vpop.f32.mrb[0].mxu0
      %v2268 = vadd.f32 %v2177, %v2267
      %v2269 = vpop.f32.mrb[0].mxu0
      %2270 = vmatprep.mubr.bf16.mxu0 0
      %2271 = vmatmul.mubr.bf16.gmra.mrb[0].mxu0 %v2200
      %v2272 = vpop.f32.mrb[0].mxu0
      %v2273 = vadd.f32 %v2177, %v2272
      %v2274 = vpop.f32.mrb[0].mxu0
      %v2275 = vpop.f32.mrb[0].mxu0
      %v2276 = vadd.f32 %v2177, %v2275
      %v2277 = vpop.f32.mrb[0].mxu0
      %2278 = vmatprep.mubr.bf16.mxu0 0
      %2279 = vmatmul.mubr.bf16.gmra.mrb[0].mxu0 %v2203
      %v2280 = vpop.f32.mrb[0].mxu0
      %v2281 = vadd.f32 %v2177, %v2280
      %v2282 = vpop.f32.mrb[0].mxu0
      %v2283 = vpop.f32.mrb[0].mxu0
      %v2284 = vadd.f32 %v2177, %v2283
      %v2285 = vpop.f32.mrb[0].mxu0
      %2286 = vmatprep.mubr.bf16.mxu0 0
      %2287 = vmatmul.mubr.bf16.gmra.mrb[0].mxu0 %v2206
      %v2288 = vpop.f32.mrb[0].mxu0
      %v2289 = vadd.f32 %v2177, %v2288
      %v2290 = vpop.f32.mrb[0].mxu0
      %v2291 = vpop.f32.mrb[0].mxu0
      %v2292 = vadd.f32 %v2177, %v2291
      %v2293 = vpop.f32.mrb[0].mxu0
      %2294 = vmatprep.mubr.bf16.mxu0 0
      %2295 = vmatmul.mubr.bf16.gmra.mrb[0].mxu0 %v2209
      %v2296 = vpop.f32.mrb[0].mxu0
      %v2297 = vadd.f32 %v2177, %v2296
      %v2298 = vpop.f32.mrb[0].mxu0
      %v2299 = vpop.f32.mrb[0].mxu0
      %v2300 = vadd.f32 %v2177, %v2299
      %v2301 = vpop.f32.mrb[0].mxu0
      %2302 = vmatprep.mubr.bf16.mxu0 0
      %2303 = vmatmul.mubr.bf16.gmra.mrb[0].mxu0 %v2212
      %v2304 = vpop.f32.mrb[0].mxu0
      %v2305 = vadd.f32 %v2177, %v2304
      %v2306 = vpop.f32.mrb[0].mxu0
      %v2307 = vpop.f32.mrb[0].mxu0
      %v2308 = vadd.f32 %v2177, %v2307
      %v2309 = vpop.f32.mrb[0].mxu0
      %2310 = vdwg.mxu0
      %v2311 = vadd.f32 %v1529, %v2249
      %v2312 = vadd.f32 %v1530, %v2252
      %v2313 = vadd.f32 %v1531, %v2257
      %v2314 = vadd.f32 %v1532, %v2260
      %v2315 = vadd.f32 %v1533, %v2265
      %v2316 = vadd.f32 %v1534, %v2268
      %v2317 = vadd.f32 %v1535, %v2273
      %v2318 = vadd.f32 %v1536, %v2276
      %v2319 = vadd.f32 %v1537, %v2281
      %v2320 = vadd.f32 %v1538, %v2284
      %v2321 = vadd.f32 %v1539, %v2289
      %v2322 = vadd.f32 %v1540, %v2292
      %v2323 = vadd.f32 %v1541, %v2297
      %v2324 = vadd.f32 %v1542, %v2300
      %v2325 = vadd.f32 %v1543, %v2305
      %v2326 = vadd.f32 %v1544, %v2308
      %v2327 = vmul.f32 %v2311, %v527
      %v2328 = vmul.f32 %v2312, %v532
      %v2329 = vmul.f32 %v2313, %v537
      %v2330 = vmul.f32 %v2314, %v542
      %v2331 = vmul.f32 %v2315, %v547
      %v2332 = vmul.f32 %v2316, %v552
      %v2333 = vmul.f32 %v2317, %v557
      %v2334 = vmul.f32 %v2318, %v562
      %v2335 = vmul.f32 %v2319, %v567
      %v2336 = vmul.f32 %v2320, %v572
      %v2337 = vmul.f32 %v2321, %v577
      %v2338 = vmul.f32 %v2322, %v582
      %v2339 = vmul.f32 %v2323, %v587
      %v2340 = vmul.f32 %v2324, %v592
      %v2341 = vmul.f32 %v2325, %v597
      %v2342 = vmul.f32 %v2326, %v602
      %v2343 = vadd.f32 %v1545, %v2249
      %v2344 = vadd.f32 %v1546, %v2252
      %v2345 = vadd.f32 %v1547, %v2257
      %v2346 = vadd.f32 %v1548, %v2260
      %v2347 = vadd.f32 %v1549, %v2265
      %v2348 = vadd.f32 %v1550, %v2268
      %v2349 = vadd.f32 %v1551, %v2273
      %v2350 = vadd.f32 %v1552, %v2276
      %v2351 = vadd.f32 %v1553, %v2281
      %v2352 = vadd.f32 %v1554, %v2284
      %v2353 = vadd.f32 %v1555, %v2289
      %v2354 = vadd.f32 %v1556, %v2292
      %v2355 = vadd.f32 %v1557, %v2297
      %v2356 = vadd.f32 %v1558, %v2300
      %v2357 = vadd.f32 %v1559, %v2305
      %v2358 = vadd.f32 %v1560, %v2308
      %2359 = vst.msk [vmem:[#allocation2 + $0x1] sm:$0xff] %vm762, %v2327
      %2360 = vst.msk [vmem:[#allocation2 + $0x9] sm:$0xff] %vm762, %v2328
      %2361 = vst.msk [vmem:[#allocation2 + $0x11] sm:$0xff] %vm762, %v2329
      %2362 = vst.msk [vmem:[#allocation2 + $0x19] sm:$0xff] %vm762, %v2330
      %2363 = vst.msk [vmem:[#allocation2 + $0x21] sm:$0xff] %vm762, %v2331
      %2364 = vst.msk [vmem:[#allocation2 + $0x29] sm:$0xff] %vm762, %v2332
      %2365 = vst.msk [vmem:[#allocation2 + $0x31] sm:$0xff] %vm762, %v2333
      %2366 = vst.msk [vmem:[#allocation2 + $0x39] sm:$0xff] %vm762, %v2334
      %2367 = vst.msk [vmem:[#allocation2 + $0x49] sm:$0xff] %vm762, %v2335
      %2368 = vst.msk [vmem:[#allocation2 + $0x51] sm:$0xff] %vm762, %v2336
      %2369 = vst.msk [vmem:[#allocation2 + $0x59] sm:$0xff] %vm762, %v2337
      %2370 = vst.msk [vmem:[#allocation2 + $0x61] sm:$0xff] %vm762, %v2338
      %2371 = vst.msk [vmem:[#allocation2 + $0x69] sm:$0xff] %vm762, %v2339
      %2372 = vst.msk [vmem:[#allocation2 + $0x71] sm:$0xff] %vm762, %v2340
      %2373 = vst.msk [vmem:[#allocation2 + $0x79] sm:$0xff] %vm762, %v2341
      %2374 = vst.msk [vmem:[#allocation2 + $0x81] sm:$0xff] %vm762, %v2342
      %v2375 = vld [vmem:[#allocation2] sm:$0xff]
      %v2376 = vld [vmem:[#allocation2 + $0x8] sm:$0xff]
      %v2377 = vld [vmem:[#allocation2 + $0x10] sm:$0xff]
      %v2378 = vld [vmem:[#allocation2 + $0x18] sm:$0xff]
      %v2379 = vld [vmem:[#allocation2 + $0x20] sm:$0xff]
      %v2380 = vld [vmem:[#allocation2 + $0x28] sm:$0xff]
      %v2381 = vld [vmem:[#allocation2 + $0x30] sm:$0xff]
      %v2382 = vld [vmem:[#allocation2 + $0x38] sm:$0xff]
      %v2383 = vld [vmem:[#allocation2 + $0x48] sm:$0xff]
      %v2384 = vld [vmem:[#allocation2 + $0x50] sm:$0xff]
      %v2385 = vld [vmem:[#allocation2 + $0x58] sm:$0xff]
      %v2386 = vld [vmem:[#allocation2 + $0x60] sm:$0xff]
      %v2387 = vld [vmem:[#allocation2 + $0x68] sm:$0xff]
      %v2388 = vld [vmem:[#allocation2 + $0x70] sm:$0xff]
      %v2389 = vld [vmem:[#allocation2 + $0x78] sm:$0xff]
      %v2390 = vld [vmem:[#allocation2 + $0x80] sm:$0xff]
      %v2391 = vld [vmem:[#allocation2 + $0x1] sm:$0xff]
      %v2392 = vld [vmem:[#allocation2 + $0x9] sm:$0xff]
      %v2393 = vld [vmem:[#allocation2 + $0x11] sm:$0xff]
      %v2394 = vld [vmem:[#allocation2 + $0x19] sm:$0xff]
      %v2395 = vld [vmem:[#allocation2 + $0x21] sm:$0xff]
      %v2396 = vld [vmem:[#allocation2 + $0x29] sm:$0xff]
      %v2397 = vld [vmem:[#allocation2 + $0x31] sm:$0xff]
      %v2398 = vld [vmem:[#allocation2 + $0x39] sm:$0xff]
      %v2399 = vld [vmem:[#allocation2 + $0x49] sm:$0xff]
      %v2400 = vld [vmem:[#allocation2 + $0x51] sm:$0xff]
      %v2401 = vld [vmem:[#allocation2 + $0x59] sm:$0xff]
      %v2402 = vld [vmem:[#allocation2 + $0x61] sm:$0xff]
      %v2403 = vld [vmem:[#allocation2 + $0x69] sm:$0xff]
      %v2404 = vld [vmem:[#allocation2 + $0x71] sm:$0xff]
      %v2405 = vld [vmem:[#allocation2 + $0x79] sm:$0xff]
      %v2406 = vld [vmem:[#allocation2 + $0x81] sm:$0xff]
      %v2407 = vld [vmem:[#allocation2 + $0x2] sm:$0xff]
      %v2408 = vld [vmem:[#allocation2 + $0xa] sm:$0xff]
      %v2409 = vld [vmem:[#allocation2 + $0x12] sm:$0xff]
      %v2410 = vld [vmem:[#allocation2 + $0x1a] sm:$0xff]
      %v2411 = vld [vmem:[#allocation2 + $0x22] sm:$0xff]
      %v2412 = vld [vmem:[#allocation2 + $0x2a] sm:$0xff]
      %v2413 = vld [vmem:[#allocation2 + $0x32] sm:$0xff]
      %v2414 = vld [vmem:[#allocation2 + $0x3a] sm:$0xff]
      %v2415 = vld [vmem:[#allocation2 + $0x4a] sm:$0xff]
      %v2416 = vld [vmem:[#allocation2 + $0x52] sm:$0xff]
      %v2417 = vld [vmem:[#allocation2 + $0x5a] sm:$0xff]
      %v2418 = vld [vmem:[#allocation2 + $0x62] sm:$0xff]
      %v2419 = vld [vmem:[#allocation2 + $0x6a] sm:$0xff]
      %v2420 = vld [vmem:[#allocation2 + $0x72] sm:$0xff]
      %v2421 = vld [vmem:[#allocation2 + $0x7a] sm:$0xff]
      %v2422 = vld [vmem:[#allocation2 + $0x82] sm:$0xff]
      %2439 = vrot.lane.b32.xlu0 %v2391, 32
      %v2440 = vpop.permute.xlu0 %2439
      %2441 = vrot.lane.b32.xlu0 %v2392, 32
      %v2442 = vpop.permute.xlu0 %2441
      %2443 = vrot.lane.b32.xlu0 %v2393, 32
      %v2444 = vpop.permute.xlu0 %2443
      %2445 = vrot.lane.b32.xlu0 %v2394, 32
      %v2446 = vpop.permute.xlu0 %2445
      %2447 = vrot.lane.b32.xlu0 %v2395, 32
      %v2448 = vpop.permute.xlu0 %2447
      %2449 = vrot.lane.b32.xlu0 %v2396, 32
      %v2450 = vpop.permute.xlu0 %2449
      %2451 = vrot.lane.b32.xlu0 %v2397, 32
      %v2452 = vpop.permute.xlu0 %2451
      %2453 = vrot.lane.b32.xlu0 %v2398, 32
      %v2454 = vpop.permute.xlu0 %2453
      %2455 = vrot.lane.b32.xlu0 %v2399, 32
      %v2456 = vpop.permute.xlu0 %2455
      %2457 = vrot.lane.b32.xlu0 %v2400, 32
      %v2458 = vpop.permute.xlu0 %2457
      %2459 = vrot.lane.b32.xlu0 %v2401, 32
      %v2460 = vpop.permute.xlu0 %2459
      %2461 = vrot.lane.b32.xlu0 %v2402, 32
      %v2462 = vpop.permute.xlu0 %2461
      %2463 = vrot.lane.b32.xlu0 %v2403, 32
      %v2464 = vpop.permute.xlu0 %2463
      %2465 = vrot.lane.b32.xlu0 %v2404, 32
      %v2466 = vpop.permute.xlu0 %2465
      %2467 = vrot.lane.b32.xlu0 %v2405, 32
      %v2468 = vpop.permute.xlu0 %2467
      %2469 = vrot.lane.b32.xlu0 %v2406, 32
      %v2470 = vpop.permute.xlu0 %2469
      %2503 = vrot.lane.b32.xlu0 %v2407, 64
      %v2504 = vpop.permute.xlu0 %2503
      %2505 = vrot.lane.b32.xlu0 %v2408, 64
      %v2506 = vpop.permute.xlu0 %2505
      %2507 = vrot.lane.b32.xlu0 %v2409, 64
      %v2508 = vpop.permute.xlu0 %2507
      %2509 = vrot.lane.b32.xlu0 %v2410, 64
      %v2510 = vpop.permute.xlu0 %2509
      %2511 = vrot.lane.b32.xlu0 %v2411, 64
      %v2512 = vpop.permute.xlu0 %2511
      %2513 = vrot.lane.b32.xlu0 %v2412, 64
      %v2514 = vpop.permute.xlu0 %2513
      %2515 = vrot.lane.b32.xlu0 %v2413, 64
      %v2516 = vpop.permute.xlu0 %2515
      %2517 = vrot.lane.b32.xlu0 %v2414, 64
      %v2518 = vpop.permute.xlu0 %2517
      %2519 = vrot.lane.b32.xlu0 %v2415, 64
      %v2520 = vpop.permute.xlu0 %2519
      %2521 = vrot.lane.b32.xlu0 %v2416, 64
      %v2522 = vpop.permute.xlu0 %2521
      %2523 = vrot.lane.b32.xlu0 %v2417, 64
      %v2524 = vpop.permute.xlu0 %2523
      %2525 = vrot.lane.b32.xlu0 %v2418, 64
      %v2526 = vpop.permute.xlu0 %2525
      %2527 = vrot.lane.b32.xlu0 %v2419, 64
      %v2528 = vpop.permute.xlu0 %2527
      %2529 = vrot.lane.b32.xlu0 %v2420, 64
      %v2530 = vpop.permute.xlu0 %2529
      %2531 = vrot.lane.b32.xlu0 %v2421, 64
      %v2532 = vpop.permute.xlu0 %2531
      %2533 = vrot.lane.b32.xlu0 %v2422, 64
      %v2534 = vpop.permute.xlu0 %2533
      %v2551 = vsel %vm762, %v2375, %v2440
      %v2552 = vsel %vm762, %v2376, %v2442
      %v2553 = vsel %vm762, %v2377, %v2444
      %v2554 = vsel %vm762, %v2378, %v2446
      %v2555 = vsel %vm762, %v2379, %v2448
      %v2556 = vsel %vm762, %v2380, %v2450
      %v2557 = vsel %vm762, %v2381, %v2452
      %v2558 = vsel %vm762, %v2382, %v2454
      %v2559 = vsel %vm762, %v2383, %v2456
      %v2560 = vsel %vm762, %v2384, %v2458
      %v2561 = vsel %vm762, %v2385, %v2460
      %v2562 = vsel %vm762, %v2386, %v2462
      %v2563 = vsel %vm762, %v2387, %v2464
      %v2564 = vsel %vm762, %v2388, %v2466
      %v2565 = vsel %vm762, %v2389, %v2468
      %v2566 = vsel %vm762, %v2390, %v2470
      %v2567 = vsel %vm971, %v2551, %v2504
      %v2568 = vsel %vm971, %v2552, %v2506
      %v2569 = vsel %vm971, %v2553, %v2508
      %v2570 = vsel %vm971, %v2554, %v2510
      %v2571 = vsel %vm971, %v2555, %v2512
      %v2572 = vsel %vm971, %v2556, %v2514
      %v2573 = vsel %vm971, %v2557, %v2516
      %v2574 = vsel %vm971, %v2558, %v2518
      %v2575 = vsel %vm971, %v2559, %v2520
      %v2576 = vsel %vm971, %v2560, %v2522
      %v2577 = vsel %vm971, %v2561, %v2524
      %v2578 = vsel %vm971, %v2562, %v2526
      %v2579 = vsel %vm971, %v2563, %v2528
      %v2580 = vsel %vm971, %v2564, %v2530
      %v2581 = vsel %vm971, %v2565, %v2532
      %v2582 = vsel %vm971, %v2566, %v2534
      %v2583 = vpack.c.bf16 %v2568, %v2567
      %v2584 = vpack.c.bf16 %v2570, %v2569
      %v2585 = vpack.c.bf16 %v2572, %v2571
      %v2586 = vpack.c.bf16 %v2574, %v2573
      %v2587 = vpack.c.bf16 %v2576, %v2575
      %v2588 = vpack.c.bf16 %v2578, %v2577
      %v2589 = vpack.c.bf16 %v2580, %v2579
      %v2590 = vpack.c.bf16 %v2582, %v2581
      %s2591 = scalar_lea.vmem %s4, 96
      %v2592 = vld [vmem:[%s2591] sm:$0xf]
      %v2593 = vld [vmem:[%s2591 + $0x4] sm:$0xf]
      %v2594 = vld [vmem:[%s2591 + $0x8] sm:$0xf]
      %v2595 = vld [vmem:[%s2591 + $0xc] sm:$0xf]
      %v2596 = vld [vmem:[%s2591 + $0x10] sm:$0xf]
      %v2597 = vld [vmem:[%s2591 + $0x14] sm:$0xf]
      %v2598 = vld [vmem:[%s2591 + $0x18] sm:$0xf]
      %v2599 = vld [vmem:[%s2591 + $0x1c] sm:$0xf]
      %v2600 = vld [vmem:[%s2591 + $0x20] sm:$0xf]
      %v2601 = vld [vmem:[%s2591 + $0x24] sm:$0xf]
      %v2602 = vld [vmem:[%s2591 + $0x28] sm:$0xf]
      %v2603 = vld [vmem:[%s2591 + $0x2c] sm:$0xf]
      %v2604 = vld [vmem:[%s5 + $0x2] sm:$0x1]
      %v2605 = vlaneseq
      %v2606 = vshrl.u32 %v2605, 7
      %v2607 = vsub.s32 0, %v2606
      %v2608 = vrot.slane %v2604, %v2607
      %v2621 = vunpack.c.l.b16 %v2592
      %v2622 = vunpack.c.l.b16 %v2593
      %v2623 = vunpack.c.l.b16 %v2594
      %v2624 = vunpack.c.l.b16 %v2595
      %v2625 = vunpack.c.l.b16 %v2596
      %v2626 = vunpack.c.l.b16 %v2597
      %v2627 = vunpack.c.l.b16 %v2598
      %v2628 = vunpack.c.l.b16 %v2599
      %v2629 = vunpack.c.l.b16 %v2600
      %v2630 = vunpack.c.l.b16 %v2601
      %v2631 = vunpack.c.l.b16 %v2602
      %v2632 = vunpack.c.l.b16 %v2603
      %v2633 = vpack.c.b16 %v2622, %v2621
      %v2634 = vpack.c.b16 %v2624, %v2623
      %v2635 = vpack.c.b16 %v2626, %v2625
      %v2636 = vpack.c.b16 %v2628, %v2627
      %v2637 = vpack.c.b16 %v2630, %v2629
      %v2638 = vpack.c.b16 %v2632, %v2631
      %v2646 = vsel %vm1049, %v2583, 0
      %v2649 = vsel %vm1049, %v2584, 0
      %v2652 = vsel %vm1049, %v2585, 0
      %v2655 = vsel %vm1049, %v2586, 0
      %v2658 = vsel %vm1049, %v2587, 0
      %v2661 = vsel %vm1049, %v2588, 0
      %v2664 = vsel %vm1049, %v2589, 0
      %v2667 = vsel %vm1049, %v2590, 0
      %2669 = vmatprep.subr.bf16.mxu0 0
      %2670 = vmatpush1.bf16.msra.mxu0 %v2633
      %2671 = vmatprep.subr.bf16.mxu0 0
      %2672 = vmatpush1.bf16.msra.mxu0 %v2634
      %2673 = vmatprep.subr.bf16.mxu0 0
      %2674 = vmatpush1.bf16.msra.mxu0 %v2635
      %2675 = vmatprep.subr.bf16.mxu0 0
      %2676 = vmatpush1.bf16.msra.mxu0 %v2636
      %2677 = vmatprep.subr.bf16.mxu0 0
      %2678 = vmatpush1.bf16.msra.mxu0 %v2637
      %2679 = vmatprep.subr.bf16.mxu0 0
      %2680 = vmatpush1.bf16.msra.mxu0 %v2638
      %2681 = vmatprep.subr.bf16.mxu0 0
      %2682 = vmatpush1.bf16.msra.mxu0 0
      %2683 = vmatprep.subr.bf16.mxu0 0
      %2684 = vmatpush1.bf16.msra.mxu0 0
      %2685 = vmatprep.subr.bf16.mxu0 0
      %2686 = vmatpush1.bf16.msra.mxu0 0
      %2687 = vmatprep.subr.bf16.mxu0 0
      %2688 = vmatpush1.bf16.msra.mxu0 0
      %2689 = vmatprep.subr.bf16.mxu0 0
      %2690 = vmatpush1.bf16.msra.mxu0 0
      %2691 = vmatprep.subr.bf16.mxu0 0
      %2692 = vmatpush1.bf16.msra.mxu0 0
      %2693 = vmatprep.subr.bf16.mxu0 0
      %2694 = vmatpush1.bf16.msra.mxu0 0
      %2695 = vmatprep.subr.bf16.mxu0 0
      %2696 = vmatpush1.bf16.msra.mxu0 0
      %2697 = vmatprep.subr.bf16.mxu0 0
      %2698 = vmatpush1.bf16.msra.mxu0 0
      %2699 = vmatprep.subr.bf16.mxu0 0
      %2700 = vmatpush1.bf16.msra.mxu0 0
      %2701 = vmatprep.mubr.bf16.mxu0 0
      %2702 = vmatmul.mubr.bf16.gmra.mrb[0].mxu0 %v2646
      %v2703 = vpop.f32.mrb[0].mxu0
      %v2704 = vadd.f32 %v2608, %v2703
      %v2705 = vpop.f32.mrb[0].mxu0
      %v2706 = vpop.f32.mrb[0].mxu0
      %v2707 = vadd.f32 %v2608, %v2706
      %v2708 = vpop.f32.mrb[0].mxu0
      %2709 = vmatprep.mubr.bf16.mxu0 0
      %2710 = vmatmul.mubr.bf16.gmra.mrb[0].mxu0 %v2649
      %v2711 = vpop.f32.mrb[0].mxu0
      %v2712 = vadd.f32 %v2608, %v2711
      %v2713 = vpop.f32.mrb[0].mxu0
      %v2714 = vpop.f32.mrb[0].mxu0
      %v2715 = vadd.f32 %v2608, %v2714
      %v2716 = vpop.f32.mrb[0].mxu0
      %2717 = vmatprep.mubr.bf16.mxu0 0
      %2718 = vmatmul.mubr.bf16.gmra.mrb[0].mxu0 %v2652
      %v2719 = vpop.f32.mrb[0].mxu0
      %v2720 = vadd.f32 %v2608, %v2719
      %v2721 = vpop.f32.mrb[0].mxu0
      %v2722 = vpop.f32.mrb[0].mxu0
      %v2723 = vadd.f32 %v2608, %v2722
      %v2724 = vpop.f32.mrb[0].mxu0
      %2725 = vmatprep.mubr.bf16.mxu0 0
      %2726 = vmatmul.mubr.bf16.gmra.mrb[0].mxu0 %v2655
      %v2727 = vpop.f32.mrb[0].mxu0
      %v2728 = vadd.f32 %v2608, %v2727
      %v2729 = vpop.f32.mrb[0].mxu0
      %v2730 = vpop.f32.mrb[0].mxu0
      %v2731 = vadd.f32 %v2608, %v2730
      %v2732 = vpop.f32.mrb[0].mxu0
      %2733 = vmatprep.mubr.bf16.mxu0 0
      %2734 = vmatmul.mubr.bf16.gmra.mrb[0].mxu0 %v2658
      %v2735 = vpop.f32.mrb[0].mxu0
      %v2736 = vadd.f32 %v2608, %v2735
      %v2737 = vpop.f32.mrb[0].mxu0
      %v2738 = vpop.f32.mrb[0].mxu0
      %v2739 = vadd.f32 %v2608, %v2738
      %v2740 = vpop.f32.mrb[0].mxu0
      %2741 = vmatprep.mubr.bf16.mxu0 0
      %2742 = vmatmul.mubr.bf16.gmra.mrb[0].mxu0 %v2661
      %v2743 = vpop.f32.mrb[0].mxu0
      %v2744 = vadd.f32 %v2608, %v2743
      %v2745 = vpop.f32.mrb[0].mxu0
      %v2746 = vpop.f32.mrb[0].mxu0
      %v2747 = vadd.f32 %v2608, %v2746
      %v2748 = vpop.f32.mrb[0].mxu0
      %2749 = vmatprep.mubr.bf16.mxu0 0
      %2750 = vmatmul.mubr.bf16.gmra.mrb[0].mxu0 %v2664
      %v2751 = vpop.f32.mrb[0].mxu0
      %v2752 = vadd.f32 %v2608, %v2751
      %v2753 = vpop.f32.mrb[0].mxu0
      %v2754 = vpop.f32.mrb[0].mxu0
      %v2755 = vadd.f32 %v2608, %v2754
      %v2756 = vpop.f32.mrb[0].mxu0
      %2757 = vmatprep.mubr.bf16.mxu0 0
      %2758 = vmatmul.mubr.bf16.gmra.mrb[0].mxu0 %v2667
      %v2759 = vpop.f32.mrb[0].mxu0
      %v2760 = vadd.f32 %v2608, %v2759
      %v2761 = vpop.f32.mrb[0].mxu0
      %v2762 = vpop.f32.mrb[0].mxu0
      %v2763 = vadd.f32 %v2608, %v2762
      %v2764 = vpop.f32.mrb[0].mxu0
      %2765 = vdwg.mxu0
      %v2766 = vtanh.pop %v2704
      %v2767 = vtanh.pop %v2707
      %v2768 = vtanh.pop %v2712
      %v2769 = vtanh.pop %v2715
      %v2770 = vtanh.pop %v2720
      %v2771 = vtanh.pop %v2723
      %v2772 = vtanh.pop %v2728
      %v2773 = vtanh.pop %v2731
      %v2774 = vtanh.pop %v2736
      %v2775 = vtanh.pop %v2739
      %v2776 = vtanh.pop %v2744
      %v2777 = vtanh.pop %v2747
      %v2778 = vtanh.pop %v2752
      %v2779 = vtanh.pop %v2755
      %v2780 = vtanh.pop %v2760
      %v2781 = vtanh.pop %v2763
      %v2782 = vxor.u32 %v2704, 2147483648
      %v2783 = vxor.u32 %v2707, 2147483648
      %v2784 = vxor.u32 %v2712, 2147483648
      %v2785 = vxor.u32 %v2715, 2147483648
      %v2786 = vxor.u32 %v2720, 2147483648
      %v2787 = vxor.u32 %v2723, 2147483648
      %v2788 = vxor.u32 %v2728, 2147483648
      %v2789 = vxor.u32 %v2731, 2147483648
      %v2790 = vxor.u32 %v2736, 2147483648
      %v2791 = vxor.u32 %v2739, 2147483648
      %v2792 = vxor.u32 %v2744, 2147483648
      %v2793 = vxor.u32 %v2747, 2147483648
      %v2794 = vxor.u32 %v2752, 2147483648
      %v2795 = vxor.u32 %v2755, 2147483648
      %v2796 = vxor.u32 %v2760, 2147483648
      %v2797 = vxor.u32 %v2763, 2147483648
      %v2798 = vmul.f32 %v2782, 1.442695
      %v2799 = vpow.pop %v2798
      %v2800 = vmul.f32 %v2783, 1.442695
      %v2801 = vpow.pop %v2800
      %v2802 = vmul.f32 %v2784, 1.442695
      %v2803 = vpow.pop %v2802
      %v2804 = vmul.f32 %v2785, 1.442695
      %v2805 = vpow.pop %v2804
      %v2806 = vmul.f32 %v2786, 1.442695
      %v2807 = vpow.pop %v2806
      %v2808 = vmul.f32 %v2787, 1.442695
      %v2809 = vpow.pop %v2808
      %v2810 = vmul.f32 %v2788, 1.442695
      %v2811 = vpow.pop %v2810
      %v2812 = vmul.f32 %v2789, 1.442695
      %v2813 = vpow.pop %v2812
      %v2814 = vmul.f32 %v2790, 1.442695
      %v2815 = vpow.pop %v2814
      %v2816 = vmul.f32 %v2791, 1.442695
      %v2817 = vpow.pop %v2816
      %v2818 = vmul.f32 %v2792, 1.442695
      %v2819 = vpow.pop %v2818
      %v2820 = vmul.f32 %v2793, 1.442695
      %v2821 = vpow.pop %v2820
      %v2822 = vmul.f32 %v2794, 1.442695
      %v2823 = vpow.pop %v2822
      %v2824 = vmul.f32 %v2795, 1.442695
      %v2825 = vpow.pop %v2824
      %v2826 = vmul.f32 %v2796, 1.442695
      %v2827 = vpow.pop %v2826
      %v2828 = vmul.f32 %v2797, 1.442695
      %v2829 = vpow.pop %v2828
      %v2830 = vadd.f32 %v2799, 1.0
      %v2831 = vadd.f32 %v2801, 1.0
      %v2832 = vadd.f32 %v2803, 1.0
      %v2833 = vadd.f32 %v2805, 1.0
      %v2834 = vadd.f32 %v2807, 1.0
      %v2835 = vadd.f32 %v2809, 1.0
      %v2836 = vadd.f32 %v2811, 1.0
      %v2837 = vadd.f32 %v2813, 1.0
      %v2838 = vadd.f32 %v2815, 1.0
      %v2839 = vadd.f32 %v2817, 1.0
      %v2840 = vadd.f32 %v2819, 1.0
      %v2841 = vadd.f32 %v2821, 1.0
      %v2842 = vadd.f32 %v2823, 1.0
      %v2843 = vadd.f32 %v2825, 1.0
      %v2844 = vadd.f32 %v2827, 1.0
      %v2845 = vadd.f32 %v2829, 1.0
      %v2846 = vrcp.pop %v2830
      %v2847 = vmul.f32 1.0, %v2846
      %v2848 = vrcp.pop %v2831
      %v2849 = vmul.f32 1.0, %v2848
      %v2850 = vrcp.pop %v2832
      %v2851 = vmul.f32 1.0, %v2850
      %v2852 = vrcp.pop %v2833
      %v2853 = vmul.f32 1.0, %v2852
      %v2854 = vrcp.pop %v2834
      %v2855 = vmul.f32 1.0, %v2854
      %v2856 = vrcp.pop %v2835
      %v2857 = vmul.f32 1.0, %v2856
      %v2858 = vrcp.pop %v2836
      %v2859 = vmul.f32 1.0, %v2858
      %v2860 = vrcp.pop %v2837
      %v2861 = vmul.f32 1.0, %v2860
      %v2862 = vrcp.pop %v2838
      %v2863 = vmul.f32 1.0, %v2862
      %v2864 = vrcp.pop %v2839
      %v2865 = vmul.f32 1.0, %v2864
      %v2866 = vrcp.pop %v2840
      %v2867 = vmul.f32 1.0, %v2866
      %v2868 = vrcp.pop %v2841
      %v2869 = vmul.f32 1.0, %v2868
      %v2870 = vrcp.pop %v2842
      %v2871 = vmul.f32 1.0, %v2870
      %v2872 = vrcp.pop %v2843
      %v2873 = vmul.f32 1.0, %v2872
      %v2874 = vrcp.pop %v2844
      %v2875 = vmul.f32 1.0, %v2874
      %v2876 = vrcp.pop %v2845
      %v2877 = vmul.f32 1.0, %v2876
      %2894 = vrot.lane.b32.xlu0 %v2847, 96
      %v2895 = vpop.permute.xlu0 %2894
      %2896 = vrot.lane.b32.xlu0 %v2849, 96
      %v2897 = vpop.permute.xlu0 %2896
      %2898 = vrot.lane.b32.xlu0 %v2851, 96
      %v2899 = vpop.permute.xlu0 %2898
      %2900 = vrot.lane.b32.xlu0 %v2853, 96
      %v2901 = vpop.permute.xlu0 %2900
      %2902 = vrot.lane.b32.xlu0 %v2855, 96
      %v2903 = vpop.permute.xlu0 %2902
      %2904 = vrot.lane.b32.xlu0 %v2857, 96
      %v2905 = vpop.permute.xlu0 %2904
      %2906 = vrot.lane.b32.xlu0 %v2859, 96
      %v2907 = vpop.permute.xlu0 %2906
      %2908 = vrot.lane.b32.xlu0 %v2861, 96
      %v2909 = vpop.permute.xlu0 %2908
      %2910 = vrot.lane.b32.xlu0 %v2863, 96
      %v2911 = vpop.permute.xlu0 %2910
      %2912 = vrot.lane.b32.xlu0 %v2865, 96
      %v2913 = vpop.permute.xlu0 %2912
      %2914 = vrot.lane.b32.xlu0 %v2867, 96
      %v2915 = vpop.permute.xlu0 %2914
      %2916 = vrot.lane.b32.xlu0 %v2869, 96
      %v2917 = vpop.permute.xlu0 %2916
      %2918 = vrot.lane.b32.xlu0 %v2871, 96
      %v2919 = vpop.permute.xlu0 %2918
      %2920 = vrot.lane.b32.xlu0 %v2873, 96
      %v2921 = vpop.permute.xlu0 %2920
      %2922 = vrot.lane.b32.xlu0 %v2875, 96
      %v2923 = vpop.permute.xlu0 %2922
      %2924 = vrot.lane.b32.xlu0 %v2877, 96
      %v2925 = vpop.permute.xlu0 %2924
      %v2942 = vmul.f32 %v2766, %v2895
      %v2943 = vmul.f32 %v2767, %v2897
      %v2944 = vmul.f32 %v2768, %v2899
      %v2945 = vmul.f32 %v2769, %v2901
      %v2946 = vmul.f32 %v2770, %v2903
      %v2947 = vmul.f32 %v2771, %v2905
      %v2948 = vmul.f32 %v2772, %v2907
      %v2949 = vmul.f32 %v2773, %v2909
      %v2950 = vmul.f32 %v2774, %v2911
      %v2951 = vmul.f32 %v2775, %v2913
      %v2952 = vmul.f32 %v2776, %v2915
      %v2953 = vmul.f32 %v2777, %v2917
      %v2954 = vmul.f32 %v2778, %v2919
      %v2955 = vmul.f32 %v2779, %v2921
      %v2956 = vmul.f32 %v2780, %v2923
      %v2957 = vmul.f32 %v2781, %v2925
      %v2958 = vpack.c.bf16 %v2943, %v2942
      %v2959 = vpack.c.bf16 %v2945, %v2944
      %v2960 = vpack.c.bf16 %v2947, %v2946
      %v2961 = vpack.c.bf16 %v2949, %v2948
      %v2962 = vpack.c.bf16 %v2951, %v2950
      %v2963 = vpack.c.bf16 %v2953, %v2952
      %v2964 = vpack.c.bf16 %v2955, %v2954
      %v2965 = vpack.c.bf16 %v2957, %v2956
      %s2966 = scalar_lea.vmem %s6, 32
      %v2967 = vld [vmem:[%s2966] sm:$0xf]
      %v2968 = vld [vmem:[%s2966 + $0x4] sm:$0xf]
      %v2969 = vld [vmem:[%s2966 + $0x8] sm:$0xf]
      %v2970 = vld [vmem:[%s2966 + $0xc] sm:$0xf]
      %v2971 = vld [vmem:[%s7 + $0x2] sm:$0x1]
      %v2972 = vlaneseq
      %v2973 = vshrl.u32 %v2972, 7
      %v2974 = vsub.s32 0, %v2973
      %v2975 = vrot.slane %v2971, %v2974
      %v2980 = vunpack.c.l.b16 %v2967
      %v2981 = vunpack.c.l.b16 %v2968
      %v2982 = vunpack.c.l.b16 %v2969
      %v2983 = vunpack.c.l.b16 %v2970
      %v2984 = vpack.c.b16 %v2981, %v2980
      %v2985 = vpack.c.b16 %v2983, %v2982
      %v2989 = vsel %vm762, %v2958, 0
      %v2992 = vsel %vm762, %v2959, 0
      %v2995 = vsel %vm762, %v2960, 0
      %v2998 = vsel %vm762, %v2961, 0
      %v3001 = vsel %vm762, %v2962, 0
      %v3004 = vsel %vm762, %v2963, 0
      %v3007 = vsel %vm762, %v2964, 0
      %v3010 = vsel %vm762, %v2965, 0
      %3012 = vmatprep.subr.bf16.mxu0 0
      %3013 = vmatpush1.bf16.msra.mxu0 %v2984
      %3014 = vmatprep.subr.bf16.mxu0 0
      %3015 = vmatpush1.bf16.msra.mxu0 %v2985
      %3016 = vmatprep.subr.bf16.mxu0 0
      %3017 = vmatpush1.bf16.msra.mxu0 0
      %3018 = vmatprep.subr.bf16.mxu0 0
      %3019 = vmatpush1.bf16.msra.mxu0 0
      %3020 = vmatprep.subr.bf16.mxu0 0
      %3021 = vmatpush1.bf16.msra.mxu0 0
      %3022 = vmatprep.subr.bf16.mxu0 0
      %3023 = vmatpush1.bf16.msra.mxu0 0
      %3024 = vmatprep.subr.bf16.mxu0 0
      %3025 = vmatpush1.bf16.msra.mxu0 0
      %3026 = vmatprep.subr.bf16.mxu0 0
      %3027 = vmatpush1.bf16.msra.mxu0 0
      %3028 = vmatprep.subr.bf16.mxu0 0
      %3029 = vmatpush1.bf16.msra.mxu0 0
      %3030 = vmatprep.subr.bf16.mxu0 0
      %3031 = vmatpush1.bf16.msra.mxu0 0
      %3032 = vmatprep.subr.bf16.mxu0 0
      %3033 = vmatpush1.bf16.msra.mxu0 0
      %3034 = vmatprep.subr.bf16.mxu0 0
      %3035 = vmatpush1.bf16.msra.mxu0 0
      %3036 = vmatprep.subr.bf16.mxu0 0
      %3037 = vmatpush1.bf16.msra.mxu0 0
      %3038 = vmatprep.subr.bf16.mxu0 0
      %3039 = vmatpush1.bf16.msra.mxu0 0
      %3040 = vmatprep.subr.bf16.mxu0 0
      %3041 = vmatpush1.bf16.msra.mxu0 0
      %3042 = vmatprep.subr.bf16.mxu0 0
      %3043 = vmatpush1.bf16.msra.mxu0 0
      %3044 = vmatprep.mubr.bf16.mxu0 0
      %3045 = vmatmul.mubr.bf16.gmra.mrb[0].mxu0 %v2989
      %v3046 = vpop.f32.mrb[0].mxu0
      %v3047 = vadd.f32 %v2975, %v3046
      %v3048 = vpop.f32.mrb[0].mxu0
      %v3049 = vpop.f32.mrb[0].mxu0
      %v3050 = vadd.f32 %v2975, %v3049
      %v3051 = vpop.f32.mrb[0].mxu0
      %3052 = vmatprep.mubr.bf16.mxu0 0
      %3053 = vmatmul.mubr.bf16.gmra.mrb[0].mxu0 %v2992
      %v3054 = vpop.f32.mrb[0].mxu0
      %v3055 = vadd.f32 %v2975, %v3054
      %v3056 = vpop.f32.mrb[0].mxu0
      %v3057 = vpop.f32.mrb[0].mxu0
      %v3058 = vadd.f32 %v2975, %v3057
      %v3059 = vpop.f32.mrb[0].mxu0
      %3060 = vmatprep.mubr.bf16.mxu0 0
      %3061 = vmatmul.mubr.bf16.gmra.mrb[0].mxu0 %v2995
      %v3062 = vpop.f32.mrb[0].mxu0
      %v3063 = vadd.f32 %v2975, %v3062
      %v3064 = vpop.f32.mrb[0].mxu0
      %v3065 = vpop.f32.mrb[0].mxu0
      %v3066 = vadd.f32 %v2975, %v3065
      %v3067 = vpop.f32.mrb[0].mxu0
      %3068 = vmatprep.mubr.bf16.mxu0 0
      %3069 = vmatmul.mubr.bf16.gmra.mrb[0].mxu0 %v2998
      %v3070 = vpop.f32.mrb[0].mxu0
      %v3071 = vadd.f32 %v2975, %v3070
      %v3072 = vpop.f32.mrb[0].mxu0
      %v3073 = vpop.f32.mrb[0].mxu0
      %v3074 = vadd.f32 %v2975, %v3073
      %v3075 = vpop.f32.mrb[0].mxu0
      %3076 = vmatprep.mubr.bf16.mxu0 0
      %3077 = vmatmul.mubr.bf16.gmra.mrb[0].mxu0 %v3001
      %v3078 = vpop.f32.mrb[0].mxu0
      %v3079 = vadd.f32 %v2975, %v3078
      %v3080 = vpop.f32.mrb[0].mxu0
      %v3081 = vpop.f32.mrb[0].mxu0
      %v3082 = vadd.f32 %v2975, %v3081
      %v3083 = vpop.f32.mrb[0].mxu0
      %3084 = vmatprep.mubr.bf16.mxu0 0
      %3085 = vmatmul.mubr.bf16.gmra.mrb[0].mxu0 %v3004
      %v3086 = vpop.f32.mrb[0].mxu0
      %v3087 = vadd.f32 %v2975, %v3086
      %v3088 = vpop.f32.mrb[0].mxu0
      %v3089 = vpop.f32.mrb[0].mxu0
      %v3090 = vadd.f32 %v2975, %v3089
      %v3091 = vpop.f32.mrb[0].mxu0
      %3092 = vmatprep.mubr.bf16.mxu0 0
      %3093 = vmatmul.mubr.bf16.gmra.mrb[0].mxu0 %v3007
      %v3094 = vpop.f32.mrb[0].mxu0
      %v3095 = vadd.f32 %v2975, %v3094
      %v3096 = vpop.f32.mrb[0].mxu0
      %v3097 = vpop.f32.mrb[0].mxu0
      %v3098 = vadd.f32 %v2975, %v3097
      %v3099 = vpop.f32.mrb[0].mxu0
      %3100 = vmatprep.mubr.bf16.mxu0 0
      %3101 = vmatmul.mubr.bf16.gmra.mrb[0].mxu0 %v3010
      %v3102 = vpop.f32.mrb[0].mxu0
      %v3103 = vadd.f32 %v2975, %v3102
      %v3104 = vpop.f32.mrb[0].mxu0
      %v3105 = vpop.f32.mrb[0].mxu0
      %v3106 = vadd.f32 %v2975, %v3105
      %v3107 = vpop.f32.mrb[0].mxu0
      %3108 = vdwg.mxu0
      %v3109 = vadd.f32 %v2327, %v3047
      %v3110 = vadd.f32 %v2328, %v3050
      %v3111 = vadd.f32 %v2329, %v3055
      %v3112 = vadd.f32 %v2330, %v3058
      %v3113 = vadd.f32 %v2331, %v3063
      %v3114 = vadd.f32 %v2332, %v3066
      %v3115 = vadd.f32 %v2333, %v3071
      %v3116 = vadd.f32 %v2334, %v3074
      %v3117 = vadd.f32 %v2335, %v3079
      %v3118 = vadd.f32 %v2336, %v3082
      %v3119 = vadd.f32 %v2337, %v3087
      %v3120 = vadd.f32 %v2338, %v3090
      %v3121 = vadd.f32 %v2339, %v3095
      %v3122 = vadd.f32 %v2340, %v3098
      %v3123 = vadd.f32 %v2341, %v3103
      %v3124 = vadd.f32 %v2342, %v3106
      %v3125 = vmul.f32 %v3109, %v527
      %v3126 = vmul.f32 %v3110, %v532
      %v3127 = vmul.f32 %v3111, %v537
      %v3128 = vmul.f32 %v3112, %v542
      %v3129 = vmul.f32 %v3113, %v547
      %v3130 = vmul.f32 %v3114, %v552
      %v3131 = vmul.f32 %v3115, %v557
      %v3132 = vmul.f32 %v3116, %v562
      %v3133 = vmul.f32 %v3117, %v567
      %v3134 = vmul.f32 %v3118, %v572
      %v3135 = vmul.f32 %v3119, %v577
      %v3136 = vmul.f32 %v3120, %v582
      %v3137 = vmul.f32 %v3121, %v587
      %v3138 = vmul.f32 %v3122, %v592
      %v3139 = vmul.f32 %v3123, %v597
      %v3140 = vmul.f32 %v3124, %v602
      %v3141 = vadd.f32 %v2343, %v3047
      %v3142 = vadd.f32 %v2344, %v3050
      %v3143 = vadd.f32 %v2345, %v3055
      %v3144 = vadd.f32 %v2346, %v3058
      %v3145 = vadd.f32 %v2347, %v3063
      %v3146 = vadd.f32 %v2348, %v3066
      %v3147 = vadd.f32 %v2349, %v3071
      %v3148 = vadd.f32 %v2350, %v3074
      %v3149 = vadd.f32 %v2351, %v3079
      %v3150 = vadd.f32 %v2352, %v3082
      %v3151 = vadd.f32 %v2353, %v3087
      %v3152 = vadd.f32 %v2354, %v3090
      %v3153 = vadd.f32 %v2355, %v3095
      %v3154 = vadd.f32 %v2356, %v3098
      %v3155 = vadd.f32 %v2357, %v3103
      %v3156 = vadd.f32 %v2358, %v3106
      %3157 = vst.msk [vmem:[#allocation2 + $0x1] sm:$0xff] %vm762, %v3125
      %3158 = vst.msk [vmem:[#allocation2 + $0x9] sm:$0xff] %vm762, %v3126
      %3159 = vst.msk [vmem:[#allocation2 + $0x11] sm:$0xff] %vm762, %v3127
      %3160 = vst.msk [vmem:[#allocation2 + $0x19] sm:$0xff] %vm762, %v3128
      %3161 = vst.msk [vmem:[#allocation2 + $0x21] sm:$0xff] %vm762, %v3129
      %3162 = vst.msk [vmem:[#allocation2 + $0x29] sm:$0xff] %vm762, %v3130
      %3163 = vst.msk [vmem:[#allocation2 + $0x31] sm:$0xff] %vm762, %v3131
      %3164 = vst.msk [vmem:[#allocation2 + $0x39] sm:$0xff] %vm762, %v3132
      %3165 = vst.msk [vmem:[#allocation2 + $0x49] sm:$0xff] %vm762, %v3133
      %3166 = vst.msk [vmem:[#allocation2 + $0x51] sm:$0xff] %vm762, %v3134
      %3167 = vst.msk [vmem:[#allocation2 + $0x59] sm:$0xff] %vm762, %v3135
      %3168 = vst.msk [vmem:[#allocation2 + $0x61] sm:$0xff] %vm762, %v3136
      %3169 = vst.msk [vmem:[#allocation2 + $0x69] sm:$0xff] %vm762, %v3137
      %3170 = vst.msk [vmem:[#allocation2 + $0x71] sm:$0xff] %vm762, %v3138
      %3171 = vst.msk [vmem:[#allocation2 + $0x79] sm:$0xff] %vm762, %v3139
      %3172 = vst.msk [vmem:[#allocation2 + $0x81] sm:$0xff] %vm762, %v3140
      %v3173 = vld [vmem:[#allocation2] sm:$0xff]
      %v3174 = vld [vmem:[#allocation2 + $0x8] sm:$0xff]
      %v3175 = vld [vmem:[#allocation2 + $0x10] sm:$0xff]
      %v3176 = vld [vmem:[#allocation2 + $0x18] sm:$0xff]
      %v3177 = vld [vmem:[#allocation2 + $0x20] sm:$0xff]
      %v3178 = vld [vmem:[#allocation2 + $0x28] sm:$0xff]
      %v3179 = vld [vmem:[#allocation2 + $0x30] sm:$0xff]
      %v3180 = vld [vmem:[#allocation2 + $0x38] sm:$0xff]
      %v3181 = vld [vmem:[#allocation2 + $0x48] sm:$0xff]
      %v3182 = vld [vmem:[#allocation2 + $0x50] sm:$0xff]
      %v3183 = vld [vmem:[#allocation2 + $0x58] sm:$0xff]
      %v3184 = vld [vmem:[#allocation2 + $0x60] sm:$0xff]
      %v3185 = vld [vmem:[#allocation2 + $0x68] sm:$0xff]
      %v3186 = vld [vmem:[#allocation2 + $0x70] sm:$0xff]
      %v3187 = vld [vmem:[#allocation2 + $0x78] sm:$0xff]
      %v3188 = vld [vmem:[#allocation2 + $0x80] sm:$0xff]
      %v3189 = vld [vmem:[#allocation2 + $0x1] sm:$0xff]
      %v3190 = vld [vmem:[#allocation2 + $0x9] sm:$0xff]
      %v3191 = vld [vmem:[#allocation2 + $0x11] sm:$0xff]
      %v3192 = vld [vmem:[#allocation2 + $0x19] sm:$0xff]
      %v3193 = vld [vmem:[#allocation2 + $0x21] sm:$0xff]
      %v3194 = vld [vmem:[#allocation2 + $0x29] sm:$0xff]
      %v3195 = vld [vmem:[#allocation2 + $0x31] sm:$0xff]
      %v3196 = vld [vmem:[#allocation2 + $0x39] sm:$0xff]
      %v3197 = vld [vmem:[#allocation2 + $0x49] sm:$0xff]
      %v3198 = vld [vmem:[#allocation2 + $0x51] sm:$0xff]
      %v3199 = vld [vmem:[#allocation2 + $0x59] sm:$0xff]
      %v3200 = vld [vmem:[#allocation2 + $0x61] sm:$0xff]
      %v3201 = vld [vmem:[#allocation2 + $0x69] sm:$0xff]
      %v3202 = vld [vmem:[#allocation2 + $0x71] sm:$0xff]
      %v3203 = vld [vmem:[#allocation2 + $0x79] sm:$0xff]
      %v3204 = vld [vmem:[#allocation2 + $0x81] sm:$0xff]
      %v3205 = vld [vmem:[#allocation2 + $0x2] sm:$0xff]
      %v3206 = vld [vmem:[#allocation2 + $0xa] sm:$0xff]
      %v3207 = vld [vmem:[#allocation2 + $0x12] sm:$0xff]
      %v3208 = vld [vmem:[#allocation2 + $0x1a] sm:$0xff]
      %v3209 = vld [vmem:[#allocation2 + $0x22] sm:$0xff]
      %v3210 = vld [vmem:[#allocation2 + $0x2a] sm:$0xff]
      %v3211 = vld [vmem:[#allocation2 + $0x32] sm:$0xff]
      %v3212 = vld [vmem:[#allocation2 + $0x3a] sm:$0xff]
      %v3213 = vld [vmem:[#allocation2 + $0x4a] sm:$0xff]
      %v3214 = vld [vmem:[#allocation2 + $0x52] sm:$0xff]
      %v3215 = vld [vmem:[#allocation2 + $0x5a] sm:$0xff]
      %v3216 = vld [vmem:[#allocation2 + $0x62] sm:$0xff]
      %v3217 = vld [vmem:[#allocation2 + $0x6a] sm:$0xff]
      %v3218 = vld [vmem:[#allocation2 + $0x72] sm:$0xff]
      %v3219 = vld [vmem:[#allocation2 + $0x7a] sm:$0xff]
      %v3220 = vld [vmem:[#allocation2 + $0x82] sm:$0xff]
      %3237 = vrot.lane.b32.xlu0 %v3189, 32
      %v3238 = vpop.permute.xlu0 %3237
      %3239 = vrot.lane.b32.xlu0 %v3190, 32
      %v3240 = vpop.permute.xlu0 %3239
      %3241 = vrot.lane.b32.xlu0 %v3191, 32
      %v3242 = vpop.permute.xlu0 %3241
      %3243 = vrot.lane.b32.xlu0 %v3192, 32
      %v3244 = vpop.permute.xlu0 %3243
      %3245 = vrot.lane.b32.xlu0 %v3193, 32
      %v3246 = vpop.permute.xlu0 %3245
      %3247 = vrot.lane.b32.xlu0 %v3194, 32
      %v3248 = vpop.permute.xlu0 %3247
      %3249 = vrot.lane.b32.xlu0 %v3195, 32
      %v3250 = vpop.permute.xlu0 %3249
      %3251 = vrot.lane.b32.xlu0 %v3196, 32
      %v3252 = vpop.permute.xlu0 %3251
      %3253 = vrot.lane.b32.xlu0 %v3197, 32
      %v3254 = vpop.permute.xlu0 %3253
      %3255 = vrot.lane.b32.xlu0 %v3198, 32
      %v3256 = vpop.permute.xlu0 %3255
      %3257 = vrot.lane.b32.xlu0 %v3199, 32
      %v3258 = vpop.permute.xlu0 %3257
      %3259 = vrot.lane.b32.xlu0 %v3200, 32
      %v3260 = vpop.permute.xlu0 %3259
      %3261 = vrot.lane.b32.xlu0 %v3201, 32
      %v3262 = vpop.permute.xlu0 %3261
      %3263 = vrot.lane.b32.xlu0 %v3202, 32
      %v3264 = vpop.permute.xlu0 %3263
      %3265 = vrot.lane.b32.xlu0 %v3203, 32
      %v3266 = vpop.permute.xlu0 %3265
      %3267 = vrot.lane.b32.xlu0 %v3204, 32
      %v3268 = vpop.permute.xlu0 %3267
      %3301 = vrot.lane.b32.xlu0 %v3205, 64
      %v3302 = vpop.permute.xlu0 %3301
      %3303 = vrot.lane.b32.xlu0 %v3206, 64
      %v3304 = vpop.permute.xlu0 %3303
      %3305 = vrot.lane.b32.xlu0 %v3207, 64
      %v3306 = vpop.permute.xlu0 %3305
      %3307 = vrot.lane.b32.xlu0 %v3208, 64
      %v3308 = vpop.permute.xlu0 %3307
      %3309 = vrot.lane.b32.xlu0 %v3209, 64
      %v3310 = vpop.permute.xlu0 %3309
      %3311 = vrot.lane.b32.xlu0 %v3210, 64
      %v3312 = vpop.permute.xlu0 %3311
      %3313 = vrot.lane.b32.xlu0 %v3211, 64
      %v3314 = vpop.permute.xlu0 %3313
      %3315 = vrot.lane.b32.xlu0 %v3212, 64
      %v3316 = vpop.permute.xlu0 %3315
      %3317 = vrot.lane.b32.xlu0 %v3213, 64
      %v3318 = vpop.permute.xlu0 %3317
      %3319 = vrot.lane.b32.xlu0 %v3214, 64
      %v3320 = vpop.permute.xlu0 %3319
      %3321 = vrot.lane.b32.xlu0 %v3215, 64
      %v3322 = vpop.permute.xlu0 %3321
      %3323 = vrot.lane.b32.xlu0 %v3216, 64
      %v3324 = vpop.permute.xlu0 %3323
      %3325 = vrot.lane.b32.xlu0 %v3217, 64
      %v3326 = vpop.permute.xlu0 %3325
      %3327 = vrot.lane.b32.xlu0 %v3218, 64
      %v3328 = vpop.permute.xlu0 %3327
      %3329 = vrot.lane.b32.xlu0 %v3219, 64
      %v3330 = vpop.permute.xlu0 %3329
      %3331 = vrot.lane.b32.xlu0 %v3220, 64
      %v3332 = vpop.permute.xlu0 %3331
      %v3349 = vsel %vm762, %v3173, %v3238
      %v3350 = vsel %vm762, %v3174, %v3240
      %v3351 = vsel %vm762, %v3175, %v3242
      %v3352 = vsel %vm762, %v3176, %v3244
      %v3353 = vsel %vm762, %v3177, %v3246
      %v3354 = vsel %vm762, %v3178, %v3248
      %v3355 = vsel %vm762, %v3179, %v3250
      %v3356 = vsel %vm762, %v3180, %v3252
      %v3357 = vsel %vm762, %v3181, %v3254
      %v3358 = vsel %vm762, %v3182, %v3256
      %v3359 = vsel %vm762, %v3183, %v3258
      %v3360 = vsel %vm762, %v3184, %v3260
      %v3361 = vsel %vm762, %v3185, %v3262
      %v3362 = vsel %vm762, %v3186, %v3264
      %v3363 = vsel %vm762, %v3187, %v3266
      %v3364 = vsel %vm762, %v3188, %v3268
      %v3365 = vsel %vm971, %v3349, %v3302
      %v3366 = vsel %vm971, %v3350, %v3304
      %v3367 = vsel %vm971, %v3351, %v3306
      %v3368 = vsel %vm971, %v3352, %v3308
      %v3369 = vsel %vm971, %v3353, %v3310
      %v3370 = vsel %vm971, %v3354, %v3312
      %v3371 = vsel %vm971, %v3355, %v3314
      %v3372 = vsel %vm971, %v3356, %v3316
      %v3373 = vsel %vm971, %v3357, %v3318
      %v3374 = vsel %vm971, %v3358, %v3320
      %v3375 = vsel %vm971, %v3359, %v3322
      %v3376 = vsel %vm971, %v3360, %v3324
      %v3377 = vsel %vm971, %v3361, %v3326
      %v3378 = vsel %vm971, %v3362, %v3328
      %v3379 = vsel %vm971, %v3363, %v3330
      %v3380 = vsel %vm971, %v3364, %v3332
      %v3381 = vpack.c.bf16 %v3366, %v3365
      %v3382 = vpack.c.bf16 %v3368, %v3367
      %v3383 = vpack.c.bf16 %v3370, %v3369
      %v3384 = vpack.c.bf16 %v3372, %v3371
      %v3385 = vpack.c.bf16 %v3374, %v3373
      %v3386 = vpack.c.bf16 %v3376, %v3375
      %v3387 = vpack.c.bf16 %v3378, %v3377
      %v3388 = vpack.c.bf16 %v3380, %v3379
      %s3389 = scalar_lea.vmem %s4, 144
      %v3390 = vld [vmem:[%s3389] sm:$0xf]
      %v3391 = vld [vmem:[%s3389 + $0x4] sm:$0xf]
      %v3392 = vld [vmem:[%s3389 + $0x8] sm:$0xf]
      %v3393 = vld [vmem:[%s3389 + $0xc] sm:$0xf]
      %v3394 = vld [vmem:[%s3389 + $0x10] sm:$0xf]
      %v3395 = vld [vmem:[%s3389 + $0x14] sm:$0xf]
      %v3396 = vld [vmem:[%s3389 + $0x18] sm:$0xf]
      %v3397 = vld [vmem:[%s3389 + $0x1c] sm:$0xf]
      %v3398 = vld [vmem:[%s3389 + $0x20] sm:$0xf]
      %v3399 = vld [vmem:[%s3389 + $0x24] sm:$0xf]
      %v3400 = vld [vmem:[%s3389 + $0x28] sm:$0xf]
      %v3401 = vld [vmem:[%s3389 + $0x2c] sm:$0xf]
      %v3402 = vld [vmem:[%s5 + $0x3] sm:$0x1]
      %v3403 = vlaneseq
      %v3404 = vshrl.u32 %v3403, 7
      %v3405 = vsub.s32 0, %v3404
      %v3406 = vrot.slane %v3402, %v3405
      %v3419 = vunpack.c.l.b16 %v3390
      %v3420 = vunpack.c.l.b16 %v3391
      %v3421 = vunpack.c.l.b16 %v3392
      %v3422 = vunpack.c.l.b16 %v3393
      %v3423 = vunpack.c.l.b16 %v3394
      %v3424 = vunpack.c.l.b16 %v3395
      %v3425 = vunpack.c.l.b16 %v3396
      %v3426 = vunpack.c.l.b16 %v3397
      %v3427 = vunpack.c.l.b16 %v3398
      %v3428 = vunpack.c.l.b16 %v3399
      %v3429 = vunpack.c.l.b16 %v3400
      %v3430 = vunpack.c.l.b16 %v3401
      %v3431 = vpack.c.b16 %v3420, %v3419
      %v3432 = vpack.c.b16 %v3422, %v3421
      %v3433 = vpack.c.b16 %v3424, %v3423
      %v3434 = vpack.c.b16 %v3426, %v3425
      %v3435 = vpack.c.b16 %v3428, %v3427
      %v3436 = vpack.c.b16 %v3430, %v3429
      %v3444 = vsel %vm1049, %v3381, 0
      %v3447 = vsel %vm1049, %v3382, 0
      %v3450 = vsel %vm1049, %v3383, 0
      %v3453 = vsel %vm1049, %v3384, 0
      %v3456 = vsel %vm1049, %v3385, 0
      %v3459 = vsel %vm1049, %v3386, 0
      %v3462 = vsel %vm1049, %v3387, 0
      %v3465 = vsel %vm1049, %v3388, 0
      %3467 = vmatprep.subr.bf16.mxu0 0
      %3468 = vmatpush1.bf16.msra.mxu0 %v3431
      %3469 = vmatprep.subr.bf16.mxu0 0
      %3470 = vmatpush1.bf16.msra.mxu0 %v3432
      %3471 = vmatprep.subr.bf16.mxu0 0
      %3472 = vmatpush1.bf16.msra.mxu0 %v3433
      %3473 = vmatprep.subr.bf16.mxu0 0
      %3474 = vmatpush1.bf16.msra.mxu0 %v3434
      %3475 = vmatprep.subr.bf16.mxu0 0
      %3476 = vmatpush1.bf16.msra.mxu0 %v3435
      %3477 = vmatprep.subr.bf16.mxu0 0
      %3478 = vmatpush1.bf16.msra.mxu0 %v3436
      %3479 = vmatprep.subr.bf16.mxu0 0
      %3480 = vmatpush1.bf16.msra.mxu0 0
      %3481 = vmatprep.subr.bf16.mxu0 0
      %3482 = vmatpush1.bf16.msra.mxu0 0
      %3483 = vmatprep.subr.bf16.mxu0 0
      %3484 = vmatpush1.bf16.msra.mxu0 0
      %3485 = vmatprep.subr.bf16.mxu0 0
      %3486 = vmatpush1.bf16.msra.mxu0 0
      %3487 = vmatprep.subr.bf16.mxu0 0
      %3488 = vmatpush1.bf16.msra.mxu0 0
      %3489 = vmatprep.subr.bf16.mxu0 0
      %3490 = vmatpush1.bf16.msra.mxu0 0
      %3491 = vmatprep.subr.bf16.mxu0 0
      %3492 = vmatpush1.bf16.msra.mxu0 0
      %3493 = vmatprep.subr.bf16.mxu0 0
      %3494 = vmatpush1.bf16.msra.mxu0 0
      %3495 = vmatprep.subr.bf16.mxu0 0
      %3496 = vmatpush1.bf16.msra.mxu0 0
      %3497 = vmatprep.subr.bf16.mxu0 0
      %3498 = vmatpush1.bf16.msra.mxu0 0
      %3499 = vmatprep.mubr.bf16.mxu0 0
      %3500 = vmatmul.mubr.bf16.gmra.mrb[0].mxu0 %v3444
      %v3501 = vpop.f32.mrb[0].mxu0
      %v3502 = vadd.f32 %v3406, %v3501
      %v3503 = vpop.f32.mrb[0].mxu0
      %v3504 = vpop.f32.mrb[0].mxu0
      %v3505 = vadd.f32 %v3406, %v3504
      %v3506 = vpop.f32.mrb[0].mxu0
      %3507 = vmatprep.mubr.bf16.mxu0 0
      %3508 = vmatmul.mubr.bf16.gmra.mrb[0].mxu0 %v3447
      %v3509 = vpop.f32.mrb[0].mxu0
      %v3510 = vadd.f32 %v3406, %v3509
      %v3511 = vpop.f32.mrb[0].mxu0
      %v3512 = vpop.f32.mrb[0].mxu0
      %v3513 = vadd.f32 %v3406, %v3512
      %v3514 = vpop.f32.mrb[0].mxu0
      %3515 = vmatprep.mubr.bf16.mxu0 0
      %3516 = vmatmul.mubr.bf16.gmra.mrb[0].mxu0 %v3450
      %v3517 = vpop.f32.mrb[0].mxu0
      %v3518 = vadd.f32 %v3406, %v3517
      %v3519 = vpop.f32.mrb[0].mxu0
      %v3520 = vpop.f32.mrb[0].mxu0
      %v3521 = vadd.f32 %v3406, %v3520
      %v3522 = vpop.f32.mrb[0].mxu0
      %3523 = vmatprep.mubr.bf16.mxu0 0
      %3524 = vmatmul.mubr.bf16.gmra.mrb[0].mxu0 %v3453
      %v3525 = vpop.f32.mrb[0].mxu0
      %v3526 = vadd.f32 %v3406, %v3525
      %v3527 = vpop.f32.mrb[0].mxu0
      %v3528 = vpop.f32.mrb[0].mxu0
      %v3529 = vadd.f32 %v3406, %v3528
      %v3530 = vpop.f32.mrb[0].mxu0
      %3531 = vmatprep.mubr.bf16.mxu0 0
      %3532 = vmatmul.mubr.bf16.gmra.mrb[0].mxu0 %v3456
      %v3533 = vpop.f32.mrb[0].mxu0
      %v3534 = vadd.f32 %v3406, %v3533
      %v3535 = vpop.f32.mrb[0].mxu0
      %v3536 = vpop.f32.mrb[0].mxu0
      %v3537 = vadd.f32 %v3406, %v3536
      %v3538 = vpop.f32.mrb[0].mxu0
      %3539 = vmatprep.mubr.bf16.mxu0 0
      %3540 = vmatmul.mubr.bf16.gmra.mrb[0].mxu0 %v3459
      %v3541 = vpop.f32.mrb[0].mxu0
      %v3542 = vadd.f32 %v3406, %v3541
      %v3543 = vpop.f32.mrb[0].mxu0
      %v3544 = vpop.f32.mrb[0].mxu0
      %v3545 = vadd.f32 %v3406, %v3544
      %v3546 = vpop.f32.mrb[0].mxu0
      %3547 = vmatprep.mubr.bf16.mxu0 0
      %3548 = vmatmul.mubr.bf16.gmra.mrb[0].mxu0 %v3462
      %v3549 = vpop.f32.mrb[0].mxu0
      %v3550 = vadd.f32 %v3406, %v3549
      %v3551 = vpop.f32.mrb[0].mxu0
      %v3552 = vpop.f32.mrb[0].mxu0
      %v3553 = vadd.f32 %v3406, %v3552
      %v3554 = vpop.f32.mrb[0].mxu0
      %3555 = vmatprep.mubr.bf16.mxu0 0
      %3556 = vmatmul.mubr.bf16.gmra.mrb[0].mxu0 %v3465
      %v3557 = vpop.f32.mrb[0].mxu0
      %v3558 = vadd.f32 %v3406, %v3557
      %v3559 = vpop.f32.mrb[0].mxu0
      %v3560 = vpop.f32.mrb[0].mxu0
      %v3561 = vadd.f32 %v3406, %v3560
      %v3562 = vpop.f32.mrb[0].mxu0
      %3563 = vdwg.mxu0
      %v3564 = vtanh.pop %v3502
      %v3565 = vtanh.pop %v3505
      %v3566 = vtanh.pop %v3510
      %v3567 = vtanh.pop %v3513
      %v3568 = vtanh.pop %v3518
      %v3569 = vtanh.pop %v3521
      %v3570 = vtanh.pop %v3526
      %v3571 = vtanh.pop %v3529
      %v3572 = vtanh.pop %v3534
      %v3573 = vtanh.pop %v3537
      %v3574 = vtanh.pop %v3542
      %v3575 = vtanh.pop %v3545
      %v3576 = vtanh.pop %v3550
      %v3577 = vtanh.pop %v3553
      %v3578 = vtanh.pop %v3558
      %v3579 = vtanh.pop %v3561
      %v3580 = vxor.u32 %v3502, 2147483648
      %v3581 = vxor.u32 %v3505, 2147483648
      %v3582 = vxor.u32 %v3510, 2147483648
      %v3583 = vxor.u32 %v3513, 2147483648
      %v3584 = vxor.u32 %v3518, 2147483648
      %v3585 = vxor.u32 %v3521, 2147483648
      %v3586 = vxor.u32 %v3526, 2147483648
      %v3587 = vxor.u32 %v3529, 2147483648
      %v3588 = vxor.u32 %v3534, 2147483648
      %v3589 = vxor.u32 %v3537, 2147483648
      %v3590 = vxor.u32 %v3542, 2147483648
      %v3591 = vxor.u32 %v3545, 2147483648
      %v3592 = vxor.u32 %v3550, 2147483648
      %v3593 = vxor.u32 %v3553, 2147483648
      %v3594 = vxor.u32 %v3558, 2147483648
      %v3595 = vxor.u32 %v3561, 2147483648
      %v3596 = vmul.f32 %v3580, 1.442695
      %v3597 = vpow.pop %v3596
      %v3598 = vmul.f32 %v3581, 1.442695
      %v3599 = vpow.pop %v3598
      %v3600 = vmul.f32 %v3582, 1.442695
      %v3601 = vpow.pop %v3600
      %v3602 = vmul.f32 %v3583, 1.442695
      %v3603 = vpow.pop %v3602
      %v3604 = vmul.f32 %v3584, 1.442695
      %v3605 = vpow.pop %v3604
      %v3606 = vmul.f32 %v3585, 1.442695
      %v3607 = vpow.pop %v3606
      %v3608 = vmul.f32 %v3586, 1.442695
      %v3609 = vpow.pop %v3608
      %v3610 = vmul.f32 %v3587, 1.442695
      %v3611 = vpow.pop %v3610
      %v3612 = vmul.f32 %v3588, 1.442695
      %v3613 = vpow.pop %v3612
      %v3614 = vmul.f32 %v3589, 1.442695
      %v3615 = vpow.pop %v3614
      %v3616 = vmul.f32 %v3590, 1.442695
      %v3617 = vpow.pop %v3616
      %v3618 = vmul.f32 %v3591, 1.442695
      %v3619 = vpow.pop %v3618
      %v3620 = vmul.f32 %v3592, 1.442695
      %v3621 = vpow.pop %v3620
      %v3622 = vmul.f32 %v3593, 1.442695
      %v3623 = vpow.pop %v3622
      %v3624 = vmul.f32 %v3594, 1.442695
      %v3625 = vpow.pop %v3624
      %v3626 = vmul.f32 %v3595, 1.442695
      %v3627 = vpow.pop %v3626
      %v3628 = vadd.f32 %v3597, 1.0
      %v3629 = vadd.f32 %v3599, 1.0
      %v3630 = vadd.f32 %v3601, 1.0
      %v3631 = vadd.f32 %v3603, 1.0
      %v3632 = vadd.f32 %v3605, 1.0
      %v3633 = vadd.f32 %v3607, 1.0
      %v3634 = vadd.f32 %v3609, 1.0
      %v3635 = vadd.f32 %v3611, 1.0
      %v3636 = vadd.f32 %v3613, 1.0
      %v3637 = vadd.f32 %v3615, 1.0
      %v3638 = vadd.f32 %v3617, 1.0
      %v3639 = vadd.f32 %v3619, 1.0
      %v3640 = vadd.f32 %v3621, 1.0
      %v3641 = vadd.f32 %v3623, 1.0
      %v3642 = vadd.f32 %v3625, 1.0
      %v3643 = vadd.f32 %v3627, 1.0
      %v3644 = vrcp.pop %v3628
      %v3645 = vmul.f32 1.0, %v3644
      %v3646 = vrcp.pop %v3629
      %v3647 = vmul.f32 1.0, %v3646
      %v3648 = vrcp.pop %v3630
      %v3649 = vmul.f32 1.0, %v3648
      %v3650 = vrcp.pop %v3631
      %v3651 = vmul.f32 1.0, %v3650
      %v3652 = vrcp.pop %v3632
      %v3653 = vmul.f32 1.0, %v3652
      %v3654 = vrcp.pop %v3633
      %v3655 = vmul.f32 1.0, %v3654
      %v3656 = vrcp.pop %v3634
      %v3657 = vmul.f32 1.0, %v3656
      %v3658 = vrcp.pop %v3635
      %v3659 = vmul.f32 1.0, %v3658
      %v3660 = vrcp.pop %v3636
      %v3661 = vmul.f32 1.0, %v3660
      %v3662 = vrcp.pop %v3637
      %v3663 = vmul.f32 1.0, %v3662
      %v3664 = vrcp.pop %v3638
      %v3665 = vmul.f32 1.0, %v3664
      %v3666 = vrcp.pop %v3639
      %v3667 = vmul.f32 1.0, %v3666
      %v3668 = vrcp.pop %v3640
      %v3669 = vmul.f32 1.0, %v3668
      %v3670 = vrcp.pop %v3641
      %v3671 = vmul.f32 1.0, %v3670
      %v3672 = vrcp.pop %v3642
      %v3673 = vmul.f32 1.0, %v3672
      %v3674 = vrcp.pop %v3643
      %v3675 = vmul.f32 1.0, %v3674
      %3692 = vrot.lane.b32.xlu0 %v3645, 96
      %v3693 = vpop.permute.xlu0 %3692
      %3694 = vrot.lane.b32.xlu0 %v3647, 96
      %v3695 = vpop.permute.xlu0 %3694
      %3696 = vrot.lane.b32.xlu0 %v3649, 96
      %v3697 = vpop.permute.xlu0 %3696
      %3698 = vrot.lane.b32.xlu0 %v3651, 96
      %v3699 = vpop.permute.xlu0 %3698
      %3700 = vrot.lane.b32.xlu0 %v3653, 96
      %v3701 = vpop.permute.xlu0 %3700
      %3702 = vrot.lane.b32.xlu0 %v3655, 96
      %v3703 = vpop.permute.xlu0 %3702
      %3704 = vrot.lane.b32.xlu0 %v3657, 96
      %v3705 = vpop.permute.xlu0 %3704
      %3706 = vrot.lane.b32.xlu0 %v3659, 96
      %v3707 = vpop.permute.xlu0 %3706
      %3708 = vrot.lane.b32.xlu0 %v3661, 96
      %v3709 = vpop.permute.xlu0 %3708
      %3710 = vrot.lane.b32.xlu0 %v3663, 96
      %v3711 = vpop.permute.xlu0 %3710
      %3712 = vrot.lane.b32.xlu0 %v3665, 96
      %v3713 = vpop.permute.xlu0 %3712
      %3714 = vrot.lane.b32.xlu0 %v3667, 96
      %v3715 = vpop.permute.xlu0 %3714
      %3716 = vrot.lane.b32.xlu0 %v3669, 96
      %v3717 = vpop.permute.xlu0 %3716
      %3718 = vrot.lane.b32.xlu0 %v3671, 96
      %v3719 = vpop.permute.xlu0 %3718
      %3720 = vrot.lane.b32.xlu0 %v3673, 96
      %v3721 = vpop.permute.xlu0 %3720
      %3722 = vrot.lane.b32.xlu0 %v3675, 96
      %v3723 = vpop.permute.xlu0 %3722
      %v3740 = vmul.f32 %v3564, %v3693
      %v3741 = vmul.f32 %v3565, %v3695
      %v3742 = vmul.f32 %v3566, %v3697
      %v3743 = vmul.f32 %v3567, %v3699
      %v3744 = vmul.f32 %v3568, %v3701
      %v3745 = vmul.f32 %v3569, %v3703
      %v3746 = vmul.f32 %v3570, %v3705
      %v3747 = vmul.f32 %v3571, %v3707
      %v3748 = vmul.f32 %v3572, %v3709
      %v3749 = vmul.f32 %v3573, %v3711
      %v3750 = vmul.f32 %v3574, %v3713
      %v3751 = vmul.f32 %v3575, %v3715
      %v3752 = vmul.f32 %v3576, %v3717
      %v3753 = vmul.f32 %v3577, %v3719
      %v3754 = vmul.f32 %v3578, %v3721
      %v3755 = vmul.f32 %v3579, %v3723
      %v3756 = vpack.c.bf16 %v3741, %v3740
      %v3757 = vpack.c.bf16 %v3743, %v3742
      %v3758 = vpack.c.bf16 %v3745, %v3744
      %v3759 = vpack.c.bf16 %v3747, %v3746
      %v3760 = vpack.c.bf16 %v3749, %v3748
      %v3761 = vpack.c.bf16 %v3751, %v3750
      %v3762 = vpack.c.bf16 %v3753, %v3752
      %v3763 = vpack.c.bf16 %v3755, %v3754
      %v3764 = vld [vmem:[%s8] sm:$0xf]
      %v3765 = vld [vmem:[%s8 + $0x4] sm:$0xf]
      %v3766 = vld [vmem:[%s8 + $0x8] sm:$0xf]
      %v3767 = vld [vmem:[%s8 + $0xc] sm:$0xf]
      %v3768 = vld [vmem:[%s9] sm:$0x1]
      %v3770 = vlaneseq
      %v3771 = vshrl.u32 %v3770, 7
      %v3772 = vsub.s32 0, %v3771
      %v3773 = vrot.slane %v3768, %v3772
      %v3779 = vunpack.c.l.b16 %v3764
      %v3780 = vunpack.c.l.b16 %v3765
      %v3781 = vunpack.c.l.b16 %v3766
      %v3782 = vunpack.c.l.b16 %v3767
      %v3783 = vpack.c.b16 %v3780, %v3779
      %v3784 = vpack.c.b16 %v3782, %v3781
      %v3788 = vsel %vm762, %v3756, 0
      %v3791 = vsel %vm762, %v3757, 0
      %v3794 = vsel %vm762, %v3758, 0
      %v3797 = vsel %vm762, %v3759, 0
      %v3800 = vsel %vm762, %v3760, 0
      %v3803 = vsel %vm762, %v3761, 0
      %v3806 = vsel %vm762, %v3762, 0
      %v3809 = vsel %vm762, %v3763, 0
      %3811 = vmatprep.subr.bf16.mxu0 0
      %3812 = vmatpush1.bf16.msra.mxu0 %v3783
      %3813 = vmatprep.subr.bf16.mxu0 0
      %3814 = vmatpush1.bf16.msra.mxu0 %v3784
      %3815 = vmatprep.subr.bf16.mxu0 0
      %3816 = vmatpush1.bf16.msra.mxu0 0
      %3817 = vmatprep.subr.bf16.mxu0 0
      %3818 = vmatpush1.bf16.msra.mxu0 0
      %3819 = vmatprep.subr.bf16.mxu0 0
      %3820 = vmatpush1.bf16.msra.mxu0 0
      %3821 = vmatprep.subr.bf16.mxu0 0
      %3822 = vmatpush1.bf16.msra.mxu0 0
      %3823 = vmatprep.subr.bf16.mxu0 0
      %3824 = vmatpush1.bf16.msra.mxu0 0
      %3825 = vmatprep.subr.bf16.mxu0 0
      %3826 = vmatpush1.bf16.msra.mxu0 0
      %3827 = vmatprep.subr.bf16.mxu0 0
      %3828 = vmatpush1.bf16.msra.mxu0 0
      %3829 = vmatprep.subr.bf16.mxu0 0
      %3830 = vmatpush1.bf16.msra.mxu0 0
      %3831 = vmatprep.subr.bf16.mxu0 0
      %3832 = vmatpush1.bf16.msra.mxu0 0
      %3833 = vmatprep.subr.bf16.mxu0 0
      %3834 = vmatpush1.bf16.msra.mxu0 0
      %3835 = vmatprep.subr.bf16.mxu0 0
      %3836 = vmatpush1.bf16.msra.mxu0 0
      %3837 = vmatprep.subr.bf16.mxu0 0
      %3838 = vmatpush1.bf16.msra.mxu0 0
      %3839 = vmatprep.subr.bf16.mxu0 0
      %3840 = vmatpush1.bf16.msra.mxu0 0
      %3841 = vmatprep.subr.bf16.mxu0 0
      %3842 = vmatpush1.bf16.msra.mxu0 0
      %3843 = vmatprep.mubr.bf16.mxu0 0
      %3844 = vmatmul.mubr.bf16.gmra.mrb[0].mxu0 %v3788
      %v3845 = vpop.f32.mrb[0].mxu0
      %v3846 = vadd.f32 %v3773, %v3845
      %v3847 = vpop.f32.mrb[0].mxu0
      %v3848 = vpop.f32.mrb[0].mxu0
      %v3849 = vadd.f32 %v3773, %v3848
      %v3850 = vpop.f32.mrb[0].mxu0
      %3851 = vmatprep.mubr.bf16.mxu0 0
      %3852 = vmatmul.mubr.bf16.gmra.mrb[0].mxu0 %v3791
      %v3853 = vpop.f32.mrb[0].mxu0
      %v3854 = vadd.f32 %v3773, %v3853
      %v3855 = vpop.f32.mrb[0].mxu0
      %v3856 = vpop.f32.mrb[0].mxu0
      %v3857 = vadd.f32 %v3773, %v3856
      %v3858 = vpop.f32.mrb[0].mxu0
      %3859 = vmatprep.mubr.bf16.mxu0 0
      %3860 = vmatmul.mubr.bf16.gmra.mrb[0].mxu0 %v3794
      %v3861 = vpop.f32.mrb[0].mxu0
      %v3862 = vadd.f32 %v3773, %v3861
      %v3863 = vpop.f32.mrb[0].mxu0
      %v3864 = vpop.f32.mrb[0].mxu0
      %v3865 = vadd.f32 %v3773, %v3864
      %v3866 = vpop.f32.mrb[0].mxu0
      %3867 = vmatprep.mubr.bf16.mxu0 0
      %3868 = vmatmul.mubr.bf16.gmra.mrb[0].mxu0 %v3797
      %v3869 = vpop.f32.mrb[0].mxu0
      %v3870 = vadd.f32 %v3773, %v3869
      %v3871 = vpop.f32.mrb[0].mxu0
      %v3872 = vpop.f32.mrb[0].mxu0
      %v3873 = vadd.f32 %v3773, %v3872
      %v3874 = vpop.f32.mrb[0].mxu0
      %3875 = vmatprep.mubr.bf16.mxu0 0
      %3876 = vmatmul.mubr.bf16.gmra.mrb[0].mxu0 %v3800
      %v3877 = vpop.f32.mrb[0].mxu0
      %v3878 = vadd.f32 %v3773, %v3877
      %v3879 = vpop.f32.mrb[0].mxu0
      %v3880 = vpop.f32.mrb[0].mxu0
      %v3881 = vadd.f32 %v3773, %v3880
      %v3882 = vpop.f32.mrb[0].mxu0
      %3883 = vmatprep.mubr.bf16.mxu0 0
      %3884 = vmatmul.mubr.bf16.gmra.mrb[0].mxu0 %v3803
      %v3885 = vpop.f32.mrb[0].mxu0
      %v3886 = vadd.f32 %v3773, %v3885
      %v3887 = vpop.f32.mrb[0].mxu0
      %v3888 = vpop.f32.mrb[0].mxu0
      %v3889 = vadd.f32 %v3773, %v3888
      %v3890 = vpop.f32.mrb[0].mxu0
      %3891 = vmatprep.mubr.bf16.mxu0 0
      %3892 = vmatmul.mubr.bf16.gmra.mrb[0].mxu0 %v3806
      %v3893 = vpop.f32.mrb[0].mxu0
      %v3894 = vadd.f32 %v3773, %v3893
      %v3895 = vpop.f32.mrb[0].mxu0
      %v3896 = vpop.f32.mrb[0].mxu0
      %v3897 = vadd.f32 %v3773, %v3896
      %v3898 = vpop.f32.mrb[0].mxu0
      %3899 = vmatprep.mubr.bf16.mxu0 0
      %3900 = vmatmul.mubr.bf16.gmra.mrb[0].mxu0 %v3809
      %v3901 = vpop.f32.mrb[0].mxu0
      %v3902 = vadd.f32 %v3773, %v3901
      %v3903 = vpop.f32.mrb[0].mxu0
      %v3904 = vpop.f32.mrb[0].mxu0
      %v3905 = vadd.f32 %v3773, %v3904
      %v3906 = vpop.f32.mrb[0].mxu0
      %3907 = vdwg.mxu0
      %3924 = vrot.lane.b32.xlu0 %v3846, 32
      %v3925 = vpop.permute.xlu0 %3924
      %3926 = vrot.lane.b32.xlu0 %v3849, 32
      %v3927 = vpop.permute.xlu0 %3926
      %3928 = vrot.lane.b32.xlu0 %v3854, 32
      %v3929 = vpop.permute.xlu0 %3928
      %3930 = vrot.lane.b32.xlu0 %v3857, 32
      %v3931 = vpop.permute.xlu0 %3930
      %3932 = vrot.lane.b32.xlu0 %v3862, 32
      %v3933 = vpop.permute.xlu0 %3932
      %3934 = vrot.lane.b32.xlu0 %v3865, 32
      %v3935 = vpop.permute.xlu0 %3934
      %3936 = vrot.lane.b32.xlu0 %v3870, 32
      %v3937 = vpop.permute.xlu0 %3936
      %3938 = vrot.lane.b32.xlu0 %v3873, 32
      %v3939 = vpop.permute.xlu0 %3938
      %3940 = vrot.lane.b32.xlu0 %v3878, 32
      %v3941 = vpop.permute.xlu0 %3940
      %3942 = vrot.lane.b32.xlu0 %v3881, 32
      %v3943 = vpop.permute.xlu0 %3942
      %3944 = vrot.lane.b32.xlu0 %v3886, 32
      %v3945 = vpop.permute.xlu0 %3944
      %3946 = vrot.lane.b32.xlu0 %v3889, 32
      %v3947 = vpop.permute.xlu0 %3946
      %3948 = vrot.lane.b32.xlu0 %v3894, 32
      %v3949 = vpop.permute.xlu0 %3948
      %3950 = vrot.lane.b32.xlu0 %v3897, 32
      %v3951 = vpop.permute.xlu0 %3950
      %3952 = vrot.lane.b32.xlu0 %v3902, 32
      %v3953 = vpop.permute.xlu0 %3952
      %3954 = vrot.lane.b32.xlu0 %v3905, 32
      %v3955 = vpop.permute.xlu0 %3954
      %v3972 = vadd.f32 %v3141, %v3925
      %v3973 = vadd.f32 %v3142, %v3927
      %v3974 = vadd.f32 %v3143, %v3929
      %v3975 = vadd.f32 %v3144, %v3931
      %v3976 = vadd.f32 %v3145, %v3933
      %v3977 = vadd.f32 %v3146, %v3935
      %v3978 = vadd.f32 %v3147, %v3937
      %v3979 = vadd.f32 %v3148, %v3939
      %v3980 = vadd.f32 %v3149, %v3941
      %v3981 = vadd.f32 %v3150, %v3943
      %v3982 = vadd.f32 %v3151, %v3945
      %v3983 = vadd.f32 %v3152, %v3947
      %v3984 = vadd.f32 %v3153, %v3949
      %v3985 = vadd.f32 %v3154, %v3951
      %v3986 = vadd.f32 %v3155, %v3953
      %v3987 = vadd.f32 %v3156, %v3955
      %v3988 = vmul.f32 %v3972, %v527
      %v3989 = vmul.f32 %v3973, %v532
      %v3990 = vmul.f32 %v3974, %v537
      %v3991 = vmul.f32 %v3975, %v542
      %v3992 = vmul.f32 %v3976, %v547
      %v3993 = vmul.f32 %v3977, %v552
      %v3994 = vmul.f32 %v3978, %v557
      %v3995 = vmul.f32 %v3979, %v562
      %v3996 = vmul.f32 %v3980, %v567
      %v3997 = vmul.f32 %v3981, %v572
      %v3998 = vmul.f32 %v3982, %v577
      %v3999 = vmul.f32 %v3983, %v582
      %v4000 = vmul.f32 %v3984, %v587
      %v4001 = vmul.f32 %v3985, %v592
      %v4002 = vmul.f32 %v3986, %v597
      %v4003 = vmul.f32 %v3987, %v602
      %v4004 = vpack.c.bf16 %v3989, %v3988
      %v4005 = vpack.c.bf16 %v3991, %v3990
      %v4006 = vpack.c.bf16 %v3993, %v3992
      %v4007 = vpack.c.bf16 %v3995, %v3994
      %v4008 = vpack.c.bf16 %v3997, %v3996
      %v4009 = vpack.c.bf16 %v3999, %v3998
      %v4010 = vpack.c.bf16 %v4001, %v4000
      %v4011 = vpack.c.bf16 %v4003, %v4002
      %v4012 = vld [vmem:[%s10] sm:$0xf]
      %v4013 = vld [vmem:[%s10 + $0x4] sm:$0xf]
      %v4014 = vld [vmem:[%s10 + $0x8] sm:$0xf]
      %v4015 = vld [vmem:[%s10 + $0xc] sm:$0xf]
      %v4016 = vld [vmem:[%s11] sm:$0x1]
      %v4018 = vlaneseq
      %v4019 = vshrl.u32 %v4018, 7
      %v4020 = vsub.s32 0, %v4019
      %v4021 = vrot.slane %v4016, %v4020
      %4031 = vrot.lane.b32.xlu0 %v4004, 96
      %v4032 = vpop.permute.xlu0 %4031
      %4033 = vrot.lane.b32.xlu0 %v4005, 96
      %v4034 = vpop.permute.xlu0 %4033
      %4035 = vrot.lane.b32.xlu0 %v4006, 96
      %v4036 = vpop.permute.xlu0 %4035
      %4037 = vrot.lane.b32.xlu0 %v4007, 96
      %v4038 = vpop.permute.xlu0 %4037
      %4039 = vrot.lane.b32.xlu0 %v4008, 96
      %v4040 = vpop.permute.xlu0 %4039
      %4041 = vrot.lane.b32.xlu0 %v4009, 96
      %v4042 = vpop.permute.xlu0 %4041
      %4043 = vrot.lane.b32.xlu0 %v4010, 96
      %v4044 = vpop.permute.xlu0 %4043
      %4045 = vrot.lane.b32.xlu0 %v4011, 96
      %v4046 = vpop.permute.xlu0 %4045
      %v4051 = vunpack.c.l.b16 %v4012
      %v4052 = vunpack.c.l.b16 %v4013
      %v4053 = vunpack.c.l.b16 %v4014
      %v4054 = vunpack.c.l.b16 %v4015
      %v4055 = vpack.c.b16 %v4052, %v4051
      %v4056 = vpack.c.b16 %v4054, %v4053
      %v4060 = vsel %vm762, %v4032, 0
      %v4063 = vsel %vm762, %v4034, 0
      %v4066 = vsel %vm762, %v4036, 0
      %v4069 = vsel %vm762, %v4038, 0
      %v4072 = vsel %vm762, %v4040, 0
      %v4075 = vsel %vm762, %v4042, 0
      %v4078 = vsel %vm762, %v4044, 0
      %v4081 = vsel %vm762, %v4046, 0
      %4083 = vmatprep.subr.bf16.mxu0 0
      %4084 = vmatpush1.bf16.msra.mxu0 %v4055
      %4085 = vmatprep.subr.bf16.mxu0 0
      %4086 = vmatpush1.bf16.msra.mxu0 %v4056
      %4087 = vmatprep.subr.bf16.mxu0 0
      %4088 = vmatpush1.bf16.msra.mxu0 0
      %4089 = vmatprep.subr.bf16.mxu0 0
      %4090 = vmatpush1.bf16.msra.mxu0 0
      %4091 = vmatprep.subr.bf16.mxu0 0
      %4092 = vmatpush1.bf16.msra.mxu0 0
      %4093 = vmatprep.subr.bf16.mxu0 0
      %4094 = vmatpush1.bf16.msra.mxu0 0
      %4095 = vmatprep.subr.bf16.mxu0 0
      %4096 = vmatpush1.bf16.msra.mxu0 0
      %4097 = vmatprep.subr.bf16.mxu0 0
      %4098 = vmatpush1.bf16.msra.mxu0 0
      %4099 = vmatprep.subr.bf16.mxu0 0
      %4100 = vmatpush1.bf16.msra.mxu0 0
      %4101 = vmatprep.subr.bf16.mxu0 0
      %4102 = vmatpush1.bf16.msra.mxu0 0
      %4103 = vmatprep.subr.bf16.mxu0 0
      %4104 = vmatpush1.bf16.msra.mxu0 0
      %4105 = vmatprep.subr.bf16.mxu0 0
      %4106 = vmatpush1.bf16.msra.mxu0 0
      %4107 = vmatprep.subr.bf16.mxu0 0
      %4108 = vmatpush1.bf16.msra.mxu0 0
      %4109 = vmatprep.subr.bf16.mxu0 0
      %4110 = vmatpush1.bf16.msra.mxu0 0
      %4111 = vmatprep.subr.bf16.mxu0 0
      %4112 = vmatpush1.bf16.msra.mxu0 0
      %4113 = vmatprep.subr.bf16.mxu0 0
      %4114 = vmatpush1.bf16.msra.mxu0 0
      %4115 = vmatprep.mubr.bf16.mxu0 0
      %4116 = vmatmul.mubr.bf16.gmra.mrb[0].mxu0 %v4060
      %v4117 = vpop.f32.mrb[0].mxu0
      %v4118 = vadd.f32 %v4021, %v4117
      %v4119 = vpop.f32.mrb[0].mxu0
      %v4120 = vpop.f32.mrb[0].mxu0
      %v4121 = vadd.f32 %v4021, %v4120
      %v4122 = vpop.f32.mrb[0].mxu0
      %4123 = vmatprep.mubr.bf16.mxu0 0
      %4124 = vmatmul.mubr.bf16.gmra.mrb[0].mxu0 %v4063
      %v4125 = vpop.f32.mrb[0].mxu0
      %v4126 = vadd.f32 %v4021, %v4125
      %v4127 = vpop.f32.mrb[0].mxu0
      %v4128 = vpop.f32.mrb[0].mxu0
      %v4129 = vadd.f32 %v4021, %v4128
      %v4130 = vpop.f32.mrb[0].mxu0
      %4131 = vmatprep.mubr.bf16.mxu0 0
      %4132 = vmatmul.mubr.bf16.gmra.mrb[0].mxu0 %v4066
      %v4133 = vpop.f32.mrb[0].mxu0
      %v4134 = vadd.f32 %v4021, %v4133
      %v4135 = vpop.f32.mrb[0].mxu0
      %v4136 = vpop.f32.mrb[0].mxu0
      %v4137 = vadd.f32 %v4021, %v4136
      %v4138 = vpop.f32.mrb[0].mxu0
      %4139 = vmatprep.mubr.bf16.mxu0 0
      %4140 = vmatmul.mubr.bf16.gmra.mrb[0].mxu0 %v4069
      %v4141 = vpop.f32.mrb[0].mxu0
      %v4142 = vadd.f32 %v4021, %v4141
      %v4143 = vpop.f32.mrb[0].mxu0
      %v4144 = vpop.f32.mrb[0].mxu0
      %v4145 = vadd.f32 %v4021, %v4144
      %v4146 = vpop.f32.mrb[0].mxu0
      %4147 = vmatprep.mubr.bf16.mxu0 0
      %4148 = vmatmul.mubr.bf16.gmra.mrb[0].mxu0 %v4072
      %v4149 = vpop.f32.mrb[0].mxu0
      %v4150 = vadd.f32 %v4021, %v4149
      %v4151 = vpop.f32.mrb[0].mxu0
      %v4152 = vpop.f32.mrb[0].mxu0
      %v4153 = vadd.f32 %v4021, %v4152
      %v4154 = vpop.f32.mrb[0].mxu0
      %4155 = vmatprep.mubr.bf16.mxu0 0
      %4156 = vmatmul.mubr.bf16.gmra.mrb[0].mxu0 %v4075
      %v4157 = vpop.f32.mrb[0].mxu0
      %v4158 = vadd.f32 %v4021, %v4157
      %v4159 = vpop.f32.mrb[0].mxu0
      %v4160 = vpop.f32.mrb[0].mxu0
      %v4161 = vadd.f32 %v4021, %v4160
      %v4162 = vpop.f32.mrb[0].mxu0
      %4163 = vmatprep.mubr.bf16.mxu0 0
      %4164 = vmatmul.mubr.bf16.gmra.mrb[0].mxu0 %v4078
      %v4165 = vpop.f32.mrb[0].mxu0
      %v4166 = vadd.f32 %v4021, %v4165
      %v4167 = vpop.f32.mrb[0].mxu0
      %v4168 = vpop.f32.mrb[0].mxu0
      %v4169 = vadd.f32 %v4021, %v4168
      %v4170 = vpop.f32.mrb[0].mxu0
      %4171 = vmatprep.mubr.bf16.mxu0 0
      %4172 = vmatmul.mubr.bf16.gmra.mrb[0].mxu0 %v4081
      %v4173 = vpop.f32.mrb[0].mxu0
      %v4174 = vadd.f32 %v4021, %v4173
      %v4175 = vpop.f32.mrb[0].mxu0
      %v4176 = vpop.f32.mrb[0].mxu0
      %v4177 = vadd.f32 %v4021, %v4176
      %v4178 = vpop.f32.mrb[0].mxu0
      %4179 = vdwg.mxu0
      %v4180 = vmul.f32 %v4118, 1.442695
      %v4181 = vpow.pop %v4180
      %v4182 = vmul.f32 %v4121, 1.442695
      %v4183 = vpow.pop %v4182
      %v4184 = vmul.f32 %v4126, 1.442695
      %v4185 = vpow.pop %v4184
      %v4186 = vmul.f32 %v4129, 1.442695
      %v4187 = vpow.pop %v4186
      %v4188 = vmul.f32 %v4134, 1.442695
      %v4189 = vpow.pop %v4188
      %v4190 = vmul.f32 %v4137, 1.442695
      %v4191 = vpow.pop %v4190
      %v4192 = vmul.f32 %v4142, 1.442695
      %v4193 = vpow.pop %v4192
      %v4194 = vmul.f32 %v4145, 1.442695
      %v4195 = vpow.pop %v4194
      %v4196 = vmul.f32 %v4150, 1.442695
      %v4197 = vpow.pop %v4196
      %v4198 = vmul.f32 %v4153, 1.442695
      %v4199 = vpow.pop %v4198
      %v4200 = vmul.f32 %v4158, 1.442695
      %v4201 = vpow.pop %v4200
      %v4202 = vmul.f32 %v4161, 1.442695
      %v4203 = vpow.pop %v4202
      %v4204 = vmul.f32 %v4166, 1.442695
      %v4205 = vpow.pop %v4204
      %v4206 = vmul.f32 %v4169, 1.442695
      %v4207 = vpow.pop %v4206
      %v4208 = vmul.f32 %v4174, 1.442695
      %v4209 = vpow.pop %v4208
      %v4210 = vmul.f32 %v4177, 1.442695
      %v4211 = vpow.pop %v4210
      %v4212 = vmul.f32 %v4181, %v492
      %v4213 = vmul.f32 %v4183, %v493
      %v4214 = vmul.f32 %v4185, %v494
      %v4215 = vmul.f32 %v4187, %v495
      %v4216 = vmul.f32 %v4189, %v496
      %v4217 = vmul.f32 %v4191, %v497
      %v4218 = vmul.f32 %v4193, %v498
      %v4219 = vmul.f32 %v4195, %v499
      %v4220 = vmul.f32 %v4197, %v500
      %v4221 = vmul.f32 %v4199, %v501
      %v4222 = vmul.f32 %v4201, %v502
      %v4223 = vmul.f32 %v4203, %v503
      %v4224 = vmul.f32 %v4205, %v504
      %v4225 = vmul.f32 %v4207, %v505
      %v4226 = vmul.f32 %v4209, %v506
      %v4227 = vmul.f32 %v4211, %v507
      %4244 = vrot.lane.b32.xlu0 %v4212, 124
      %v4245 = vpop.permute.xlu0 %4244
      %4246 = vrot.lane.b32.xlu0 %v4213, 124
      %v4247 = vpop.permute.xlu0 %4246
      %4248 = vrot.lane.b32.xlu0 %v4214, 124
      %v4249 = vpop.permute.xlu0 %4248
      %4250 = vrot.lane.b32.xlu0 %v4215, 124
      %v4251 = vpop.permute.xlu0 %4250
      %4252 = vrot.lane.b32.xlu0 %v4216, 124
      %v4253 = vpop.permute.xlu0 %4252
      %4254 = vrot.lane.b32.xlu0 %v4217, 124
      %v4255 = vpop.permute.xlu0 %4254
      %4256 = vrot.lane.b32.xlu0 %v4218, 124
      %v4257 = vpop.permute.xlu0 %4256
      %4258 = vrot.lane.b32.xlu0 %v4219, 124
      %v4259 = vpop.permute.xlu0 %4258
      %4260 = vrot.lane.b32.xlu0 %v4220, 124
      %v4261 = vpop.permute.xlu0 %4260
      %4262 = vrot.lane.b32.xlu0 %v4221, 124
      %v4263 = vpop.permute.xlu0 %4262
      %4264 = vrot.lane.b32.xlu0 %v4222, 124
      %v4265 = vpop.permute.xlu0 %4264
      %4266 = vrot.lane.b32.xlu0 %v4223, 124
      %v4267 = vpop.permute.xlu0 %4266
      %4268 = vrot.lane.b32.xlu0 %v4224, 124
      %v4269 = vpop.permute.xlu0 %4268
      %4270 = vrot.lane.b32.xlu0 %v4225, 124
      %v4271 = vpop.permute.xlu0 %4270
      %4272 = vrot.lane.b32.xlu0 %v4226, 124
      %v4273 = vpop.permute.xlu0 %4272
      %4274 = vrot.lane.b32.xlu0 %v4227, 124
      %v4275 = vpop.permute.xlu0 %4274
      %v4292 = vadd.f32 %v4118, %v4245
      %v4293 = vadd.f32 %v4121, %v4247
      %v4294 = vadd.f32 %v4126, %v4249
      %v4295 = vadd.f32 %v4129, %v4251
      %v4296 = vadd.f32 %v4134, %v4253
      %v4297 = vadd.f32 %v4137, %v4255
      %v4298 = vadd.f32 %v4142, %v4257
      %v4299 = vadd.f32 %v4145, %v4259
      %v4300 = vadd.f32 %v4150, %v4261
      %v4301 = vadd.f32 %v4153, %v4263
      %v4302 = vadd.f32 %v4158, %v4265
      %v4303 = vadd.f32 %v4161, %v4267
      %v4304 = vadd.f32 %v4166, %v4269
      %v4305 = vadd.f32 %v4169, %v4271
      %v4306 = vadd.f32 %v4174, %v4273
      %v4307 = vadd.f32 %v4177, %v4275
      %v4308 = vmul.f32 %v4292, %v527
      %v4309 = vmul.f32 %v4293, %v532
      %v4310 = vmul.f32 %v4294, %v537
      %v4311 = vmul.f32 %v4295, %v542
      %v4312 = vmul.f32 %v4296, %v547
      %v4313 = vmul.f32 %v4297, %v552
      %v4314 = vmul.f32 %v4298, %v557
      %v4315 = vmul.f32 %v4299, %v562
      %v4316 = vmul.f32 %v4300, %v567
      %v4317 = vmul.f32 %v4301, %v572
      %v4318 = vmul.f32 %v4302, %v577
      %v4319 = vmul.f32 %v4303, %v582
      %v4320 = vmul.f32 %v4304, %v587
      %v4321 = vmul.f32 %v4305, %v592
      %v4322 = vmul.f32 %v4306, %v597
      %v4323 = vmul.f32 %v4307, %v602
      %v4324 = vmul.f32 %v4118, %v527
      %v4325 = vmul.f32 %v4121, %v532
      %v4326 = vmul.f32 %v4126, %v537
      %v4327 = vmul.f32 %v4129, %v542
      %v4328 = vmul.f32 %v4134, %v547
      %v4329 = vmul.f32 %v4137, %v552
      %v4330 = vmul.f32 %v4142, %v557
      %v4331 = vmul.f32 %v4145, %v562
      %v4332 = vmul.f32 %v4150, %v567
      %v4333 = vmul.f32 %v4153, %v572
      %v4334 = vmul.f32 %v4158, %v577
      %v4335 = vmul.f32 %v4161, %v582
      %v4336 = vmul.f32 %v4166, %v587
      %v4337 = vmul.f32 %v4169, %v592
      %v4338 = vmul.f32 %v4174, %v597
      %v4339 = vmul.f32 %v4177, %v602
      %4356 = vrot.lane.b32.xlu0 %v4308, 4
      %v4357 = vpop.permute.xlu0 %4356
      %4358 = vrot.lane.b32.xlu0 %v4309, 4
      %v4359 = vpop.permute.xlu0 %4358
      %4360 = vrot.lane.b32.xlu0 %v4310, 4
      %v4361 = vpop.permute.xlu0 %4360
      %4362 = vrot.lane.b32.xlu0 %v4311, 4
      %v4363 = vpop.permute.xlu0 %4362
      %4364 = vrot.lane.b32.xlu0 %v4312, 4
      %v4365 = vpop.permute.xlu0 %4364
      %4366 = vrot.lane.b32.xlu0 %v4313, 4
      %v4367 = vpop.permute.xlu0 %4366
      %4368 = vrot.lane.b32.xlu0 %v4314, 4
      %v4369 = vpop.permute.xlu0 %4368
      %4370 = vrot.lane.b32.xlu0 %v4315, 4
      %v4371 = vpop.permute.xlu0 %4370
      %4372 = vrot.lane.b32.xlu0 %v4316, 4
      %v4373 = vpop.permute.xlu0 %4372
      %4374 = vrot.lane.b32.xlu0 %v4317, 4
      %v4375 = vpop.permute.xlu0 %4374
      %4376 = vrot.lane.b32.xlu0 %v4318, 4
      %v4377 = vpop.permute.xlu0 %4376
      %4378 = vrot.lane.b32.xlu0 %v4319, 4
      %v4379 = vpop.permute.xlu0 %4378
      %4380 = vrot.lane.b32.xlu0 %v4320, 4
      %v4381 = vpop.permute.xlu0 %4380
      %4382 = vrot.lane.b32.xlu0 %v4321, 4
      %v4383 = vpop.permute.xlu0 %4382
      %4384 = vrot.lane.b32.xlu0 %v4322, 4
      %v4385 = vpop.permute.xlu0 %4384
      %4386 = vrot.lane.b32.xlu0 %v4323, 4
      %v4387 = vpop.permute.xlu0 %4386
      %v4404 = vsel %vm620, %v492, %v4357
      %v4405 = vsel %vm620, %v493, %v4359
      %v4406 = vsel %vm620, %v494, %v4361
      %v4407 = vsel %vm620, %v495, %v4363
      %v4408 = vsel %vm620, %v496, %v4365
      %v4409 = vsel %vm620, %v497, %v4367
      %v4410 = vsel %vm620, %v498, %v4369
      %v4411 = vsel %vm620, %v499, %v4371
      %v4412 = vsel %vm620, %v500, %v4373
      %v4413 = vsel %vm620, %v501, %v4375
      %v4414 = vsel %vm620, %v502, %v4377
      %v4415 = vsel %vm620, %v503, %v4379
      %v4416 = vsel %vm620, %v504, %v4381
      %v4417 = vsel %vm620, %v505, %v4383
      %v4418 = vsel %vm620, %v506, %v4385
      %v4419 = vsel %vm620, %v507, %v4387
      %vm4420 = vcmask 64512
      %4421 = vst.msk [vmem:[%s479] sm:$0xff] %vm4420, %v4404
      %4422 = vst.msk [vmem:[%s479 + $0x8] sm:$0xff] %vm4420, %v4405
      %4423 = vst.msk [vmem:[%s479 + $0x10] sm:$0xff] %vm4420, %v4406
      %4424 = vst.msk [vmem:[%s479 + $0x18] sm:$0xff] %vm4420, %v4407
      %4425 = vst.msk [vmem:[%s479 + $0x20] sm:$0xff] %vm4420, %v4408
      %4426 = vst.msk [vmem:[%s479 + $0x28] sm:$0xff] %vm4420, %v4409
      %4427 = vst.msk [vmem:[%s479 + $0x30] sm:$0xff] %vm4420, %v4410
      %4428 = vst.msk [vmem:[%s479 + $0x38] sm:$0xff] %vm4420, %v4411
      %4429 = vst.msk [vmem:[%s479 + $0x40] sm:$0xff] %vm4420, %v4412
      %4430 = vst.msk [vmem:[%s479 + $0x48] sm:$0xff] %vm4420, %v4413
      %4431 = vst.msk [vmem:[%s479 + $0x50] sm:$0xff] %vm4420, %v4414
      %4432 = vst.msk [vmem:[%s479 + $0x58] sm:$0xff] %vm4420, %v4415
      %4433 = vst.msk [vmem:[%s479 + $0x60] sm:$0xff] %vm4420, %v4416
      %4434 = vst.msk [vmem:[%s479 + $0x68] sm:$0xff] %vm4420, %v4417
      %4435 = vst.msk [vmem:[%s479 + $0x70] sm:$0xff] %vm4420, %v4418
      %4436 = vst.msk [vmem:[%s479 + $0x78] sm:$0xff] %vm4420, %v4419
      %4453 = vrot.lane.b32.xlu0 %v4324, 124
      %v4454 = vpop.permute.xlu0 %4453
      %4455 = vrot.lane.b32.xlu0 %v4325, 124
      %v4456 = vpop.permute.xlu0 %4455
      %4457 = vrot.lane.b32.xlu0 %v4326, 124
      %v4458 = vpop.permute.xlu0 %4457
      %4459 = vrot.lane.b32.xlu0 %v4327, 124
      %v4460 = vpop.permute.xlu0 %4459
      %4461 = vrot.lane.b32.xlu0 %v4328, 124
      %v4462 = vpop.permute.xlu0 %4461
      %4463 = vrot.lane.b32.xlu0 %v4329, 124
      %v4464 = vpop.permute.xlu0 %4463
      %4465 = vrot.lane.b32.xlu0 %v4330, 124
      %v4466 = vpop.permute.xlu0 %4465
      %4467 = vrot.lane.b32.xlu0 %v4331, 124
      %v4468 = vpop.permute.xlu0 %4467
      %4469 = vrot.lane.b32.xlu0 %v4332, 124
      %v4470 = vpop.permute.xlu0 %4469
      %4471 = vrot.lane.b32.xlu0 %v4333, 124
      %v4472 = vpop.permute.xlu0 %4471
      %4473 = vrot.lane.b32.xlu0 %v4334, 124
      %v4474 = vpop.permute.xlu0 %4473
      %4475 = vrot.lane.b32.xlu0 %v4335, 124
      %v4476 = vpop.permute.xlu0 %4475
      %4477 = vrot.lane.b32.xlu0 %v4336, 124
      %v4478 = vpop.permute.xlu0 %4477
      %4479 = vrot.lane.b32.xlu0 %v4337, 124
      %v4480 = vpop.permute.xlu0 %4479
      %4481 = vrot.lane.b32.xlu0 %v4338, 124
      %v4482 = vpop.permute.xlu0 %4481
      %4483 = vrot.lane.b32.xlu0 %v4339, 124
      %v4484 = vpop.permute.xlu0 %4483
      %v4501 = vsel %vm620, %v4454, 0.0
      %4502 = vadd.xlane.f32.xlu0 %v4501
      %v4503 = vpop.xlane.xlu0 %4502
      %v4504 = vsel %vm620, %v4456, 0.0
      %4505 = vadd.xlane.f32.xlu0 %v4504
      %v4506 = vpop.xlane.xlu0 %4505
      %v4507 = vsel %vm620, %v4458, 0.0
      %4508 = vadd.xlane.f32.xlu0 %v4507
      %v4509 = vpop.xlane.xlu0 %4508
      %v4510 = vsel %vm620, %v4460, 0.0
      %4511 = vadd.xlane.f32.xlu0 %v4510
      %v4512 = vpop.xlane.xlu0 %4511
      %v4513 = vsel %vm620, %v4462, 0.0
      %4514 = vadd.xlane.f32.xlu0 %v4513
      %v4515 = vpop.xlane.xlu0 %4514
      %v4516 = vsel %vm620, %v4464, 0.0
      %4517 = vadd.xlane.f32.xlu0 %v4516
      %v4518 = vpop.xlane.xlu0 %4517
      %v4519 = vsel %vm620, %v4466, 0.0
      %4520 = vadd.xlane.f32.xlu0 %v4519
      %v4521 = vpop.xlane.xlu0 %4520
      %v4522 = vsel %vm620, %v4468, 0.0
      %4523 = vadd.xlane.f32.xlu0 %v4522
      %v4524 = vpop.xlane.xlu0 %4523
      %v4525 = vsel %vm620, %v4470, 0.0
      %4526 = vadd.xlane.f32.xlu0 %v4525
      %v4527 = vpop.xlane.xlu0 %4526
      %v4528 = vsel %vm620, %v4472, 0.0
      %4529 = vadd.xlane.f32.xlu0 %v4528
      %v4530 = vpop.xlane.xlu0 %4529
      %v4531 = vsel %vm620, %v4474, 0.0
      %4532 = vadd.xlane.f32.xlu0 %v4531
      %v4533 = vpop.xlane.xlu0 %4532
      %v4534 = vsel %vm620, %v4476, 0.0
      %4535 = vadd.xlane.f32.xlu0 %v4534
      %v4536 = vpop.xlane.xlu0 %4535
      %v4537 = vsel %vm620, %v4478, 0.0
      %4538 = vadd.xlane.f32.xlu0 %v4537
      %v4539 = vpop.xlane.xlu0 %4538
      %v4540 = vsel %vm620, %v4480, 0.0
      %4541 = vadd.xlane.f32.xlu0 %v4540
      %v4542 = vpop.xlane.xlu0 %4541
      %v4543 = vsel %vm620, %v4482, 0.0
      %4544 = vadd.xlane.f32.xlu0 %v4543
      %v4545 = vpop.xlane.xlu0 %4544
      %v4546 = vsel %vm620, %v4484, 0.0
      %4547 = vadd.xlane.f32.xlu0 %v4546
      %v4548 = vpop.xlane.xlu0 %4547
      %v4549 = vadd.f32 %v4503, %v4506
      %v4550 = vadd.f32 %v4549, %v4509
      %v4551 = vadd.f32 %v4550, %v4512
      %v4552 = vadd.f32 %v4551, %v4515
      %v4553 = vadd.f32 %v4552, %v4518
      %v4554 = vadd.f32 %v4553, %v4521
      %v4555 = vadd.f32 %v4554, %v4524
      %v4556 = vrot.slane %v4555, 4
      %v4557 = vadd.f32 %v4555, %v4556
      %v4558 = vrot.slane %v4557, 2
      %v4559 = vadd.f32 %v4557, %v4558
      %v4560 = vrot.slane %v4559, 1
      %v4561 = vadd.f32 %v4559, %v4560
      %v4562 = vadd.f32 %v4527, %v4530
      %v4563 = vadd.f32 %v4562, %v4533
      %v4564 = vadd.f32 %v4563, %v4536
      %v4565 = vadd.f32 %v4564, %v4539
      %v4566 = vadd.f32 %v4565, %v4542
      %v4567 = vadd.f32 %v4566, %v4545
      %v4568 = vadd.f32 %v4567, %v4548
      %v4569 = vrot.slane %v4568, 4
      %v4570 = vadd.f32 %v4568, %v4569
      %v4571 = vrot.slane %v4570, 2
      %v4572 = vadd.f32 %v4570, %v4571
      %v4573 = vrot.slane %v4572, 1
      %v4574 = vadd.f32 %v4572, %v4573
      %vm4575 = vcmask 0
      %4576 = vst.msk [vmem:[%s484] sm:$0x1] %vm4575, %v4561
      %4577 = vst.msk [vmem:[%s484 + $0x1] sm:$0x1] %vm4575, %v4574
      %s4578 = smul.u32 2, %s25
      %p4579 = scmp.lt.s32.totalorder %s4578, 3
      %s4580 = scalar_select %p4579, %s4578, 3
      %s4581 = smul.addr %s4580, 8
      %s4582 = smul.addr %s4581, 8
      %s4583 = scalar_lea.vmem %s12, %s4582
      %s4584 = smul.u32 2, %s25
      %p4585 = scmp.lt.s32.totalorder %s4584, 3
      %s4586 = scalar_select %p4585, %s4584, 3
      %s4587 = scalar_lea.vmem %s13, %s4586
      // Predicated region
      $region69: #{tpu_custom_call.1} parent=67 // pred_check
        %p4588 = pneg %p305
      $region70: #{tpu_custom_call.1} parent=67 // pred_check_branch
        %4590 = sbr.rel (%p4588) target = $region72
      $region71: #{tpu_custom_call.1} parent=67 // pred_region
        %s4591 = smul.u32 2, %s25
      $region72: #{tpu_custom_call.1} parent=67 // pred_fallthru
        _
      // Predicated region
      $region73: #{tpu_custom_call.1} parent=67 // pred_check
        %p4592 = pneg %p331
      $region74: #{tpu_custom_call.1} parent=67 // pred_check_branch
        %4594 = sbr.rel (%p4592) target = $region76
      $region75: #{tpu_custom_call.1} parent=67 // pred_region
        %s4595 = smul.u32 2, %s25
      $region76: #{tpu_custom_call.1} parent=67 // pred_fallthru
        _
    $region68: #{tpu_custom_call.1} parent=5 // pred_fallthru
      _
    %p4596 = scmp.le.s32.totalorder 2, %s20
    // Predicated region
    $region77: #{tpu_custom_call.1} parent=5 // pred_check
      %p4597 = pneg %p4596
    $region78: #{tpu_custom_call.1} parent=5 // pred_check_branch
      %4599 = sbr.rel (%p4597) target = $region80
    $region79: #{tpu_custom_call.1} parent=5 // pred_region
      %s4600 = ssub.s32 %s20, 2
      // Predicated region
      $region81: #{tpu_custom_call.1} parent=79 // pred_check
        %p4601 = pneg %p311
      $region82: #{tpu_custom_call.1} parent=79 // pred_check_branch
        %4603 = sbr.rel (%p4601) target = $region84
      $region83: #{tpu_custom_call.1} parent=79 // pred_region
        %s4604 = smul.u32 2, %s26
        %p4605 = scmp.lt.s32.totalorder %s4604, 3
        %s4606 = scalar_select %p4605, %s4604, 3
        %s4607 = smul.addr %s4606, 8
        %s4608 = smul.addr %s4607, 8
        %s4609 = scalar_lea.vmem %s12, %s4608
      $region84: #{tpu_custom_call.1} parent=79 // pred_fallthru
        _
      // Predicated region
      $region85: #{tpu_custom_call.1} parent=79 // pred_check
        %p4610 = pneg %p337
      $region86: #{tpu_custom_call.1} parent=79 // pred_check_branch
        %4612 = sbr.rel (%p4610) target = $region88
      $region87: #{tpu_custom_call.1} parent=79 // pred_region
        %s4613 = smul.u32 2, %s26
        %p4614 = scmp.lt.s32.totalorder %s4613, 3
        %s4615 = scalar_select %p4614, %s4613, 3
        %s4616 = scalar_lea.vmem %s13, %s4615
      $region88: #{tpu_custom_call.1} parent=79 // pred_fallthru
        _
    $region80: #{tpu_custom_call.1} parent=5 // pred_fallthru
      _
  $region6: #{tpu_custom_call.1} parent=0 // loop_footer
    %s24 = sadd.s32 1, %s20
  $region7: #{tpu_custom_call.1} parent=0 // loop_footer_branch
    %19 = sbr.rel target = $region3
  $region8: #{tpu_custom_call.1} parent=0 // loop_exit
    _

</llo_original>
